<compile_context>
chip_gen: v5e
topology: v5e:2x2
jax: 0.10.0
libtpu: 0.0.40
codegen_flags: <defaults>
</compile_context>

<pallas_src>
import jax
import jax.numpy as jnp
from jax import lax
from jax.experimental import pallas as pl
from jax.experimental.pallas import tpu as pltpu


def ggru_kernel(a_ref, x_ref, wd_ref, bd_ref, wzr_ref, wh_ref, sum_ref, data_ref):
    N, F = sum_ref.shape
    T = x_ref.shape[0]

    # ---------------- Hoisted H-independent data path (one M = T*N matmul) -----------
    # A @ (X_t @ W) reassociated to (A @ X_t) @ W so the A-matmuls are shared by the
    # z/r/h gates; the W_data matmul is batched over all T steps at M = T*N = 256.
    A = a_ref[...]                                                    # (N, N) bf16
    ax = [jnp.dot(A, x_ref[t], preferred_element_type=jnp.float32)    # (N, F) f32
          for t in range(T)]
    ax_all = jnp.concatenate(ax, axis=0).astype(jnp.bfloat16)         # (T*N, F) bf16
    # data[:, 0:F]=z, [F:2F]=r, [2F:3F]=h pre-activations; both GCN biases folded in.
    data_ref[...] = (jnp.dot(ax_all, wd_ref[...],
                             preferred_element_type=jnp.float32)
                     + bd_ref[...])                                   # (T*N, 3F) f32

    # ---------------- Recurrence ------------------------------------------------------
    row = lax.broadcasted_iota(jnp.int32, (N, F), 0)
    col = lax.broadcasted_iota(jnp.int32, (N, F), 1)
    diag = row == col                                                 # eye(N, F) mask

    def step(t, carry):
        H, acc = carry                                                # f32 (N, F) each
        rs = pl.multiple_of(t * N, N)
        d_z = data_ref[pl.ds(rs, N), 0:F]
        d_r = data_ref[pl.ds(rs, N), F:2 * F]
        d_h = data_ref[pl.ds(rs, N), 2 * F:3 * F]
        # Hidden-path GCNConv (empty edge_index + self-loops => identity propagation).
        hid_zr = jnp.dot(H.astype(jnp.bfloat16), wzr_ref[...],
                         preferred_element_type=jnp.float32)          # (N, 2F)
        z = jax.nn.sigmoid(d_z + hid_zr[:, 0:F])
        r = jax.nn.sigmoid(d_r + hid_zr[:, F:2 * F])
        rH = r * H                                                    # in-place quirk
        hid_h = jnp.dot(rH.astype(jnp.bfloat16), wh_ref[...],
                        preferred_element_type=jnp.float32)           # (N, F)
        cand = jnp.tanh(d_h + hid_h)
        h_decay = (1.0 - z) * rH           # next hidden (candidate is NOT carried)
        return h_decay, acc + h_decay + z * cand

    if N <= F:
        # Step 0 specialized for H0 = eye(N, F): eye @ W is a row slice of W, and
        # (r * eye) @ W is diag(r)-scaled rows of W -> no MXU launches in step 0.
        hid_zr0 = wzr_ref[0:N, :].astype(jnp.float32)                 # (N, 2F)
        z0 = jax.nn.sigmoid(data_ref[0:N, 0:F] + hid_zr0[:, 0:F])
        r0 = jax.nn.sigmoid(data_ref[0:N, F:2 * F] + hid_zr0[:, F:2 * F])
        r0_diag = jnp.sum(jnp.where(diag, r0, 0.0), axis=1, keepdims=True)  # (N, 1)
        hid_h0 = r0_diag * wh_ref[0:N, :].astype(jnp.float32)         # (r0*eye) @ W_hh
        cand0 = jnp.tanh(data_ref[0:N, 2 * F:3 * F] + hid_h0)
        H1 = jnp.where(diag, (1.0 - z0) * r0, 0.0)                    # (1-z)*r*eye
        carry0 = (H1, H1 + z0 * cand0)
        t_start = 1
    else:
        carry0 = (jnp.where(diag, 1.0, 0.0).astype(jnp.float32),
                  jnp.zeros((N, F), jnp.float32))
        t_start = 0

    _, acc = lax.fori_loop(t_start, T, step, carry0, unroll=True)
    sum_ref[...] = acc                 # torch.cat(outputs[1..4], dim=2).sum(dim=2)


@jax.jit
def ggru_forward(a_norm, x_seq, w_stack, b_stack, lin_w, lin_b):
    T, N, F = x_seq.shape

    # Pre-fuse the data-path gate weights [z | r | h] (slices land on 128-lane tiles) and
    # fold in the hidden-path biases (b_in + b_hid per gate) -> no bias adds in the loop.
    w_data = jnp.concatenate([w_stack[0], w_stack[2], w_stack[4]],
                             axis=1).astype(jnp.bfloat16)             # (F, 3F)
    b_data = jnp.concatenate([b_stack[0] + b_stack[1],
                              b_stack[2] + b_stack[3],
                              b_stack[4] + b_stack[5]], axis=1)       # (1, 3F) f32
    w_hzr = jnp.concatenate([w_stack[1], w_stack[3]],
                            axis=1).astype(jnp.bfloat16)              # (F, 2F)
    w_hh = w_stack[5].astype(jnp.bfloat16)                            # (F, F)

    a_bf = a_norm.astype(jnp.bfloat16)   # single time-invariant (N, N) adjacency
    x_bf = x_seq.astype(jnp.bfloat16)

    # TODO(synk): for batched graphs add a leading "parallel" grid axis
    # (dimension_semantics=("parallel", ...)) so v7x's second TensorCore is used.
    node_sum = pl.pallas_call(
        ggru_kernel,
        out_shape=jax.ShapeDtypeStruct((N, F), jnp.float32),
        in_specs=[pl.BlockSpec(memory_space=pltpu.MemorySpace.VMEM)] * 6,
        out_specs=pl.BlockSpec(memory_space=pltpu.MemorySpace.VMEM),
        scratch_shapes=[pltpu.VMEM((T * N, 3 * F), jnp.float32)],
    )(a_bf, x_bf, w_data, b_data, w_hzr, w_hh)

    # Epilogue in plain JAX: global_mean_pool with batch == zeros -> mean over nodes,
    # then Linear.
    # TODO(synk): F.dropout(p=0.5) is training-mode randomness; eval semantics = identity.
    pooled = jnp.mean(node_sum, axis=0, keepdims=True)                # (1, F)
    logits = pooled @ lin_w + lin_b                                   # (1, C)
    return logits, node_sum


def ggru_reference_f32(a_norm, x_seq, w_stack, b_stack, lin_w, lin_b):
    """Pure-f32 JAX transcription of the PyTorch forward (incl. in-place quirks)."""
    T, N, F = x_seq.shape
    H = jnp.eye(N, F, dtype=jnp.float32)
    acc = jnp.zeros((N, F), jnp.float32)
    for t in range(T):
        xt = x_seq[t]
        gin = lambda k: a_norm @ (xt @ w_stack[k]) + b_stack[k]       # GCNConv(data)
        ghid = lambda h, k: h @ w_stack[k] + b_stack[k]               # empty edge_index
        z = jax.nn.sigmoid(gin(0) + ghid(H, 1))
        r = jax.nn.sigmoid(gin(2) + ghid(H, 3))
        weighted = r * H                     # weigh_graph mutates Hidden_State in place
        cand = jnp.tanh(gin(4) + ghid(weighted, 5))
        h_decay = (1.0 - z) * weighted
        acc = acc + h_decay + z * cand       # outputs[t+1].x
        H = h_decay                          # mutated Hidden_State carried forward
    pooled = jnp.mean(acc, axis=0, keepdims=True)
    return pooled @ lin_w + lin_b, acc


def gcn_norm_dense(edge_index, num_nodes):
    """Dense D^-1/2 (A + I) D^-1/2, A[dst, src] = 1 (PyG source_to_target flow)."""
    src, dst = edge_index
    A = jnp.zeros((num_nodes, num_nodes), jnp.float32)
    A = A.at[dst, src].add(1.0)
    A = A + jnp.eye(num_nodes, dtype=jnp.float32)          # add_self_loops
    deg = A.sum(axis=1)
    dinv = jnp.where(deg > 0, 1.0 / jnp.sqrt(deg), 0.0)
    return dinv[:, None] * A * dinv[None, :]


if __name__ == "__main__":
    # Small, MXU/vreg-friendly sizes: 64 nodes, feature_size = hidden_size = 128.
    N, F, C, T = 64, 128, 2, 4

    key = jax.random.PRNGKey(0)
    kx, kw, kb, klw, klb = jax.random.split(key, 5)

    # Deterministic graph: bidirectional ring over N nodes (time-invariant, so a single
    # (N, N) normalized adjacency is shared by all T steps).
    idx = jnp.arange(N, dtype=jnp.int32)
    src = jnp.concatenate([idx, (idx + 1) % N])
    dst = jnp.concatenate([(idx + 1) % N, idx])
    a_norm = gcn_norm_dense((src, dst), N)                  # (N, N)

    # Deterministic per-timestep node features and parameters
    # (6 GCNConv layers: z_in, z_h, r_in, r_h, h_in, h_h).
    x_seq = jax.random.normal(kx, (T, N, F), dtype=jnp.float32)
    w_stack = 0.05 * jax.random.normal(kw, (6, F, F), dtype=jnp.float32)
    b_stack = 0.01 * jax.random.normal(kb, (6, 1, F), dtype=jnp.float32)
    lin_w = 0.05 * jax.random.normal(klw, (F, C), dtype=jnp.float32)
    lin_b = 0.01 * jax.random.normal(klb, (1, C), dtype=jnp.float32)

    logits, node_sum = ggru_forward(a_norm, x_seq, w_stack, b_stack, lin_w, lin_b)
    jax.block_until_ready((logits, node_sum))

    # Tolerance check against a pure-f32 JAX reference of the PyTorch semantics
    # (bf16 MXU operands + reassociated / fused matmuls change rounding order).
    logits_ref, node_sum_ref = ggru_reference_f32(a_norm, x_seq, w_stack, b_stack,
                                                  lin_w, lin_b)
    assert logits.shape == (1, C) and node_sum.shape == (N, F)
    assert bool(jnp.all(jnp.isfinite(logits))) and bool(jnp.all(jnp.isfinite(node_sum)))
    assert bool(jnp.allclose(node_sum, node_sum_ref, rtol=3e-2, atol=3e-2)), (
        "node_sum max abs err", float(jnp.max(jnp.abs(node_sum - node_sum_ref))))
    assert bool(jnp.allclose(logits, logits_ref, rtol=3e-2, atol=3e-2)), (
        "logits max abs err", float(jnp.max(jnp.abs(logits - logits_ref))))
    print("KERNEL_OK")
</pallas_src>

<mosaic_0001>
module attributes {stable_mosaic.version = 11 : i64} {
  func.func @ggru_kernel(%arg0: memref<64x64xbf16, #tpu.memory_space<vmem>>, %arg1: memref<4x64x128xbf16, #tpu.memory_space<vmem>>, %arg2: memref<128x384xbf16, #tpu.memory_space<vmem>>, %arg3: memref<1x384xf32, #tpu.memory_space<vmem>>, %arg4: memref<128x256xbf16, #tpu.memory_space<vmem>>, %arg5: memref<128x128xbf16, #tpu.memory_space<vmem>>, %arg6: memref<64x128xf32, #tpu.memory_space<vmem>>, %arg7: memref<256x384xf32, #tpu.memory_space<vmem>>) attributes {dimension_semantics = [], scalar_prefetch = 0 : i64, scratch_operands = 1 : i64, tpu.core_type = #tpu.core_type<tc>} {
    %c0 = arith.constant 0 : index
    %c0_0 = arith.constant 0 : index
    %0 = vector.load %arg0[%c0, %c0_0] : memref<64x64xbf16, #tpu.memory_space<vmem>>, vector<64x64xbf16>
    %c0_1 = arith.constant 0 : index
    %c0_2 = arith.constant 0 : index
    %c0_3 = arith.constant 0 : index
    %1 = vector.load %arg1[%c0_1, %c0_2, %c0_3] : memref<4x64x128xbf16, #tpu.memory_space<vmem>>, vector<1x64x128xbf16>
    %2 = vector.shape_cast %1 : vector<1x64x128xbf16> to vector<64x128xbf16>
    %cst = arith.constant dense<0.000000e+00> : vector<64x128xf32>
    %3 = tpu.matmul %0, %2, %cst {dimension_numbers = #tpu.dot_dimension_numbers<[1], [0], [0], [1], [0, 0, 1, 1], [], []>} : vector<64x64xbf16>, vector<64x128xbf16>, vector<64x128xf32> -> vector<64x128xf32>
    %c1 = arith.constant 1 : index
    %c0_4 = arith.constant 0 : index
    %c0_5 = arith.constant 0 : index
    %4 = vector.load %arg1[%c1, %c0_4, %c0_5] : memref<4x64x128xbf16, #tpu.memory_space<vmem>>, vector<1x64x128xbf16>
    %5 = vector.shape_cast %4 : vector<1x64x128xbf16> to vector<64x128xbf16>
    %cst_6 = arith.constant dense<0.000000e+00> : vector<64x128xf32>
    %6 = tpu.matmul %0, %5, %cst_6 {dimension_numbers = #tpu.dot_dimension_numbers<[1], [0], [0], [1], [0, 0, 1, 1], [], []>} : vector<64x64xbf16>, vector<64x128xbf16>, vector<64x128xf32> -> vector<64x128xf32>
    %c2 = arith.constant 2 : index
    %c0_7 = arith.constant 0 : index
    %c0_8 = arith.constant 0 : index
    %7 = vector.load %arg1[%c2, %c0_7, %c0_8] : memref<4x64x128xbf16, #tpu.memory_space<vmem>>, vector<1x64x128xbf16>
    %8 = vector.shape_cast %7 : vector<1x64x128xbf16> to vector<64x128xbf16>
    %cst_9 = arith.constant dense<0.000000e+00> : vector<64x128xf32>
    %9 = tpu.matmul %0, %8, %cst_9 {dimension_numbers = #tpu.dot_dimension_numbers<[1], [0], [0], [1], [0, 0, 1, 1], [], []>} : vector<64x64xbf16>, vector<64x128xbf16>, vector<64x128xf32> -> vector<64x128xf32>
    %c3 = arith.constant 3 : index
    %c0_10 = arith.constant 0 : index
    %c0_11 = arith.constant 0 : index
    %10 = vector.load %arg1[%c3, %c0_10, %c0_11] : memref<4x64x128xbf16, #tpu.memory_space<vmem>>, vector<1x64x128xbf16>
    %11 = vector.shape_cast %10 : vector<1x64x128xbf16> to vector<64x128xbf16>
    %cst_12 = arith.constant dense<0.000000e+00> : vector<64x128xf32>
    %12 = tpu.matmul %0, %11, %cst_12 {dimension_numbers = #tpu.dot_dimension_numbers<[1], [0], [0], [1], [0, 0, 1, 1], [], []>} : vector<64x64xbf16>, vector<64x128xbf16>, vector<64x128xf32> -> vector<64x128xf32>
    %13 = tpu.concatenate %3, %6, %9, %12 in 0 : vector<64x128xf32>, vector<64x128xf32>, vector<64x128xf32>, vector<64x128xf32> -> vector<256x128xf32>
    %14 = arith.truncf %13 : vector<256x128xf32> to vector<256x128xbf16>
    %c0_13 = arith.constant 0 : index
    %c0_14 = arith.constant 0 : index
    %15 = vector.load %arg2[%c0_13, %c0_14] : memref<128x384xbf16, #tpu.memory_space<vmem>>, vector<128x384xbf16>
    %cst_15 = arith.constant dense<0.000000e+00> : vector<256x384xf32>
    %16 = tpu.matmul %14, %15, %cst_15 {dimension_numbers = #tpu.dot_dimension_numbers<[1], [0], [0], [1], [0, 0, 1, 1], [], []>} : vector<256x128xbf16>, vector<128x384xbf16>, vector<256x384xf32> -> vector<256x384xf32>
    %c0_16 = arith.constant 0 : index
    %c0_17 = arith.constant 0 : index
    %17 = vector.load %arg3[%c0_16, %c0_17] : memref<1x384xf32, #tpu.memory_space<vmem>>, vector<1x384xf32>
    %18 = vector.broadcast %17 : vector<1x384xf32> to vector<256x384xf32>
    %19 = arith.addf %16, %18 : vector<256x384xf32>
    %c0_18 = arith.constant 0 : index
    %c0_19 = arith.constant 0 : index
    %20 = vector.load %arg7[%c0_18, %c0_19] : memref<256x384xf32, #tpu.memory_space<vmem>>, vector<256x384xf32>
    tpu.vector_store %arg7[%c0_18, %c0_19], %19 {strides = array<i32>} : memref<256x384xf32, #tpu.memory_space<vmem>>, vector<256x384xf32>,
    %21 = tpu.iota {dimensions = array<i32: 0>} : vector<64x128xi32>
    %22 = tpu.iota {dimensions = array<i32: 1>} : vector<64x128xi32>
    %23 = arith.cmpi eq, %21, %22 : vector<64x128xi32>
    %c0_20 = arith.constant 0 : index
    %c0_21 = arith.constant 0 : index
    %24 = vector.load %arg4[%c0_20, %c0_21] : memref<128x256xbf16, #tpu.memory_space<vmem>>, vector<64x256xbf16>
    %25 = arith.extf %24 : vector<64x256xbf16> to vector<64x256xf32>
    %c0_22 = arith.constant 0 : index
    %c0_23 = arith.constant 0 : index
    %26 = vector.load %arg7[%c0_22, %c0_23] : memref<256x384xf32, #tpu.memory_space<vmem>>, vector<64x128xf32>
    %27 = vector.extract_strided_slice %25 {offsets = [0, 0], sizes = [64, 128], strides = [1, 1]} : vector<64x256xf32> to vector<64x128xf32>
    %28 = arith.addf %26, %27 : vector<64x128xf32>
    %29 = arith.negf %28 : vector<64x128xf32>
    %30 = math.exp %29 : vector<64x128xf32>
    %cst_24 = arith.constant 1.000000e+00 : f32
    %31 = vector.broadcast %cst_24 : f32 to vector<64x128xf32>
    %32 = arith.addf %31, %30 : vector<64x128xf32>
    %33 = arith.divf %31, %32 : vector<64x128xf32>
    %c0_25 = arith.constant 0 : index
    %c128 = arith.constant 128 : index
    %34 = vector.load %arg7[%c0_25, %c128] : memref<256x384xf32, #tpu.memory_space<vmem>>, vector<64x128xf32>
    %35 = vector.extract_strided_slice %25 {offsets = [0, 128], sizes = [64, 128], strides = [1, 1]} : vector<64x256xf32> to vector<64x128xf32>
    %36 = arith.addf %34, %35 : vector<64x128xf32>
    %37 = arith.negf %36 : vector<64x128xf32>
    %38 = math.exp %37 : vector<64x128xf32>
    %cst_26 = arith.constant 1.000000e+00 : f32
    %39 = vector.broadcast %cst_26 : f32 to vector<64x128xf32>
    %40 = arith.addf %39, %38 : vector<64x128xf32>
    %41 = arith.divf %39, %40 : vector<64x128xf32>
    %cst_27 = arith.constant 0.000000e+00 : f32
    %42 = vector.broadcast %cst_27 : f32 to vector<64x128xf32>
    %43 = arith.select %23, %41, %42 : vector<64x128xi1>, vector<64x128xf32>
    %cst_28 = arith.constant dense<0.000000e+00> : vector<64xf32>
    %44 = vector.multi_reduction <add>, %43, %cst_28 [1] : vector<64x128xf32> to vector<64xf32>
    %45 = vector.shape_cast %44 : vector<64xf32> to vector<64x1xf32>
    %c0_29 = arith.constant 0 : index
    %c0_30 = arith.constant 0 : index
    %46 = vector.load %arg5[%c0_29, %c0_30] : memref<128x128xbf16, #tpu.memory_space<vmem>>, vector<64x128xbf16>
    %47 = arith.extf %46 : vector<64x128xbf16> to vector<64x128xf32>
    %48 = vector.broadcast %45 : vector<64x1xf32> to vector<64x128xf32>
    %49 = arith.mulf %48, %47 : vector<64x128xf32>
    %c0_31 = arith.constant 0 : index
    %c256 = arith.constant 256 : index
    %50 = vector.load %arg7[%c0_31, %c256] : memref<256x384xf32, #tpu.memory_space<vmem>>, vector<64x128xf32>
    %51 = arith.addf %50, %49 : vector<64x128xf32>
    %52 = math.tanh %51 : vector<64x128xf32>
    %cst_32 = arith.constant 1.000000e+00 : f32
    %53 = vector.broadcast %cst_32 : f32 to vector<64x128xf32>
    %54 = arith.subf %53, %33 : vector<64x128xf32>
    %55 = arith.mulf %54, %41 : vector<64x128xf32>
    %cst_33 = arith.constant 0.000000e+00 : f32
    %56 = vector.broadcast %cst_33 : f32 to vector<64x128xf32>
    %57 = arith.select %23, %55, %56 : vector<64x128xi1>, vector<64x128xf32>
    %58 = arith.mulf %33, %52 : vector<64x128xf32>
    %59 = arith.addf %57, %58 : vector<64x128xf32>
    %c1_i32 = arith.constant 1 : i32
    %c64_i32 = arith.constant 64 : i32
    %60 = arith.muli %c1_i32, %c64_i32 : i32
    %61 = tpu.assume_multiple %60, 64 : i32
    %62 = arith.index_cast %61 : i32 to index
    %c0_34 = arith.constant 0 : index
    %63 = vector.load %arg7[%62, %c0_34] : memref<256x384xf32, #tpu.memory_space<vmem>>, vector<64x128xf32>
    %64 = arith.index_cast %61 : i32 to index
    %c128_35 = arith.constant 128 : index
    %65 = vector.load %arg7[%64, %c128_35] : memref<256x384xf32, #tpu.memory_space<vmem>>, vector<64x128xf32>
    %66 = arith.index_cast %61 : i32 to index
    %c256_36 = arith.constant 256 : index
    %67 = vector.load %arg7[%66, %c256_36] : memref<256x384xf32, #tpu.memory_space<vmem>>, vector<64x128xf32>
    %68 = arith.truncf %57 : vector<64x128xf32> to vector<64x128xbf16>
    %c0_37 = arith.constant 0 : index
    %c0_38 = arith.constant 0 : index
    %69 = vector.load %arg4[%c0_37, %c0_38] : memref<128x256xbf16, #tpu.memory_space<vmem>>, vector<128x256xbf16>
    %cst_39 = arith.constant dense<0.000000e+00> : vector<64x256xf32>
    %70 = tpu.matmul %68, %69, %cst_39 {dimension_numbers = #tpu.dot_dimension_numbers<[1], [0], [0], [1], [0, 0, 1, 1], [], []>} : vector<64x128xbf16>, vector<128x256xbf16>, vector<64x256xf32> -> vector<64x256xf32>
    %71 = vector.extract_strided_slice %70 {offsets = [0, 0], sizes = [64, 128], strides = [1, 1]} : vector<64x256xf32> to vector<64x128xf32>
    %72 = arith.addf %63, %71 : vector<64x128xf32>
    %73 = arith.negf %72 : vector<64x128xf32>
    %74 = math.exp %73 : vector<64x128xf32>
    %cst_40 = arith.constant 1.000000e+00 : f32
    %75 = vector.broadcast %cst_40 : f32 to vector<64x128xf32>
    %76 = arith.addf %75, %74 : vector<64x128xf32>
    %77 = arith.divf %75, %76 : vector<64x128xf32>
    %78 = vector.extract_strided_slice %70 {offsets = [0, 128], sizes = [64, 128], strides = [1, 1]} : vector<64x256xf32> to vector<64x128xf32>
    %79 = arith.addf %65, %78 : vector<64x128xf32>
    %80 = arith.negf %79 : vector<64x128xf32>
    %81 = math.exp %80 : vector<64x128xf32>
    %cst_41 = arith.constant 1.000000e+00 : f32
    %82 = vector.broadcast %cst_41 : f32 to vector<64x128xf32>
    %83 = arith.addf %82, %81 : vector<64x128xf32>
    %84 = arith.divf %82, %83 : vector<64x128xf32>
    %85 = arith.mulf %84, %57 : vector<64x128xf32>
    %86 = arith.truncf %85 : vector<64x128xf32> to vector<64x128xbf16>
    %c0_42 = arith.constant 0 : index
    %c0_43 = arith.constant 0 : index
    %87 = vector.load %arg5[%c0_42, %c0_43] : memref<128x128xbf16, #tpu.memory_space<vmem>>, vector<128x128xbf16>
    %cst_44 = arith.constant dense<0.000000e+00> : vector<64x128xf32>
    %88 = tpu.matmul %86, %87, %cst_44 {dimension_numbers = #tpu.dot_dimension_numbers<[1], [0], [0], [1], [0, 0, 1, 1], [], []>} : vector<64x128xbf16>, vector<128x128xbf16>, vector<64x128xf32> -> vector<64x128xf32>
    %89 = arith.addf %67, %88 : vector<64x128xf32>
    %90 = math.tanh %89 : vector<64x128xf32>
    %cst_45 = arith.constant 1.000000e+00 : f32
    %91 = vector.broadcast %cst_45 : f32 to vector<64x128xf32>
    %92 = arith.subf %91, %77 : vector<64x128xf32>
    %93 = arith.mulf %92, %85 : vector<64x128xf32>
    %94 = arith.addf %59, %93 : vector<64x128xf32>
    %95 = arith.mulf %77, %90 : vector<64x128xf32>
    %96 = arith.addf %94, %95 : vector<64x128xf32>
    %c2_i32 = arith.constant 2 : i32
    %c64_i32_46 = arith.constant 64 : i32
    %97 = arith.muli %c2_i32, %c64_i32_46 : i32
    %98 = tpu.assume_multiple %97, 64 : i32
    %99 = arith.index_cast %98 : i32 to index
    %c0_47 = arith.constant 0 : index
    %100 = vector.load %arg7[%99, %c0_47] : memref<256x384xf32, #tpu.memory_space<vmem>>, vector<64x128xf32>
    %101 = arith.index_cast %98 : i32 to index
    %c128_48 = arith.constant 128 : index
    %102 = vector.load %arg7[%101, %c128_48] : memref<256x384xf32, #tpu.memory_space<vmem>>, vector<64x128xf32>
    %103 = arith.index_cast %98 : i32 to index
    %c256_49 = arith.constant 256 : index
    %104 = vector.load %arg7[%103, %c256_49] : memref<256x384xf32, #tpu.memory_space<vmem>>, vector<64x128xf32>
    %105 = arith.truncf %93 : vector<64x128xf32> to vector<64x128xbf16>
    %c0_50 = arith.constant 0 : index
    %c0_51 = arith.constant 0 : index
    %106 = vector.load %arg4[%c0_50, %c0_51] : memref<128x256xbf16, #tpu.memory_space<vmem>>, vector<128x256xbf16>
    %cst_52 = arith.constant dense<0.000000e+00> : vector<64x256xf32>
    %107 = tpu.matmul %105, %106, %cst_52 {dimension_numbers = #tpu.dot_dimension_numbers<[1], [0], [0], [1], [0, 0, 1, 1], [], []>} : vector<64x128xbf16>, vector<128x256xbf16>, vector<64x256xf32> -> vector<64x256xf32>
    %108 = vector.extract_strided_slice %107 {offsets = [0, 0], sizes = [64, 128], strides = [1, 1]} : vector<64x256xf32> to vector<64x128xf32>
    %109 = arith.addf %100, %108 : vector<64x128xf32>
    %110 = arith.negf %109 : vector<64x128xf32>
    %111 = math.exp %110 : vector<64x128xf32>
    %cst_53 = arith.constant 1.000000e+00 : f32
    %112 = vector.broadcast %cst_53 : f32 to vector<64x128xf32>
    %113 = arith.addf %112, %111 : vector<64x128xf32>
    %114 = arith.divf %112, %113 : vector<64x128xf32>
    %115 = vector.extract_strided_slice %107 {offsets = [0, 128], sizes = [64, 128], strides = [1, 1]} : vector<64x256xf32> to vector<64x128xf32>
    %116 = arith.addf %102, %115 : vector<64x128xf32>
    %117 = arith.negf %116 : vector<64x128xf32>
    %118 = math.exp %117 : vector<64x128xf32>
    %cst_54 = arith.constant 1.000000e+00 : f32
    %119 = vector.broadcast %cst_54 : f32 to vector<64x128xf32>
    %120 = arith.addf %119, %118 : vector<64x128xf32>
    %121 = arith.divf %119, %120 : vector<64x128xf32>
    %122 = arith.mulf %121, %93 : vector<64x128xf32>
    %123 = arith.truncf %122 : vector<64x128xf32> to vector<64x128xbf16>
    %c0_55 = arith.constant 0 : index
    %c0_56 = arith.constant 0 : index
    %124 = vector.load %arg5[%c0_55, %c0_56] : memref<128x128xbf16, #tpu.memory_space<vmem>>, vector<128x128xbf16>
    %cst_57 = arith.constant dense<0.000000e+00> : vector<64x128xf32>
    %125 = tpu.matmul %123, %124, %cst_57 {dimension_numbers = #tpu.dot_dimension_numbers<[1], [0], [0], [1], [0, 0, 1, 1], [], []>} : vector<64x128xbf16>, vector<128x128xbf16>, vector<64x128xf32> -> vector<64x128xf32>
    %126 = arith.addf %104, %125 : vector<64x128xf32>
    %127 = math.tanh %126 : vector<64x128xf32>
    %cst_58 = arith.constant 1.000000e+00 : f32
    %128 = vector.broadcast %cst_58 : f32 to vector<64x128xf32>
    %129 = arith.subf %128, %114 : vector<64x128xf32>
    %130 = arith.mulf %129, %122 : vector<64x128xf32>
    %131 = arith.addf %96, %130 : vector<64x128xf32>
    %132 = arith.mulf %114, %127 : vector<64x128xf32>
    %133 = arith.addf %131, %132 : vector<64x128xf32>
    %c3_i32 = arith.constant 3 : i32
    %c64_i32_59 = arith.constant 64 : i32
    %134 = arith.muli %c3_i32, %c64_i32_59 : i32
    %135 = tpu.assume_multiple %134, 64 : i32
    %136 = arith.index_cast %135 : i32 to index
    %c0_60 = arith.constant 0 : index
    %137 = vector.load %arg7[%136, %c0_60] : memref<256x384xf32, #tpu.memory_space<vmem>>, vector<64x128xf32>
    %138 = arith.index_cast %135 : i32 to index
    %c128_61 = arith.constant 128 : index
    %139 = vector.load %arg7[%138, %c128_61] : memref<256x384xf32, #tpu.memory_space<vmem>>, vector<64x128xf32>
    %140 = arith.index_cast %135 : i32 to index
    %c256_62 = arith.constant 256 : index
    %141 = vector.load %arg7[%140, %c256_62] : memref<256x384xf32, #tpu.memory_space<vmem>>, vector<64x128xf32>
    %142 = arith.truncf %130 : vector<64x128xf32> to vector<64x128xbf16>
    %c0_63 = arith.constant 0 : index
    %c0_64 = arith.constant 0 : index
    %143 = vector.load %arg4[%c0_63, %c0_64] : memref<128x256xbf16, #tpu.memory_space<vmem>>, vector<128x256xbf16>
    %cst_65 = arith.constant dense<0.000000e+00> : vector<64x256xf32>
    %144 = tpu.matmul %142, %143, %cst_65 {dimension_numbers = #tpu.dot_dimension_numbers<[1], [0], [0], [1], [0, 0, 1, 1], [], []>} : vector<64x128xbf16>, vector<128x256xbf16>, vector<64x256xf32> -> vector<64x256xf32>
    %145 = vector.extract_strided_slice %144 {offsets = [0, 0], sizes = [64, 128], strides = [1, 1]} : vector<64x256xf32> to vector<64x128xf32>
    %146 = arith.addf %137, %145 : vector<64x128xf32>
    %147 = arith.negf %146 : vector<64x128xf32>
    %148 = math.exp %147 : vector<64x128xf32>
    %cst_66 = arith.constant 1.000000e+00 : f32
    %149 = vector.broadcast %cst_66 : f32 to vector<64x128xf32>
    %150 = arith.addf %149, %148 : vector<64x128xf32>
    %151 = arith.divf %149, %150 : vector<64x128xf32>
    %152 = vector.extract_strided_slice %144 {offsets = [0, 128], sizes = [64, 128], strides = [1, 1]} : vector<64x256xf32> to vector<64x128xf32>
    %153 = arith.addf %139, %152 : vector<64x128xf32>
    %154 = arith.negf %153 : vector<64x128xf32>
    %155 = math.exp %154 : vector<64x128xf32>
    %cst_67 = arith.constant 1.000000e+00 : f32
    %156 = vector.broadcast %cst_67 : f32 to vector<64x128xf32>
    %157 = arith.addf %156, %155 : vector<64x128xf32>
    %158 = arith.divf %156, %157 : vector<64x128xf32>
    %159 = arith.mulf %158, %130 : vector<64x128xf32>
    %160 = arith.truncf %159 : vector<64x128xf32> to vector<64x128xbf16>
    %c0_68 = arith.constant 0 : index
    %c0_69 = arith.constant 0 : index
    %161 = vector.load %arg5[%c0_68, %c0_69] : memref<128x128xbf16, #tpu.memory_space<vmem>>, vector<128x128xbf16>
    %cst_70 = arith.constant dense<0.000000e+00> : vector<64x128xf32>
    %162 = tpu.matmul %160, %161, %cst_70 {dimension_numbers = #tpu.dot_dimension_numbers<[1], [0], [0], [1], [0, 0, 1, 1], [], []>} : vector<64x128xbf16>, vector<128x128xbf16>, vector<64x128xf32> -> vector<64x128xf32>
    %163 = arith.addf %141, %162 : vector<64x128xf32>
    %164 = math.tanh %163 : vector<64x128xf32>
    %cst_71 = arith.constant 1.000000e+00 : f32
    %165 = vector.broadcast %cst_71 : f32 to vector<64x128xf32>
    %166 = arith.subf %165, %151 : vector<64x128xf32>
    %167 = arith.mulf %166, %159 : vector<64x128xf32>
    %168 = arith.addf %133, %167 : vector<64x128xf32>
    %169 = arith.mulf %151, %164 : vector<64x128xf32>
    %170 = arith.addf %168, %169 : vector<64x128xf32>
    %c3_i32_72 = arith.constant 3 : i32
    %c0_73 = arith.constant 0 : index
    %c0_74 = arith.constant 0 : index
    %171 = vector.load %arg6[%c0_73, %c0_74] : memref<64x128xf32, #tpu.memory_space<vmem>>, vector<64x128xf32>
    tpu.vector_store %arg6[%c0_73, %c0_74], %170 {strides = array<i32>} : memref<64x128xf32, #tpu.memory_space<vmem>>, vector<64x128xf32>,
    return
  }
}

</mosaic_0001>

<llo_original>
// kernel: ggru_forward.1
$region0: #{ggru_forward.1}
  #allocation0 [shape = 'u32[]', space=smem, size = 0x4, offset = 0x4, fixed_abs, tag = 'smem constant byte address 0x4 - core index']
  #allocation1 [shape = 'u32[72,128]{1,0:T(1,128)}', space=vmem, size = 0x9000, scoped, tag = 'internal scratch']
  #allocation2 [shape = 'f32[256,384]{1,0:T(8,128)}', space=vmem, size = 0x60000, scoped, tag = 'scratch operand']
  %s0 = inlined_call_operand.vmem [shape: bf16[64,64], index: 0, kind: input, shape index: {}]
  %s1 = inlined_call_operand.vmem [shape: bf16[4,64,128], index: 1, kind: input, shape index: {}]
  %s2 = inlined_call_operand.vmem [shape: bf16[128,384], index: 2, kind: input, shape index: {}]
  %s3 = inlined_call_operand.vmem [shape: f32[1,384], index: 3, kind: input, shape index: {}]
  %s4 = inlined_call_operand.vmem [shape: bf16[128,256], index: 4, kind: input, shape index: {}]
  %s5 = inlined_call_operand.vmem [shape: bf16[128,128], index: 5, kind: input, shape index: {}]
  %s6 = inlined_call_operand.vmem [shape: f32[64,128], index: 6, kind: output, shape index: {}]
  %s7 = sld [smem:[#allocation0]]
  $region34: #{ggru_forward.1} parent=0
    _
  %s9 = ssub.s32 1, %s7
  %s10 = scalar_select 0, %s9, %s7
  // Predicated region
  $region2: #{ggru_forward.1} parent=0 // pred_check
    _
  $region3: #{ggru_forward.1} parent=0 // pred_check_branch
    %12 = sbr.rel (0) target = $region5
  $region4: #{ggru_forward.1} parent=0 // pred_region
    _
  $region5: #{ggru_forward.1} parent=0 // pred_fallthru
    _
  // Predicated region
  $region6: #{ggru_forward.1} parent=0 // pred_check
    _
  $region7: #{ggru_forward.1} parent=0 // pred_check_branch
    %14 = sbr.rel (0) target = $region9
  $region8: #{ggru_forward.1} parent=0 // pred_region
    _
  $region9: #{ggru_forward.1} parent=0 // pred_fallthru
    _
  // Predicated region
  $region10: #{ggru_forward.1} parent=0 // pred_check
    _
  $region11: #{ggru_forward.1} parent=0 // pred_check_branch
    %16 = sbr.rel (0) target = $region13
  $region12: #{ggru_forward.1} parent=0 // pred_region
    _
  $region13: #{ggru_forward.1} parent=0 // pred_fallthru
    _
  // Predicated region
  $region14: #{ggru_forward.1} parent=0 // pred_check
    _
  $region15: #{ggru_forward.1} parent=0 // pred_check_branch
    %18 = sbr.rel (0) target = $region17
  $region16: #{ggru_forward.1} parent=0 // pred_region
    _
  $region17: #{ggru_forward.1} parent=0 // pred_fallthru
    _
  // Predicated region
  $region18: #{ggru_forward.1} parent=0 // pred_check
    _
  $region19: #{ggru_forward.1} parent=0 // pred_check_branch
    %20 = sbr.rel (0) target = $region21
  $region20: #{ggru_forward.1} parent=0 // pred_region
    _
  $region21: #{ggru_forward.1} parent=0 // pred_fallthru
    _
  // Predicated region
  $region22: #{ggru_forward.1} parent=0 // pred_check
    _
  $region23: #{ggru_forward.1} parent=0 // pred_check_branch
    %22 = sbr.rel (0) target = $region25
  $region24: #{ggru_forward.1} parent=0 // pred_region
    _
  $region25: #{ggru_forward.1} parent=0 // pred_fallthru
    _
  %v24 = vld [vmem:[%s0] sm:$0xf]
  %v25 = vld [vmem:[%s0 + $0x4] sm:$0xf]
  %v26 = vld [vmem:[%s0 + $0x8] sm:$0xf]
  %v27 = vld [vmem:[%s0 + $0xc] sm:$0xf]
  %v28 = vld [vmem:[%s0 + $0x10] sm:$0xf]
  %v29 = vld [vmem:[%s0 + $0x14] sm:$0xf]
  %v30 = vld [vmem:[%s0 + $0x18] sm:$0xf]
  %v31 = vld [vmem:[%s0 + $0x1c] sm:$0xf]
  %v32 = vld [vmem:[%s1] sm:$0xf]
  %v33 = vld [vmem:[%s1 + $0x4] sm:$0xf]
  %v34 = vld [vmem:[%s1 + $0x8] sm:$0xf]
  %v35 = vld [vmem:[%s1 + $0xc] sm:$0xf]
  %v36 = vld [vmem:[%s1 + $0x10] sm:$0xf]
  %v37 = vld [vmem:[%s1 + $0x14] sm:$0xf]
  %v38 = vld [vmem:[%s1 + $0x18] sm:$0xf]
  %v39 = vld [vmem:[%s1 + $0x1c] sm:$0xf]
  %v48 = vunpack.c.l.b16 %v24
  %v49 = vunpack.c.l.b16 %v25
  %v50 = vunpack.c.l.b16 %v26
  %v51 = vunpack.c.l.b16 %v27
  %v52 = vunpack.c.l.b16 %v28
  %v53 = vunpack.c.l.b16 %v29
  %v54 = vunpack.c.l.b16 %v30
  %v55 = vunpack.c.l.b16 %v31
  %v56 = vpack.c.b16 %v49, %v48
  %v57 = vpack.c.b16 %v51, %v50
  %v58 = vpack.c.b16 %v53, %v52
  %v59 = vpack.c.b16 %v55, %v54
  %v68 = vunpack.c.l.b16 %v32
  %v69 = vunpack.c.l.b16 %v33
  %v70 = vunpack.c.l.b16 %v34
  %v71 = vunpack.c.l.b16 %v35
  %v72 = vunpack.c.l.b16 %v36
  %v73 = vunpack.c.l.b16 %v37
  %v74 = vunpack.c.l.b16 %v38
  %v75 = vunpack.c.l.b16 %v39
  %v76 = vpack.c.b16 %v69, %v68
  %v77 = vpack.c.b16 %v71, %v70
  %v78 = vpack.c.b16 %v73, %v72
  %v79 = vpack.c.b16 %v75, %v74
  %vm84 = vcmask 523264
  %v86 = vsel %vm84, %v56, 0
  %v89 = vsel %vm84, %v57, 0
  %v92 = vsel %vm84, %v58, 0
  %v95 = vsel %vm84, %v59, 0
  %97 = vmatpush.bf16.msra.mxu0 0
  %98 = vmatpush.bf16.msra.mxu0 0
  %99 = vmatpush.bf16.msra.mxu0 0
  %100 = vmatpush.bf16.msra.mxu0 0
  %101 = vmatpush.bf16.msra.mxu0 %v79
  %102 = vmatpush.bf16.msra.mxu0 %v78
  %103 = vmatpush.bf16.msra.mxu0 %v77
  %104 = vmatpush.bf16.msra.mxu0 %v76
  %105 = vmatmul.bf16.gmra.mxu0 %v86
  %v106 = vpop.f32.mrf.mxu0
  %v107 = vadd.f32 0.0, %v106
  %v108 = vpop.f32.mrf.mxu0
  %v109 = vadd.f32 0.0, %v108
  %110 = vmatmul.bf16.gmra.mxu0 %v89
  %v111 = vpop.f32.mrf.mxu0
  %v112 = vadd.f32 0.0, %v111
  %v113 = vpop.f32.mrf.mxu0
  %v114 = vadd.f32 0.0, %v113
  %115 = vmatmul.bf16.gmra.mxu0 %v92
  %v116 = vpop.f32.mrf.mxu0
  %v117 = vadd.f32 0.0, %v116
  %v118 = vpop.f32.mrf.mxu0
  %v119 = vadd.f32 0.0, %v118
  %120 = vmatmul.bf16.gmra.mxu0 %v95
  %v121 = vpop.f32.mrf.mxu0
  %v122 = vadd.f32 0.0, %v121
  %v123 = vpop.f32.mrf.mxu0
  %v124 = vadd.f32 0.0, %v123
  %125 = vdwg.mxu0
  %s126 = scalar_lea.vmem %s1, 32
  %v127 = vld [vmem:[%s126] sm:$0xf]
  %v128 = vld [vmem:[%s126 + $0x4] sm:$0xf]
  %v129 = vld [vmem:[%s126 + $0x8] sm:$0xf]
  %v130 = vld [vmem:[%s126 + $0xc] sm:$0xf]
  %v131 = vld [vmem:[%s126 + $0x10] sm:$0xf]
  %v132 = vld [vmem:[%s126 + $0x14] sm:$0xf]
  %v133 = vld [vmem:[%s126 + $0x18] sm:$0xf]
  %v134 = vld [vmem:[%s126 + $0x1c] sm:$0xf]
  %v143 = vunpack.c.l.b16 %v127
  %v144 = vunpack.c.l.b16 %v128
  %v145 = vunpack.c.l.b16 %v129
  %v146 = vunpack.c.l.b16 %v130
  %v147 = vunpack.c.l.b16 %v131
  %v148 = vunpack.c.l.b16 %v132
  %v149 = vunpack.c.l.b16 %v133
  %v150 = vunpack.c.l.b16 %v134
  %v151 = vpack.c.b16 %v144, %v143
  %v152 = vpack.c.b16 %v146, %v145
  %v153 = vpack.c.b16 %v148, %v147
  %v154 = vpack.c.b16 %v150, %v149
  %159 = vmatpush.bf16.msra.mxu0 0
  %160 = vmatpush.bf16.msra.mxu0 0
  %161 = vmatpush.bf16.msra.mxu0 0
  %162 = vmatpush.bf16.msra.mxu0 0
  %163 = vmatpush.bf16.msra.mxu0 %v154
  %164 = vmatpush.bf16.msra.mxu0 %v153
  %165 = vmatpush.bf16.msra.mxu0 %v152
  %166 = vmatpush.bf16.msra.mxu0 %v151
  %167 = vmatmul.bf16.gmra.mxu0 %v86
  %v168 = vpop.f32.mrf.mxu0
  %v169 = vadd.f32 0.0, %v168
  %v170 = vpop.f32.mrf.mxu0
  %v171 = vadd.f32 0.0, %v170
  %172 = vmatmul.bf16.gmra.mxu0 %v89
  %v173 = vpop.f32.mrf.mxu0
  %v174 = vadd.f32 0.0, %v173
  %v175 = vpop.f32.mrf.mxu0
  %v176 = vadd.f32 0.0, %v175
  %177 = vmatmul.bf16.gmra.mxu0 %v92
  %v178 = vpop.f32.mrf.mxu0
  %v179 = vadd.f32 0.0, %v178
  %v180 = vpop.f32.mrf.mxu0
  %v181 = vadd.f32 0.0, %v180
  %182 = vmatmul.bf16.gmra.mxu0 %v95
  %v183 = vpop.f32.mrf.mxu0
  %v184 = vadd.f32 0.0, %v183
  %v185 = vpop.f32.mrf.mxu0
  %v186 = vadd.f32 0.0, %v185
  %187 = vdwg.mxu0
  %s188 = scalar_lea.vmem %s1, 64
  %v189 = vld [vmem:[%s188] sm:$0xf]
  %v190 = vld [vmem:[%s188 + $0x4] sm:$0xf]
  %v191 = vld [vmem:[%s188 + $0x8] sm:$0xf]
  %v192 = vld [vmem:[%s188 + $0xc] sm:$0xf]
  %v193 = vld [vmem:[%s188 + $0x10] sm:$0xf]
  %v194 = vld [vmem:[%s188 + $0x14] sm:$0xf]
  %v195 = vld [vmem:[%s188 + $0x18] sm:$0xf]
  %v196 = vld [vmem:[%s188 + $0x1c] sm:$0xf]
  %v205 = vunpack.c.l.b16 %v189
  %v206 = vunpack.c.l.b16 %v190
  %v207 = vunpack.c.l.b16 %v191
  %v208 = vunpack.c.l.b16 %v192
  %v209 = vunpack.c.l.b16 %v193
  %v210 = vunpack.c.l.b16 %v194
  %v211 = vunpack.c.l.b16 %v195
  %v212 = vunpack.c.l.b16 %v196
  %v213 = vpack.c.b16 %v206, %v205
  %v214 = vpack.c.b16 %v208, %v207
  %v215 = vpack.c.b16 %v210, %v209
  %v216 = vpack.c.b16 %v212, %v211
  %221 = vmatpush.bf16.msra.mxu0 0
  %222 = vmatpush.bf16.msra.mxu0 0
  %223 = vmatpush.bf16.msra.mxu0 0
  %224 = vmatpush.bf16.msra.mxu0 0
  %225 = vmatpush.bf16.msra.mxu0 %v216
  %226 = vmatpush.bf16.msra.mxu0 %v215
  %227 = vmatpush.bf16.msra.mxu0 %v214
  %228 = vmatpush.bf16.msra.mxu0 %v213
  %229 = vmatmul.bf16.gmra.mxu0 %v86
  %v230 = vpop.f32.mrf.mxu0
  %v231 = vadd.f32 0.0, %v230
  %v232 = vpop.f32.mrf.mxu0
  %v233 = vadd.f32 0.0, %v232
  %234 = vmatmul.bf16.gmra.mxu0 %v89
  %v235 = vpop.f32.mrf.mxu0
  %v236 = vadd.f32 0.0, %v235
  %v237 = vpop.f32.mrf.mxu0
  %v238 = vadd.f32 0.0, %v237
  %239 = vmatmul.bf16.gmra.mxu0 %v92
  %v240 = vpop.f32.mrf.mxu0
  %v241 = vadd.f32 0.0, %v240
  %v242 = vpop.f32.mrf.mxu0
  %v243 = vadd.f32 0.0, %v242
  %244 = vmatmul.bf16.gmra.mxu0 %v95
  %v245 = vpop.f32.mrf.mxu0
  %v246 = vadd.f32 0.0, %v245
  %v247 = vpop.f32.mrf.mxu0
  %v248 = vadd.f32 0.0, %v247
  %249 = vdwg.mxu0
  %s250 = scalar_lea.vmem %s1, 96
  %v251 = vld [vmem:[%s250] sm:$0xf]
  %v252 = vld [vmem:[%s250 + $0x4] sm:$0xf]
  %v253 = vld [vmem:[%s250 + $0x8] sm:$0xf]
  %v254 = vld [vmem:[%s250 + $0xc] sm:$0xf]
  %v255 = vld [vmem:[%s250 + $0x10] sm:$0xf]
  %v256 = vld [vmem:[%s250 + $0x14] sm:$0xf]
  %v257 = vld [vmem:[%s250 + $0x18] sm:$0xf]
  %v258 = vld [vmem:[%s250 + $0x1c] sm:$0xf]
  %v267 = vunpack.c.l.b16 %v251
  %v268 = vunpack.c.l.b16 %v252
  %v269 = vunpack.c.l.b16 %v253
  %v270 = vunpack.c.l.b16 %v254
  %v271 = vunpack.c.l.b16 %v255
  %v272 = vunpack.c.l.b16 %v256
  %v273 = vunpack.c.l.b16 %v257
  %v274 = vunpack.c.l.b16 %v258
  %v275 = vpack.c.b16 %v268, %v267
  %v276 = vpack.c.b16 %v270, %v269
  %v277 = vpack.c.b16 %v272, %v271
  %v278 = vpack.c.b16 %v274, %v273
  %283 = vmatpush.bf16.msra.mxu0 0
  %284 = vmatpush.bf16.msra.mxu0 0
  %285 = vmatpush.bf16.msra.mxu0 0
  %286 = vmatpush.bf16.msra.mxu0 0
  %287 = vmatpush.bf16.msra.mxu0 %v278
  %288 = vmatpush.bf16.msra.mxu0 %v277
  %289 = vmatpush.bf16.msra.mxu0 %v276
  %290 = vmatpush.bf16.msra.mxu0 %v275
  %291 = vmatmul.bf16.gmra.mxu0 %v86
  %v292 = vpop.f32.mrf.mxu0
  %v293 = vadd.f32 0.0, %v292
  %v294 = vpop.f32.mrf.mxu0
  %v295 = vadd.f32 0.0, %v294
  %296 = vmatmul.bf16.gmra.mxu0 %v89
  %v297 = vpop.f32.mrf.mxu0
  %v298 = vadd.f32 0.0, %v297
  %v299 = vpop.f32.mrf.mxu0
  %v300 = vadd.f32 0.0, %v299
  %301 = vmatmul.bf16.gmra.mxu0 %v92
  %v302 = vpop.f32.mrf.mxu0
  %v303 = vadd.f32 0.0, %v302
  %v304 = vpop.f32.mrf.mxu0
  %v305 = vadd.f32 0.0, %v304
  %306 = vmatmul.bf16.gmra.mxu0 %v95
  %v307 = vpop.f32.mrf.mxu0
  %v308 = vadd.f32 0.0, %v307
  %v309 = vpop.f32.mrf.mxu0
  %v310 = vadd.f32 0.0, %v309
  %311 = vdwg.mxu0
  %v312 = vpack.c.bf16 %v109, %v107
  %v313 = vpack.c.bf16 %v114, %v112
  %v314 = vpack.c.bf16 %v119, %v117
  %v315 = vpack.c.bf16 %v124, %v122
  %v316 = vpack.c.bf16 %v171, %v169
  %v317 = vpack.c.bf16 %v176, %v174
  %v318 = vpack.c.bf16 %v181, %v179
  %v319 = vpack.c.bf16 %v186, %v184
  %v320 = vpack.c.bf16 %v233, %v231
  %v321 = vpack.c.bf16 %v238, %v236
  %v322 = vpack.c.bf16 %v243, %v241
  %v323 = vpack.c.bf16 %v248, %v246
  %v324 = vpack.c.bf16 %v295, %v293
  %v325 = vpack.c.bf16 %v300, %v298
  %v326 = vpack.c.bf16 %v305, %v303
  %v327 = vpack.c.bf16 %v310, %v308
  %v328 = vld [vmem:[%s2] sm:$0xff]
  %v329 = vld [vmem:[%s2 + $0x8] sm:$0xf]
  %v330 = vld [vmem:[%s2 + $0xc] sm:$0xff]
  %v331 = vld [vmem:[%s2 + $0x14] sm:$0xf]
  %v332 = vld [vmem:[%s2 + $0x18] sm:$0xff]
  %v333 = vld [vmem:[%s2 + $0x20] sm:$0xf]
  %v334 = vld [vmem:[%s2 + $0x24] sm:$0xff]
  %v335 = vld [vmem:[%s2 + $0x2c] sm:$0xf]
  %v336 = vld [vmem:[%s2 + $0x30] sm:$0xff]
  %v337 = vld [vmem:[%s2 + $0x38] sm:$0xf]
  %v338 = vld [vmem:[%s2 + $0x3c] sm:$0xff]
  %v339 = vld [vmem:[%s2 + $0x44] sm:$0xf]
  %v340 = vld [vmem:[%s2 + $0x48] sm:$0xff]
  %v341 = vld [vmem:[%s2 + $0x50] sm:$0xf]
  %v342 = vld [vmem:[%s2 + $0x54] sm:$0xff]
  %v343 = vld [vmem:[%s2 + $0x5c] sm:$0xf]
  %v344 = vld [vmem:[%s2 + $0x60] sm:$0xff]
  %v345 = vld [vmem:[%s2 + $0x68] sm:$0xf]
  %v346 = vld [vmem:[%s2 + $0x6c] sm:$0xff]
  %v347 = vld [vmem:[%s2 + $0x74] sm:$0xf]
  %v348 = vld [vmem:[%s2 + $0x78] sm:$0xff]
  %v349 = vld [vmem:[%s2 + $0x80] sm:$0xf]
  %v350 = vld [vmem:[%s2 + $0x84] sm:$0xff]
  %v351 = vld [vmem:[%s2 + $0x8c] sm:$0xf]
  %v352 = vld [vmem:[%s2 + $0x90] sm:$0xff]
  %v353 = vld [vmem:[%s2 + $0x98] sm:$0xf]
  %v354 = vld [vmem:[%s2 + $0x9c] sm:$0xff]
  %v355 = vld [vmem:[%s2 + $0xa4] sm:$0xf]
  %v356 = vld [vmem:[%s2 + $0xa8] sm:$0xff]
  %v357 = vld [vmem:[%s2 + $0xb0] sm:$0xf]
  %v358 = vld [vmem:[%s2 + $0xb4] sm:$0xff]
  %v359 = vld [vmem:[%s2 + $0xbc] sm:$0xf]
  %v360 = vld [vmem:[%s3] sm:$0x7]
  %v362 = vperm.slane %v360, 0
  %v363 = vperm.slane %v360, 1
  %v364 = vperm.slane %v360, 2
  %v400 = vunpack.c.l.b16 %v328
  %v401 = vunpack.c.h.b16 %v328
  %v402 = vunpack.c.l.b16 %v329
  %v403 = vunpack.c.l.b16 %v330
  %v404 = vunpack.c.h.b16 %v330
  %v405 = vunpack.c.l.b16 %v331
  %v406 = vunpack.c.l.b16 %v332
  %v407 = vunpack.c.h.b16 %v332
  %v408 = vunpack.c.l.b16 %v333
  %v409 = vunpack.c.l.b16 %v334
  %v410 = vunpack.c.h.b16 %v334
  %v411 = vunpack.c.l.b16 %v335
  %v412 = vunpack.c.l.b16 %v336
  %v413 = vunpack.c.h.b16 %v336
  %v414 = vunpack.c.l.b16 %v337
  %v415 = vunpack.c.l.b16 %v338
  %v416 = vunpack.c.h.b16 %v338
  %v417 = vunpack.c.l.b16 %v339
  %v418 = vunpack.c.l.b16 %v340
  %v419 = vunpack.c.h.b16 %v340
  %v420 = vunpack.c.l.b16 %v341
  %v421 = vunpack.c.l.b16 %v342
  %v422 = vunpack.c.h.b16 %v342
  %v423 = vunpack.c.l.b16 %v343
  %v424 = vunpack.c.l.b16 %v344
  %v425 = vunpack.c.h.b16 %v344
  %v426 = vunpack.c.l.b16 %v345
  %v427 = vunpack.c.l.b16 %v346
  %v428 = vunpack.c.h.b16 %v346
  %v429 = vunpack.c.l.b16 %v347
  %v430 = vunpack.c.l.b16 %v348
  %v431 = vunpack.c.h.b16 %v348
  %v432 = vunpack.c.l.b16 %v349
  %v433 = vunpack.c.l.b16 %v350
  %v434 = vunpack.c.h.b16 %v350
  %v435 = vunpack.c.l.b16 %v351
  %v436 = vunpack.c.l.b16 %v352
  %v437 = vunpack.c.h.b16 %v352
  %v438 = vunpack.c.l.b16 %v353
  %v439 = vunpack.c.l.b16 %v354
  %v440 = vunpack.c.h.b16 %v354
  %v441 = vunpack.c.l.b16 %v355
  %v442 = vunpack.c.l.b16 %v356
  %v443 = vunpack.c.h.b16 %v356
  %v444 = vunpack.c.l.b16 %v357
  %v445 = vunpack.c.l.b16 %v358
  %v446 = vunpack.c.h.b16 %v358
  %v447 = vunpack.c.l.b16 %v359
  %v448 = vpack.c.b16 %v403, %v400
  %v449 = vpack.c.b16 %v404, %v401
  %v450 = vpack.c.b16 %v405, %v402
  %v451 = vpack.c.b16 %v409, %v406
  %v452 = vpack.c.b16 %v410, %v407
  %v453 = vpack.c.b16 %v411, %v408
  %v454 = vpack.c.b16 %v415, %v412
  %v455 = vpack.c.b16 %v416, %v413
  %v456 = vpack.c.b16 %v417, %v414
  %v457 = vpack.c.b16 %v421, %v418
  %v458 = vpack.c.b16 %v422, %v419
  %v459 = vpack.c.b16 %v423, %v420
  %v460 = vpack.c.b16 %v427, %v424
  %v461 = vpack.c.b16 %v428, %v425
  %v462 = vpack.c.b16 %v429, %v426
  %v463 = vpack.c.b16 %v433, %v430
  %v464 = vpack.c.b16 %v434, %v431
  %v465 = vpack.c.b16 %v435, %v432
  %v466 = vpack.c.b16 %v439, %v436
  %v467 = vpack.c.b16 %v440, %v437
  %v468 = vpack.c.b16 %v441, %v438
  %v469 = vpack.c.b16 %v445, %v442
  %v470 = vpack.c.b16 %v446, %v443
  %v471 = vpack.c.b16 %v447, %v444
  %496 = vmatpush.bf16.msra.mxu0 %v469
  %497 = vmatpush.bf16.msra.mxu0 %v466
  %498 = vmatpush.bf16.msra.mxu0 %v463
  %499 = vmatpush.bf16.msra.mxu0 %v460
  %500 = vmatpush.bf16.msra.mxu0 %v457
  %501 = vmatpush.bf16.msra.mxu0 %v454
  %502 = vmatpush.bf16.msra.mxu0 %v451
  %503 = vmatpush.bf16.msra.mxu0 %v448
  %504 = vmatmul.bf16.gmra.mxu0 %v312
  %v505 = vpop.f32.mrf.mxu0
  %v506 = vadd.f32 %v362, %v505
  %v507 = vpop.f32.mrf.mxu0
  %v508 = vadd.f32 %v362, %v507
  %509 = vmatmul.bf16.gmra.mxu0 %v313
  %v510 = vpop.f32.mrf.mxu0
  %v511 = vadd.f32 %v362, %v510
  %v512 = vpop.f32.mrf.mxu0
  %v513 = vadd.f32 %v362, %v512
  %514 = vmatmul.bf16.gmra.mxu0 %v314
  %v515 = vpop.f32.mrf.mxu0
  %v516 = vadd.f32 %v362, %v515
  %v517 = vpop.f32.mrf.mxu0
  %v518 = vadd.f32 %v362, %v517
  %519 = vmatmul.bf16.gmra.mxu0 %v315
  %v520 = vpop.f32.mrf.mxu0
  %v521 = vadd.f32 %v362, %v520
  %v522 = vpop.f32.mrf.mxu0
  %v523 = vadd.f32 %v362, %v522
  %524 = vmatmul.bf16.gmra.mxu0 %v316
  %v525 = vpop.f32.mrf.mxu0
  %v526 = vadd.f32 %v362, %v525
  %v527 = vpop.f32.mrf.mxu0
  %v528 = vadd.f32 %v362, %v527
  %529 = vmatmul.bf16.gmra.mxu0 %v317
  %v530 = vpop.f32.mrf.mxu0
  %v531 = vadd.f32 %v362, %v530
  %v532 = vpop.f32.mrf.mxu0
  %v533 = vadd.f32 %v362, %v532
  %534 = vmatmul.bf16.gmra.mxu0 %v318
  %v535 = vpop.f32.mrf.mxu0
  %v536 = vadd.f32 %v362, %v535
  %v537 = vpop.f32.mrf.mxu0
  %v538 = vadd.f32 %v362, %v537
  %539 = vmatmul.bf16.gmra.mxu0 %v319
  %v540 = vpop.f32.mrf.mxu0
  %v541 = vadd.f32 %v362, %v540
  %v542 = vpop.f32.mrf.mxu0
  %v543 = vadd.f32 %v362, %v542
  %544 = vmatmul.bf16.gmra.mxu0 %v320
  %v545 = vpop.f32.mrf.mxu0
  %v546 = vadd.f32 %v362, %v545
  %v547 = vpop.f32.mrf.mxu0
  %v548 = vadd.f32 %v362, %v547
  %549 = vmatmul.bf16.gmra.mxu0 %v321
  %v550 = vpop.f32.mrf.mxu0
  %v551 = vadd.f32 %v362, %v550
  %v552 = vpop.f32.mrf.mxu0
  %v553 = vadd.f32 %v362, %v552
  %554 = vmatmul.bf16.gmra.mxu0 %v322
  %v555 = vpop.f32.mrf.mxu0
  %v556 = vadd.f32 %v362, %v555
  %v557 = vpop.f32.mrf.mxu0
  %v558 = vadd.f32 %v362, %v557
  %559 = vmatmul.bf16.gmra.mxu0 %v323
  %v560 = vpop.f32.mrf.mxu0
  %v561 = vadd.f32 %v362, %v560
  %v562 = vpop.f32.mrf.mxu0
  %v563 = vadd.f32 %v362, %v562
  %564 = vmatmul.bf16.gmra.mxu0 %v324
  %v565 = vpop.f32.mrf.mxu0
  %v566 = vadd.f32 %v362, %v565
  %v567 = vpop.f32.mrf.mxu0
  %v568 = vadd.f32 %v362, %v567
  %569 = vmatmul.bf16.gmra.mxu0 %v325
  %v570 = vpop.f32.mrf.mxu0
  %v571 = vadd.f32 %v362, %v570
  %v572 = vpop.f32.mrf.mxu0
  %v573 = vadd.f32 %v362, %v572
  %574 = vmatmul.bf16.gmra.mxu0 %v326
  %v575 = vpop.f32.mrf.mxu0
  %v576 = vadd.f32 %v362, %v575
  %v577 = vpop.f32.mrf.mxu0
  %v578 = vadd.f32 %v362, %v577
  %579 = vmatmul.bf16.gmra.mxu0 %v327
  %v580 = vpop.f32.mrf.mxu0
  %v581 = vadd.f32 %v362, %v580
  %v582 = vpop.f32.mrf.mxu0
  %v583 = vadd.f32 %v362, %v582
  %584 = vdwg.mxu0
  %585 = vmatpush.bf16.msra.mxu0 %v470
  %586 = vmatpush.bf16.msra.mxu0 %v467
  %587 = vmatpush.bf16.msra.mxu0 %v464
  %588 = vmatpush.bf16.msra.mxu0 %v461
  %589 = vmatpush.bf16.msra.mxu0 %v458
  %590 = vmatpush.bf16.msra.mxu0 %v455
  %591 = vmatpush.bf16.msra.mxu0 %v452
  %592 = vmatpush.bf16.msra.mxu0 %v449
  %593 = vmatmul.bf16.gmra.mxu0 %v312
  %v594 = vpop.f32.mrf.mxu0
  %v595 = vadd.f32 %v363, %v594
  %v596 = vpop.f32.mrf.mxu0
  %v597 = vadd.f32 %v363, %v596
  %598 = vmatmul.bf16.gmra.mxu0 %v313
  %v599 = vpop.f32.mrf.mxu0
  %v600 = vadd.f32 %v363, %v599
  %v601 = vpop.f32.mrf.mxu0
  %v602 = vadd.f32 %v363, %v601
  %603 = vmatmul.bf16.gmra.mxu0 %v314
  %v604 = vpop.f32.mrf.mxu0
  %v605 = vadd.f32 %v363, %v604
  %v606 = vpop.f32.mrf.mxu0
  %v607 = vadd.f32 %v363, %v606
  %608 = vmatmul.bf16.gmra.mxu0 %v315
  %v609 = vpop.f32.mrf.mxu0
  %v610 = vadd.f32 %v363, %v609
  %v611 = vpop.f32.mrf.mxu0
  %v612 = vadd.f32 %v363, %v611
  %613 = vmatmul.bf16.gmra.mxu0 %v316
  %v614 = vpop.f32.mrf.mxu0
  %v615 = vadd.f32 %v363, %v614
  %v616 = vpop.f32.mrf.mxu0
  %v617 = vadd.f32 %v363, %v616
  %618 = vmatmul.bf16.gmra.mxu0 %v317
  %v619 = vpop.f32.mrf.mxu0
  %v620 = vadd.f32 %v363, %v619
  %v621 = vpop.f32.mrf.mxu0
  %v622 = vadd.f32 %v363, %v621
  %623 = vmatmul.bf16.gmra.mxu0 %v318
  %v624 = vpop.f32.mrf.mxu0
  %v625 = vadd.f32 %v363, %v624
  %v626 = vpop.f32.mrf.mxu0
  %v627 = vadd.f32 %v363, %v626
  %628 = vmatmul.bf16.gmra.mxu0 %v319
  %v629 = vpop.f32.mrf.mxu0
  %v630 = vadd.f32 %v363, %v629
  %v631 = vpop.f32.mrf.mxu0
  %v632 = vadd.f32 %v363, %v631
  %633 = vmatmul.bf16.gmra.mxu0 %v320
  %v634 = vpop.f32.mrf.mxu0
  %v635 = vadd.f32 %v363, %v634
  %v636 = vpop.f32.mrf.mxu0
  %v637 = vadd.f32 %v363, %v636
  %638 = vmatmul.bf16.gmra.mxu0 %v321
  %v639 = vpop.f32.mrf.mxu0
  %v640 = vadd.f32 %v363, %v639
  %v641 = vpop.f32.mrf.mxu0
  %v642 = vadd.f32 %v363, %v641
  %643 = vmatmul.bf16.gmra.mxu0 %v322
  %v644 = vpop.f32.mrf.mxu0
  %v645 = vadd.f32 %v363, %v644
  %v646 = vpop.f32.mrf.mxu0
  %v647 = vadd.f32 %v363, %v646
  %648 = vmatmul.bf16.gmra.mxu0 %v323
  %v649 = vpop.f32.mrf.mxu0
  %v650 = vadd.f32 %v363, %v649
  %v651 = vpop.f32.mrf.mxu0
  %v652 = vadd.f32 %v363, %v651
  %653 = vmatmul.bf16.gmra.mxu0 %v324
  %v654 = vpop.f32.mrf.mxu0
  %v655 = vadd.f32 %v363, %v654
  %v656 = vpop.f32.mrf.mxu0
  %v657 = vadd.f32 %v363, %v656
  %658 = vmatmul.bf16.gmra.mxu0 %v325
  %v659 = vpop.f32.mrf.mxu0
  %v660 = vadd.f32 %v363, %v659
  %v661 = vpop.f32.mrf.mxu0
  %v662 = vadd.f32 %v363, %v661
  %663 = vmatmul.bf16.gmra.mxu0 %v326
  %v664 = vpop.f32.mrf.mxu0
  %v665 = vadd.f32 %v363, %v664
  %v666 = vpop.f32.mrf.mxu0
  %v667 = vadd.f32 %v363, %v666
  %668 = vmatmul.bf16.gmra.mxu0 %v327
  %v669 = vpop.f32.mrf.mxu0
  %v670 = vadd.f32 %v363, %v669
  %v671 = vpop.f32.mrf.mxu0
  %v672 = vadd.f32 %v363, %v671
  %673 = vdwg.mxu0
  %674 = vmatpush.bf16.msra.mxu0 %v471
  %675 = vmatpush.bf16.msra.mxu0 %v468
  %676 = vmatpush.bf16.msra.mxu0 %v465
  %677 = vmatpush.bf16.msra.mxu0 %v462
  %678 = vmatpush.bf16.msra.mxu0 %v459
  %679 = vmatpush.bf16.msra.mxu0 %v456
  %680 = vmatpush.bf16.msra.mxu0 %v453
  %681 = vmatpush.bf16.msra.mxu0 %v450
  %682 = vmatmul.bf16.gmra.mxu0 %v312
  %v683 = vpop.f32.mrf.mxu0
  %v684 = vadd.f32 %v364, %v683
  %v685 = vpop.f32.mrf.mxu0
  %v686 = vadd.f32 %v364, %v685
  %687 = vmatmul.bf16.gmra.mxu0 %v313
  %v688 = vpop.f32.mrf.mxu0
  %v689 = vadd.f32 %v364, %v688
  %v690 = vpop.f32.mrf.mxu0
  %v691 = vadd.f32 %v364, %v690
  %692 = vmatmul.bf16.gmra.mxu0 %v314
  %v693 = vpop.f32.mrf.mxu0
  %v694 = vadd.f32 %v364, %v693
  %v695 = vpop.f32.mrf.mxu0
  %v696 = vadd.f32 %v364, %v695
  %697 = vmatmul.bf16.gmra.mxu0 %v315
  %v698 = vpop.f32.mrf.mxu0
  %v699 = vadd.f32 %v364, %v698
  %v700 = vpop.f32.mrf.mxu0
  %v701 = vadd.f32 %v364, %v700
  %702 = vmatmul.bf16.gmra.mxu0 %v316
  %v703 = vpop.f32.mrf.mxu0
  %v704 = vadd.f32 %v364, %v703
  %v705 = vpop.f32.mrf.mxu0
  %v706 = vadd.f32 %v364, %v705
  %707 = vmatmul.bf16.gmra.mxu0 %v317
  %v708 = vpop.f32.mrf.mxu0
  %v709 = vadd.f32 %v364, %v708
  %v710 = vpop.f32.mrf.mxu0
  %v711 = vadd.f32 %v364, %v710
  %712 = vmatmul.bf16.gmra.mxu0 %v318
  %v713 = vpop.f32.mrf.mxu0
  %v714 = vadd.f32 %v364, %v713
  %v715 = vpop.f32.mrf.mxu0
  %v716 = vadd.f32 %v364, %v715
  %717 = vmatmul.bf16.gmra.mxu0 %v319
  %v718 = vpop.f32.mrf.mxu0
  %v719 = vadd.f32 %v364, %v718
  %v720 = vpop.f32.mrf.mxu0
  %v721 = vadd.f32 %v364, %v720
  %722 = vmatmul.bf16.gmra.mxu0 %v320
  %v723 = vpop.f32.mrf.mxu0
  %v724 = vadd.f32 %v364, %v723
  %v725 = vpop.f32.mrf.mxu0
  %v726 = vadd.f32 %v364, %v725
  %727 = vmatmul.bf16.gmra.mxu0 %v321
  %v728 = vpop.f32.mrf.mxu0
  %v729 = vadd.f32 %v364, %v728
  %v730 = vpop.f32.mrf.mxu0
  %v731 = vadd.f32 %v364, %v730
  %732 = vmatmul.bf16.gmra.mxu0 %v322
  %v733 = vpop.f32.mrf.mxu0
  %v734 = vadd.f32 %v364, %v733
  %v735 = vpop.f32.mrf.mxu0
  %v736 = vadd.f32 %v364, %v735
  %737 = vmatmul.bf16.gmra.mxu0 %v323
  %v738 = vpop.f32.mrf.mxu0
  %v739 = vadd.f32 %v364, %v738
  %v740 = vpop.f32.mrf.mxu0
  %v741 = vadd.f32 %v364, %v740
  %742 = vmatmul.bf16.gmra.mxu0 %v324
  %v743 = vpop.f32.mrf.mxu0
  %v744 = vadd.f32 %v364, %v743
  %v745 = vpop.f32.mrf.mxu0
  %v746 = vadd.f32 %v364, %v745
  %747 = vmatmul.bf16.gmra.mxu0 %v325
  %v748 = vpop.f32.mrf.mxu0
  %v749 = vadd.f32 %v364, %v748
  %v750 = vpop.f32.mrf.mxu0
  %v751 = vadd.f32 %v364, %v750
  %752 = vmatmul.bf16.gmra.mxu0 %v326
  %v753 = vpop.f32.mrf.mxu0
  %v754 = vadd.f32 %v364, %v753
  %v755 = vpop.f32.mrf.mxu0
  %v756 = vadd.f32 %v364, %v755
  %757 = vmatmul.bf16.gmra.mxu0 %v327
  %v758 = vpop.f32.mrf.mxu0
  %v759 = vadd.f32 %v364, %v758
  %v760 = vpop.f32.mrf.mxu0
  %v761 = vadd.f32 %v364, %v760
  %762 = vdwg.mxu0
  %763 = vst [vmem:[#allocation2] sm:$0xff] %v506
  %764 = vst [vmem:[#allocation2 + $0x8] sm:$0xff] %v595
  %765 = vst [vmem:[#allocation2 + $0x10] sm:$0xff] %v684
  %766 = vst [vmem:[#allocation2 + $0x18] sm:$0xff] %v508
  %767 = vst [vmem:[#allocation2 + $0x20] sm:$0xff] %v597
  %768 = vst [vmem:[#allocation2 + $0x28] sm:$0xff] %v686
  %769 = vst [vmem:[#allocation2 + $0x30] sm:$0xff] %v511
  %770 = vst [vmem:[#allocation2 + $0x38] sm:$0xff] %v600
  %771 = vst [vmem:[#allocation2 + $0x40] sm:$0xff] %v689
  %772 = vst [vmem:[#allocation2 + $0x48] sm:$0xff] %v513
  %773 = vst [vmem:[#allocation2 + $0x50] sm:$0xff] %v602
  %774 = vst [vmem:[#allocation2 + $0x58] sm:$0xff] %v691
  %775 = vst [vmem:[#allocation2 + $0x60] sm:$0xff] %v516
  %776 = vst [vmem:[#allocation2 + $0x68] sm:$0xff] %v605
  %777 = vst [vmem:[#allocation2 + $0x70] sm:$0xff] %v694
  %778 = vst [vmem:[#allocation2 + $0x78] sm:$0xff] %v518
  %779 = vst [vmem:[#allocation2 + $0x80] sm:$0xff] %v607
  %780 = vst [vmem:[#allocation2 + $0x88] sm:$0xff] %v696
  %781 = vst [vmem:[#allocation2 + $0x90] sm:$0xff] %v521
  %782 = vst [vmem:[#allocation2 + $0x98] sm:$0xff] %v610
  %783 = vst [vmem:[#allocation2 + $0xa0] sm:$0xff] %v699
  %784 = vst [vmem:[#allocation2 + $0xa8] sm:$0xff] %v523
  %785 = vst [vmem:[#allocation2 + $0xb0] sm:$0xff] %v612
  %786 = vst [vmem:[#allocation2 + $0xb8] sm:$0xff] %v701
  %787 = vst [vmem:[#allocation2 + $0xc0] sm:$0xff] %v526
  %788 = vst [vmem:[#allocation2 + $0xc8] sm:$0xff] %v615
  %789 = vst [vmem:[#allocation2 + $0xd0] sm:$0xff] %v704
  %790 = vst [vmem:[#allocation2 + $0xd8] sm:$0xff] %v528
  %791 = vst [vmem:[#allocation2 + $0xe0] sm:$0xff] %v617
  %792 = vst [vmem:[#allocation2 + $0xe8] sm:$0xff] %v706
  %793 = vst [vmem:[#allocation2 + $0xf0] sm:$0xff] %v531
  %794 = vst [vmem:[#allocation2 + $0xf8] sm:$0xff] %v620
  %795 = vst [vmem:[#allocation2 + $0x100] sm:$0xff] %v709
  %796 = vst [vmem:[#allocation2 + $0x108] sm:$0xff] %v533
  %797 = vst [vmem:[#allocation2 + $0x110] sm:$0xff] %v622
  %798 = vst [vmem:[#allocation2 + $0x118] sm:$0xff] %v711
  %799 = vst [vmem:[#allocation2 + $0x120] sm:$0xff] %v536
  %800 = vst [vmem:[#allocation2 + $0x128] sm:$0xff] %v625
  %801 = vst [vmem:[#allocation2 + $0x130] sm:$0xff] %v714
  %802 = vst [vmem:[#allocation2 + $0x138] sm:$0xff] %v538
  %803 = vst [vmem:[#allocation2 + $0x140] sm:$0xff] %v627
  %804 = vst [vmem:[#allocation2 + $0x148] sm:$0xff] %v716
  %805 = vst [vmem:[#allocation2 + $0x150] sm:$0xff] %v541
  %806 = vst [vmem:[#allocation2 + $0x158] sm:$0xff] %v630
  %807 = vst [vmem:[#allocation2 + $0x160] sm:$0xff] %v719
  %808 = vst [vmem:[#allocation2 + $0x168] sm:$0xff] %v543
  %809 = vst [vmem:[#allocation2 + $0x170] sm:$0xff] %v632
  %810 = vst [vmem:[#allocation2 + $0x178] sm:$0xff] %v721
  %811 = vst [vmem:[#allocation2 + $0x180] sm:$0xff] %v546
  %812 = vst [vmem:[#allocation2 + $0x188] sm:$0xff] %v635
  %813 = vst [vmem:[#allocation2 + $0x190] sm:$0xff] %v724
  %814 = vst [vmem:[#allocation2 + $0x198] sm:$0xff] %v548
  %815 = vst [vmem:[#allocation2 + $0x1a0] sm:$0xff] %v637
  %816 = vst [vmem:[#allocation2 + $0x1a8] sm:$0xff] %v726
  %817 = vst [vmem:[#allocation2 + $0x1b0] sm:$0xff] %v551
  %818 = vst [vmem:[#allocation2 + $0x1b8] sm:$0xff] %v640
  %819 = vst [vmem:[#allocation2 + $0x1c0] sm:$0xff] %v729
  %820 = vst [vmem:[#allocation2 + $0x1c8] sm:$0xff] %v553
  %821 = vst [vmem:[#allocation2 + $0x1d0] sm:$0xff] %v642
  %822 = vst [vmem:[#allocation2 + $0x1d8] sm:$0xff] %v731
  %823 = vst [vmem:[#allocation2 + $0x1e0] sm:$0xff] %v556
  %824 = vst [vmem:[#allocation2 + $0x1e8] sm:$0xff] %v645
  %825 = vst [vmem:[#allocation2 + $0x1f0] sm:$0xff] %v734
  %826 = vst [vmem:[#allocation2 + $0x1f8] sm:$0xff] %v558
  %827 = vst [vmem:[#allocation2 + $0x200] sm:$0xff] %v647
  %828 = vst [vmem:[#allocation2 + $0x208] sm:$0xff] %v736
  %829 = vst [vmem:[#allocation2 + $0x210] sm:$0xff] %v561
  %830 = vst [vmem:[#allocation2 + $0x218] sm:$0xff] %v650
  %831 = vst [vmem:[#allocation2 + $0x220] sm:$0xff] %v739
  %832 = vst [vmem:[#allocation2 + $0x228] sm:$0xff] %v563
  %833 = vst [vmem:[#allocation2 + $0x230] sm:$0xff] %v652
  %834 = vst [vmem:[#allocation2 + $0x238] sm:$0xff] %v741
  %835 = vst [vmem:[#allocation2 + $0x240] sm:$0xff] %v566
  %836 = vst [vmem:[#allocation2 + $0x248] sm:$0xff] %v655
  %837 = vst [vmem:[#allocation2 + $0x250] sm:$0xff] %v744
  %838 = vst [vmem:[#allocation2 + $0x258] sm:$0xff] %v568
  %839 = vst [vmem:[#allocation2 + $0x260] sm:$0xff] %v657
  %840 = vst [vmem:[#allocation2 + $0x268] sm:$0xff] %v746
  %841 = vst [vmem:[#allocation2 + $0x270] sm:$0xff] %v571
  %842 = vst [vmem:[#allocation2 + $0x278] sm:$0xff] %v660
  %843 = vst [vmem:[#allocation2 + $0x280] sm:$0xff] %v749
  %844 = vst [vmem:[#allocation2 + $0x288] sm:$0xff] %v573
  %845 = vst [vmem:[#allocation2 + $0x290] sm:$0xff] %v662
  %846 = vst [vmem:[#allocation2 + $0x298] sm:$0xff] %v751
  %847 = vst [vmem:[#allocation2 + $0x2a0] sm:$0xff] %v576
  %848 = vst [vmem:[#allocation2 + $0x2a8] sm:$0xff] %v665
  %849 = vst [vmem:[#allocation2 + $0x2b0] sm:$0xff] %v754
  %850 = vst [vmem:[#allocation2 + $0x2b8] sm:$0xff] %v578
  %851 = vst [vmem:[#allocation2 + $0x2c0] sm:$0xff] %v667
  %852 = vst [vmem:[#allocation2 + $0x2c8] sm:$0xff] %v756
  %853 = vst [vmem:[#allocation2 + $0x2d0] sm:$0xff] %v581
  %854 = vst [vmem:[#allocation2 + $0x2d8] sm:$0xff] %v670
  %855 = vst [vmem:[#allocation2 + $0x2e0] sm:$0xff] %v759
  %856 = vst [vmem:[#allocation2 + $0x2e8] sm:$0xff] %v583
  %857 = vst [vmem:[#allocation2 + $0x2f0] sm:$0xff] %v672
  %858 = vst [vmem:[#allocation2 + $0x2f8] sm:$0xff] %v761
  %v859 = vlaneseq
  %v860 = vshrl.u32 %v859, 7
  %v861 = vadd.s32 %v860, 8
  %v862 = vadd.s32 %v860, 16
  %v863 = vadd.s32 %v860, 24
  %v864 = vadd.s32 %v860, 32
  %v865 = vadd.s32 %v860, 40
  %v866 = vadd.s32 %v860, 48
  %v867 = vadd.s32 %v860, 56
  %v868 = vlaneseq
  %v869 = vand.u32 %v868, 127
  %vm870 = vcmp.eq.s32.totalorder %v860, %v869
  %vm871 = vcmp.eq.s32.totalorder %v861, %v869
  %vm872 = vcmp.eq.s32.totalorder %v862, %v869
  %vm873 = vcmp.eq.s32.totalorder %v863, %v869
  %vm874 = vcmp.eq.s32.totalorder %v864, %v869
  %vm875 = vcmp.eq.s32.totalorder %v865, %v869
  %vm876 = vcmp.eq.s32.totalorder %v866, %v869
  %vm877 = vcmp.eq.s32.totalorder %v867, %v869
  %v878 = vld [vmem:[%s4] sm:$0xff]
  %v879 = vld [vmem:[%s4 + $0x8] sm:$0xff]
  %v880 = vld [vmem:[%s4 + $0x10] sm:$0xff]
  %v881 = vld [vmem:[%s4 + $0x18] sm:$0xff]
  %v882 = vld [vmem:[%s4 + $0x20] sm:$0xff]
  %v883 = vld [vmem:[%s4 + $0x28] sm:$0xff]
  %v884 = vld [vmem:[%s4 + $0x30] sm:$0xff]
  %v885 = vld [vmem:[%s4 + $0x38] sm:$0xff]
  %v886 = vunpack.c.l.bf16 %v878
  %v887 = vunpack.c.h.bf16 %v878
  %v888 = vunpack.c.l.bf16 %v879
  %v889 = vunpack.c.h.bf16 %v879
  %v890 = vunpack.c.l.bf16 %v880
  %v891 = vunpack.c.h.bf16 %v880
  %v892 = vunpack.c.l.bf16 %v881
  %v893 = vunpack.c.h.bf16 %v881
  %v894 = vunpack.c.l.bf16 %v882
  %v895 = vunpack.c.h.bf16 %v882
  %v896 = vunpack.c.l.bf16 %v883
  %v897 = vunpack.c.h.bf16 %v883
  %v898 = vunpack.c.l.bf16 %v884
  %v899 = vunpack.c.h.bf16 %v884
  %v900 = vunpack.c.l.bf16 %v885
  %v901 = vunpack.c.h.bf16 %v885
  %v902 = vld [vmem:[#allocation2] sm:$0xff]
  %v903 = vld [vmem:[#allocation2 + $0x18] sm:$0xff]
  %v904 = vld [vmem:[#allocation2 + $0x30] sm:$0xff]
  %v905 = vld [vmem:[#allocation2 + $0x48] sm:$0xff]
  %v906 = vld [vmem:[#allocation2 + $0x60] sm:$0xff]
  %v907 = vld [vmem:[#allocation2 + $0x78] sm:$0xff]
  %v908 = vld [vmem:[#allocation2 + $0x90] sm:$0xff]
  %v909 = vld [vmem:[#allocation2 + $0xa8] sm:$0xff]
  %v910 = vadd.f32 %v902, %v886
  %v911 = vadd.f32 %v903, %v888
  %v912 = vadd.f32 %v904, %v890
  %v913 = vadd.f32 %v905, %v892
  %v914 = vadd.f32 %v906, %v894
  %v915 = vadd.f32 %v907, %v896
  %v916 = vadd.f32 %v908, %v898
  %v917 = vadd.f32 %v909, %v900
  %v918 = vxor.u32 %v910, 2147483648
  %v919 = vxor.u32 %v911, 2147483648
  %v920 = vxor.u32 %v912, 2147483648
  %v921 = vxor.u32 %v913, 2147483648
  %v922 = vxor.u32 %v914, 2147483648
  %v923 = vxor.u32 %v915, 2147483648
  %v924 = vxor.u32 %v916, 2147483648
  %v925 = vxor.u32 %v917, 2147483648
  %v926 = vmul.f32 %v918, 1.442695
  %v927 = vpow.pop %v926
  %v928 = vmul.f32 %v919, 1.442695
  %v929 = vpow.pop %v928
  %v930 = vmul.f32 %v920, 1.442695
  %v931 = vpow.pop %v930
  %v932 = vmul.f32 %v921, 1.442695
  %v933 = vpow.pop %v932
  %v934 = vmul.f32 %v922, 1.442695
  %v935 = vpow.pop %v934
  %v936 = vmul.f32 %v923, 1.442695
  %v937 = vpow.pop %v936
  %v938 = vmul.f32 %v924, 1.442695
  %v939 = vpow.pop %v938
  %v940 = vmul.f32 %v925, 1.442695
  %v941 = vpow.pop %v940
  %v942 = vadd.f32 %v927, 1.0
  %v943 = vadd.f32 %v929, 1.0
  %v944 = vadd.f32 %v931, 1.0
  %v945 = vadd.f32 %v933, 1.0
  %v946 = vadd.f32 %v935, 1.0
  %v947 = vadd.f32 %v937, 1.0
  %v948 = vadd.f32 %v939, 1.0
  %v949 = vadd.f32 %v941, 1.0
  %v950 = vrcp.pop %v942
  %v951 = vmul.f32 %v942, %v950
  %v952 = vsub.f32 1.0, %v951
  %v953 = vmul.f32 %v950, %v952
  %v954 = vadd.f32 %v950, %v953
  %vm955 = vweird.f32 %v942
  %vm956 = vweird.f32 %v950
  %vm957 = vmor %vm955, %vm956
  %v958 = vsel %vm957, %v950, %v954
  %v959 = vand.u32 2147483647, %v942
  %vm960 = vcmp.eq.f32.partialorder %v959, 8.507059e+37
  %v961 = vand.u32 %v942, 2147483648
  %v962 = vor.u32 1.1754944e-38, %v961
  %v963 = vsel %vm960, %v962, %v958
  %v964 = vmul.f32 1.0, %v963
  %v965 = vrcp.pop %v943
  %v966 = vmul.f32 %v943, %v965
  %v967 = vsub.f32 1.0, %v966
  %v968 = vmul.f32 %v965, %v967
  %v969 = vadd.f32 %v965, %v968
  %vm970 = vweird.f32 %v943
  %vm971 = vweird.f32 %v965
  %vm972 = vmor %vm970, %vm971
  %v973 = vsel %vm972, %v965, %v969
  %v974 = vand.u32 2147483647, %v943
  %vm975 = vcmp.eq.f32.partialorder %v974, 8.507059e+37
  %v976 = vand.u32 %v943, 2147483648
  %v977 = vor.u32 1.1754944e-38, %v976
  %v978 = vsel %vm975, %v977, %v973
  %v979 = vmul.f32 1.0, %v978
  %v980 = vrcp.pop %v944
  %v981 = vmul.f32 %v944, %v980
  %v982 = vsub.f32 1.0, %v981
  %v983 = vmul.f32 %v980, %v982
  %v984 = vadd.f32 %v980, %v983
  %vm985 = vweird.f32 %v944
  %vm986 = vweird.f32 %v980
  %vm987 = vmor %vm985, %vm986
  %v988 = vsel %vm987, %v980, %v984
  %v989 = vand.u32 2147483647, %v944
  %vm990 = vcmp.eq.f32.partialorder %v989, 8.507059e+37
  %v991 = vand.u32 %v944, 2147483648
  %v992 = vor.u32 1.1754944e-38, %v991
  %v993 = vsel %vm990, %v992, %v988
  %v994 = vmul.f32 1.0, %v993
  %v995 = vrcp.pop %v945
  %v996 = vmul.f32 %v945, %v995
  %v997 = vsub.f32 1.0, %v996
  %v998 = vmul.f32 %v995, %v997
  %v999 = vadd.f32 %v995, %v998
  %vm1000 = vweird.f32 %v945
  %vm1001 = vweird.f32 %v995
  %vm1002 = vmor %vm1000, %vm1001
  %v1003 = vsel %vm1002, %v995, %v999
  %v1004 = vand.u32 2147483647, %v945
  %vm1005 = vcmp.eq.f32.partialorder %v1004, 8.507059e+37
  %v1006 = vand.u32 %v945, 2147483648
  %v1007 = vor.u32 1.1754944e-38, %v1006
  %v1008 = vsel %vm1005, %v1007, %v1003
  %v1009 = vmul.f32 1.0, %v1008
  %v1010 = vrcp.pop %v946
  %v1011 = vmul.f32 %v946, %v1010
  %v1012 = vsub.f32 1.0, %v1011
  %v1013 = vmul.f32 %v1010, %v1012
  %v1014 = vadd.f32 %v1010, %v1013
  %vm1015 = vweird.f32 %v946
  %vm1016 = vweird.f32 %v1010
  %vm1017 = vmor %vm1015, %vm1016
  %v1018 = vsel %vm1017, %v1010, %v1014
  %v1019 = vand.u32 2147483647, %v946
  %vm1020 = vcmp.eq.f32.partialorder %v1019, 8.507059e+37
  %v1021 = vand.u32 %v946, 2147483648
  %v1022 = vor.u32 1.1754944e-38, %v1021
  %v1023 = vsel %vm1020, %v1022, %v1018
  %v1024 = vmul.f32 1.0, %v1023
  %v1025 = vrcp.pop %v947
  %v1026 = vmul.f32 %v947, %v1025
  %v1027 = vsub.f32 1.0, %v1026
  %v1028 = vmul.f32 %v1025, %v1027
  %v1029 = vadd.f32 %v1025, %v1028
  %vm1030 = vweird.f32 %v947
  %vm1031 = vweird.f32 %v1025
  %vm1032 = vmor %vm1030, %vm1031
  %v1033 = vsel %vm1032, %v1025, %v1029
  %v1034 = vand.u32 2147483647, %v947
  %vm1035 = vcmp.eq.f32.partialorder %v1034, 8.507059e+37
  %v1036 = vand.u32 %v947, 2147483648
  %v1037 = vor.u32 1.1754944e-38, %v1036
  %v1038 = vsel %vm1035, %v1037, %v1033
  %v1039 = vmul.f32 1.0, %v1038
  %v1040 = vrcp.pop %v948
  %v1041 = vmul.f32 %v948, %v1040
  %v1042 = vsub.f32 1.0, %v1041
  %v1043 = vmul.f32 %v1040, %v1042
  %v1044 = vadd.f32 %v1040, %v1043
  %vm1045 = vweird.f32 %v948
  %vm1046 = vweird.f32 %v1040
  %vm1047 = vmor %vm1045, %vm1046
  %v1048 = vsel %vm1047, %v1040, %v1044
  %v1049 = vand.u32 2147483647, %v948
  %vm1050 = vcmp.eq.f32.partialorder %v1049, 8.507059e+37
  %v1051 = vand.u32 %v948, 2147483648
  %v1052 = vor.u32 1.1754944e-38, %v1051
  %v1053 = vsel %vm1050, %v1052, %v1048
  %v1054 = vmul.f32 1.0, %v1053
  %v1055 = vrcp.pop %v949
  %v1056 = vmul.f32 %v949, %v1055
  %v1057 = vsub.f32 1.0, %v1056
  %v1058 = vmul.f32 %v1055, %v1057
  %v1059 = vadd.f32 %v1055, %v1058
  %vm1060 = vweird.f32 %v949
  %vm1061 = vweird.f32 %v1055
  %vm1062 = vmor %vm1060, %vm1061
  %v1063 = vsel %vm1062, %v1055, %v1059
  %v1064 = vand.u32 2147483647, %v949
  %vm1065 = vcmp.eq.f32.partialorder %v1064, 8.507059e+37
  %v1066 = vand.u32 %v949, 2147483648
  %v1067 = vor.u32 1.1754944e-38, %v1066
  %v1068 = vsel %vm1065, %v1067, %v1063
  %v1069 = vmul.f32 1.0, %v1068
  %v1070 = vld [vmem:[#allocation2 + $0x8] sm:$0xff]
  %v1071 = vld [vmem:[#allocation2 + $0x20] sm:$0xff]
  %v1072 = vld [vmem:[#allocation2 + $0x38] sm:$0xff]
  %v1073 = vld [vmem:[#allocation2 + $0x50] sm:$0xff]
  %v1074 = vld [vmem:[#allocation2 + $0x68] sm:$0xff]
  %v1075 = vld [vmem:[#allocation2 + $0x80] sm:$0xff]
  %v1076 = vld [vmem:[#allocation2 + $0x98] sm:$0xff]
  %v1077 = vld [vmem:[#allocation2 + $0xb0] sm:$0xff]
  %v1078 = vadd.f32 %v1070, %v887
  %v1079 = vadd.f32 %v1071, %v889
  %v1080 = vadd.f32 %v1072, %v891
  %v1081 = vadd.f32 %v1073, %v893
  %v1082 = vadd.f32 %v1074, %v895
  %v1083 = vadd.f32 %v1075, %v897
  %v1084 = vadd.f32 %v1076, %v899
  %v1085 = vadd.f32 %v1077, %v901
  %v1086 = vxor.u32 %v1078, 2147483648
  %v1087 = vxor.u32 %v1079, 2147483648
  %v1088 = vxor.u32 %v1080, 2147483648
  %v1089 = vxor.u32 %v1081, 2147483648
  %v1090 = vxor.u32 %v1082, 2147483648
  %v1091 = vxor.u32 %v1083, 2147483648
  %v1092 = vxor.u32 %v1084, 2147483648
  %v1093 = vxor.u32 %v1085, 2147483648
  %v1094 = vmul.f32 %v1086, 1.442695
  %v1095 = vpow.pop %v1094
  %v1096 = vmul.f32 %v1087, 1.442695
  %v1097 = vpow.pop %v1096
  %v1098 = vmul.f32 %v1088, 1.442695
  %v1099 = vpow.pop %v1098
  %v1100 = vmul.f32 %v1089, 1.442695
  %v1101 = vpow.pop %v1100
  %v1102 = vmul.f32 %v1090, 1.442695
  %v1103 = vpow.pop %v1102
  %v1104 = vmul.f32 %v1091, 1.442695
  %v1105 = vpow.pop %v1104
  %v1106 = vmul.f32 %v1092, 1.442695
  %v1107 = vpow.pop %v1106
  %v1108 = vmul.f32 %v1093, 1.442695
  %v1109 = vpow.pop %v1108
  %v1110 = vadd.f32 %v1095, 1.0
  %v1111 = vadd.f32 %v1097, 1.0
  %v1112 = vadd.f32 %v1099, 1.0
  %v1113 = vadd.f32 %v1101, 1.0
  %v1114 = vadd.f32 %v1103, 1.0
  %v1115 = vadd.f32 %v1105, 1.0
  %v1116 = vadd.f32 %v1107, 1.0
  %v1117 = vadd.f32 %v1109, 1.0
  %v1118 = vrcp.pop %v1110
  %v1119 = vmul.f32 %v1110, %v1118
  %v1120 = vsub.f32 1.0, %v1119
  %v1121 = vmul.f32 %v1118, %v1120
  %v1122 = vadd.f32 %v1118, %v1121
  %vm1123 = vweird.f32 %v1110
  %vm1124 = vweird.f32 %v1118
  %vm1125 = vmor %vm1123, %vm1124
  %v1126 = vsel %vm1125, %v1118, %v1122
  %v1127 = vand.u32 2147483647, %v1110
  %vm1128 = vcmp.eq.f32.partialorder %v1127, 8.507059e+37
  %v1129 = vand.u32 %v1110, 2147483648
  %v1130 = vor.u32 1.1754944e-38, %v1129
  %v1131 = vsel %vm1128, %v1130, %v1126
  %v1132 = vmul.f32 1.0, %v1131
  %v1133 = vrcp.pop %v1111
  %v1134 = vmul.f32 %v1111, %v1133
  %v1135 = vsub.f32 1.0, %v1134
  %v1136 = vmul.f32 %v1133, %v1135
  %v1137 = vadd.f32 %v1133, %v1136
  %vm1138 = vweird.f32 %v1111
  %vm1139 = vweird.f32 %v1133
  %vm1140 = vmor %vm1138, %vm1139
  %v1141 = vsel %vm1140, %v1133, %v1137
  %v1142 = vand.u32 2147483647, %v1111
  %vm1143 = vcmp.eq.f32.partialorder %v1142, 8.507059e+37
  %v1144 = vand.u32 %v1111, 2147483648
  %v1145 = vor.u32 1.1754944e-38, %v1144
  %v1146 = vsel %vm1143, %v1145, %v1141
  %v1147 = vmul.f32 1.0, %v1146
  %v1148 = vrcp.pop %v1112
  %v1149 = vmul.f32 %v1112, %v1148
  %v1150 = vsub.f32 1.0, %v1149
  %v1151 = vmul.f32 %v1148, %v1150
  %v1152 = vadd.f32 %v1148, %v1151
  %vm1153 = vweird.f32 %v1112
  %vm1154 = vweird.f32 %v1148
  %vm1155 = vmor %vm1153, %vm1154
  %v1156 = vsel %vm1155, %v1148, %v1152
  %v1157 = vand.u32 2147483647, %v1112
  %vm1158 = vcmp.eq.f32.partialorder %v1157, 8.507059e+37
  %v1159 = vand.u32 %v1112, 2147483648
  %v1160 = vor.u32 1.1754944e-38, %v1159
  %v1161 = vsel %vm1158, %v1160, %v1156
  %v1162 = vmul.f32 1.0, %v1161
  %v1163 = vrcp.pop %v1113
  %v1164 = vmul.f32 %v1113, %v1163
  %v1165 = vsub.f32 1.0, %v1164
  %v1166 = vmul.f32 %v1163, %v1165
  %v1167 = vadd.f32 %v1163, %v1166
  %vm1168 = vweird.f32 %v1113
  %vm1169 = vweird.f32 %v1163
  %vm1170 = vmor %vm1168, %vm1169
  %v1171 = vsel %vm1170, %v1163, %v1167
  %v1172 = vand.u32 2147483647, %v1113
  %vm1173 = vcmp.eq.f32.partialorder %v1172, 8.507059e+37
  %v1174 = vand.u32 %v1113, 2147483648
  %v1175 = vor.u32 1.1754944e-38, %v1174
  %v1176 = vsel %vm1173, %v1175, %v1171
  %v1177 = vmul.f32 1.0, %v1176
  %v1178 = vrcp.pop %v1114
  %v1179 = vmul.f32 %v1114, %v1178
  %v1180 = vsub.f32 1.0, %v1179
  %v1181 = vmul.f32 %v1178, %v1180
  %v1182 = vadd.f32 %v1178, %v1181
  %vm1183 = vweird.f32 %v1114
  %vm1184 = vweird.f32 %v1178
  %vm1185 = vmor %vm1183, %vm1184
  %v1186 = vsel %vm1185, %v1178, %v1182
  %v1187 = vand.u32 2147483647, %v1114
  %vm1188 = vcmp.eq.f32.partialorder %v1187, 8.507059e+37
  %v1189 = vand.u32 %v1114, 2147483648
  %v1190 = vor.u32 1.1754944e-38, %v1189
  %v1191 = vsel %vm1188, %v1190, %v1186
  %v1192 = vmul.f32 1.0, %v1191
  %v1193 = vrcp.pop %v1115
  %v1194 = vmul.f32 %v1115, %v1193
  %v1195 = vsub.f32 1.0, %v1194
  %v1196 = vmul.f32 %v1193, %v1195
  %v1197 = vadd.f32 %v1193, %v1196
  %vm1198 = vweird.f32 %v1115
  %vm1199 = vweird.f32 %v1193
  %vm1200 = vmor %vm1198, %vm1199
  %v1201 = vsel %vm1200, %v1193, %v1197
  %v1202 = vand.u32 2147483647, %v1115
  %vm1203 = vcmp.eq.f32.partialorder %v1202, 8.507059e+37
  %v1204 = vand.u32 %v1115, 2147483648
  %v1205 = vor.u32 1.1754944e-38, %v1204
  %v1206 = vsel %vm1203, %v1205, %v1201
  %v1207 = vmul.f32 1.0, %v1206
  %v1208 = vrcp.pop %v1116
  %v1209 = vmul.f32 %v1116, %v1208
  %v1210 = vsub.f32 1.0, %v1209
  %v1211 = vmul.f32 %v1208, %v1210
  %v1212 = vadd.f32 %v1208, %v1211
  %vm1213 = vweird.f32 %v1116
  %vm1214 = vweird.f32 %v1208
  %vm1215 = vmor %vm1213, %vm1214
  %v1216 = vsel %vm1215, %v1208, %v1212
  %v1217 = vand.u32 2147483647, %v1116
  %vm1218 = vcmp.eq.f32.partialorder %v1217, 8.507059e+37
  %v1219 = vand.u32 %v1116, 2147483648
  %v1220 = vor.u32 1.1754944e-38, %v1219
  %v1221 = vsel %vm1218, %v1220, %v1216
  %v1222 = vmul.f32 1.0, %v1221
  %v1223 = vrcp.pop %v1117
  %v1224 = vmul.f32 %v1117, %v1223
  %v1225 = vsub.f32 1.0, %v1224
  %v1226 = vmul.f32 %v1223, %v1225
  %v1227 = vadd.f32 %v1223, %v1226
  %vm1228 = vweird.f32 %v1117
  %vm1229 = vweird.f32 %v1223
  %vm1230 = vmor %vm1228, %vm1229
  %v1231 = vsel %vm1230, %v1223, %v1227
  %v1232 = vand.u32 2147483647, %v1117
  %vm1233 = vcmp.eq.f32.partialorder %v1232, 8.507059e+37
  %v1234 = vand.u32 %v1117, 2147483648
  %v1235 = vor.u32 1.1754944e-38, %v1234
  %v1236 = vsel %vm1233, %v1235, %v1231
  %v1237 = vmul.f32 1.0, %v1236
  %v1238 = vsel %vm870, %v1132, 0.0
  %v1239 = vsel %vm871, %v1147, 0.0
  %v1240 = vsel %vm872, %v1162, 0.0
  %v1241 = vsel %vm873, %v1177, 0.0
  %v1242 = vsel %vm874, %v1192, 0.0
  %v1243 = vsel %vm875, %v1207, 0.0
  %v1244 = vsel %vm876, %v1222, 0.0
  %v1245 = vsel %vm877, %v1237, 0.0
  %1246 = vadd.xlane.f32.xlu0 %v1238
  %v1247 = vpop.xlane.xlu0 %1246
  %1248 = vadd.xlane.f32.xlu0 %v1239
  %v1249 = vpop.xlane.xlu0 %1248
  %1250 = vadd.xlane.f32.xlu0 %v1240
  %v1251 = vpop.xlane.xlu0 %1250
  %1252 = vadd.xlane.f32.xlu0 %v1241
  %v1253 = vpop.xlane.xlu0 %1252
  %1254 = vadd.xlane.f32.xlu0 %v1242
  %v1255 = vpop.xlane.xlu0 %1254
  %1256 = vadd.xlane.f32.xlu0 %v1243
  %v1257 = vpop.xlane.xlu0 %1256
  %1258 = vadd.xlane.f32.xlu0 %v1244
  %v1259 = vpop.xlane.xlu0 %1258
  %1260 = vadd.xlane.f32.xlu0 %v1245
  %v1261 = vpop.xlane.xlu0 %1260
  %v1262 = vld [vmem:[%s5] sm:$0xf]
  %v1263 = vld [vmem:[%s5 + $0x4] sm:$0xf]
  %v1264 = vld [vmem:[%s5 + $0x8] sm:$0xf]
  %v1265 = vld [vmem:[%s5 + $0xc] sm:$0xf]
  %v1266 = vld [vmem:[%s5 + $0x10] sm:$0xf]
  %v1267 = vld [vmem:[%s5 + $0x14] sm:$0xf]
  %v1268 = vld [vmem:[%s5 + $0x18] sm:$0xf]
  %v1269 = vld [vmem:[%s5 + $0x1c] sm:$0xf]
  %v1270 = vunpack.c.l.bf16 %v1262
  %v1271 = vunpack.c.l.bf16 %v1263
  %v1272 = vunpack.c.l.bf16 %v1264
  %v1273 = vunpack.c.l.bf16 %v1265
  %v1274 = vunpack.c.l.bf16 %v1266
  %v1275 = vunpack.c.l.bf16 %v1267
  %v1276 = vunpack.c.l.bf16 %v1268
  %v1277 = vunpack.c.l.bf16 %v1269
  %v1278 = vmul.f32 %v1247, %v1270
  %v1279 = vmul.f32 %v1249, %v1271
  %v1280 = vmul.f32 %v1251, %v1272
  %v1281 = vmul.f32 %v1253, %v1273
  %v1282 = vmul.f32 %v1255, %v1274
  %v1283 = vmul.f32 %v1257, %v1275
  %v1284 = vmul.f32 %v1259, %v1276
  %v1285 = vmul.f32 %v1261, %v1277
  %v1286 = vld [vmem:[#allocation2 + $0x10] sm:$0xff]
  %v1287 = vld [vmem:[#allocation2 + $0x28] sm:$0xff]
  %v1288 = vld [vmem:[#allocation2 + $0x40] sm:$0xff]
  %v1289 = vld [vmem:[#allocation2 + $0x58] sm:$0xff]
  %v1290 = vld [vmem:[#allocation2 + $0x70] sm:$0xff]
  %v1291 = vld [vmem:[#allocation2 + $0x88] sm:$0xff]
  %v1292 = vld [vmem:[#allocation2 + $0xa0] sm:$0xff]
  %v1293 = vld [vmem:[#allocation2 + $0xb8] sm:$0xff]
  %v1294 = vadd.f32 %v1286, %v1278
  %v1295 = vadd.f32 %v1287, %v1279
  %v1296 = vadd.f32 %v1288, %v1280
  %v1297 = vadd.f32 %v1289, %v1281
  %v1298 = vadd.f32 %v1290, %v1282
  %v1299 = vadd.f32 %v1291, %v1283
  %v1300 = vadd.f32 %v1292, %v1284
  %v1301 = vadd.f32 %v1293, %v1285
  %v1302 = vtanh.pop %v1294
  %v1303 = vtanh.pop %v1295
  %v1304 = vtanh.pop %v1296
  %v1305 = vtanh.pop %v1297
  %v1306 = vtanh.pop %v1298
  %v1307 = vtanh.pop %v1299
  %v1308 = vtanh.pop %v1300
  %v1309 = vtanh.pop %v1301
  %v1310 = vsub.f32 1.0, %v964
  %v1311 = vsub.f32 1.0, %v979
  %v1312 = vsub.f32 1.0, %v994
  %v1313 = vsub.f32 1.0, %v1009
  %v1314 = vsub.f32 1.0, %v1024
  %v1315 = vsub.f32 1.0, %v1039
  %v1316 = vsub.f32 1.0, %v1054
  %v1317 = vsub.f32 1.0, %v1069
  %v1318 = vmul.f32 %v1310, %v1132
  %v1319 = vmul.f32 %v1311, %v1147
  %v1320 = vmul.f32 %v1312, %v1162
  %v1321 = vmul.f32 %v1313, %v1177
  %v1322 = vmul.f32 %v1314, %v1192
  %v1323 = vmul.f32 %v1315, %v1207
  %v1324 = vmul.f32 %v1316, %v1222
  %v1325 = vmul.f32 %v1317, %v1237
  %v1326 = vsel %vm870, %v1318, 0.0
  %v1327 = vsel %vm871, %v1319, 0.0
  %v1328 = vsel %vm872, %v1320, 0.0
  %v1329 = vsel %vm873, %v1321, 0.0
  %v1330 = vsel %vm874, %v1322, 0.0
  %v1331 = vsel %vm875, %v1323, 0.0
  %v1332 = vsel %vm876, %v1324, 0.0
  %v1333 = vsel %vm877, %v1325, 0.0
  %v1334 = vmul.f32 %v964, %v1302
  %v1335 = vmul.f32 %v979, %v1303
  %v1336 = vmul.f32 %v994, %v1304
  %v1337 = vmul.f32 %v1009, %v1305
  %v1338 = vmul.f32 %v1024, %v1306
  %v1339 = vmul.f32 %v1039, %v1307
  %v1340 = vmul.f32 %v1054, %v1308
  %v1341 = vmul.f32 %v1069, %v1309
  %v1342 = vadd.f32 %v1326, %v1334
  %v1343 = vadd.f32 %v1327, %v1335
  %v1344 = vadd.f32 %v1328, %v1336
  %v1345 = vadd.f32 %v1329, %v1337
  %v1346 = vadd.f32 %v1330, %v1338
  %v1347 = vadd.f32 %v1331, %v1339
  %v1348 = vadd.f32 %v1332, %v1340
  %v1349 = vadd.f32 %v1333, %v1341
  %s1350 = smul.u32 8, 3
  %s1351 = smul.addr %s1350, 8
  %s1352 = scalar_lea.vmem [#allocation2], %s1351
  %v1353 = vld [vmem:[%s1352] sm:$0xff]
  %v1354 = vld [vmem:[%s1352 + $0x18] sm:$0xff]
  %v1355 = vld [vmem:[%s1352 + $0x30] sm:$0xff]
  %v1356 = vld [vmem:[%s1352 + $0x48] sm:$0xff]
  %v1357 = vld [vmem:[%s1352 + $0x60] sm:$0xff]
  %v1358 = vld [vmem:[%s1352 + $0x78] sm:$0xff]
  %v1359 = vld [vmem:[%s1352 + $0x90] sm:$0xff]
  %v1360 = vld [vmem:[%s1352 + $0xa8] sm:$0xff]
  %v1361 = vld [vmem:[%s1352 + $0x8] sm:$0xff]
  %v1362 = vld [vmem:[%s1352 + $0x20] sm:$0xff]
  %v1363 = vld [vmem:[%s1352 + $0x38] sm:$0xff]
  %v1364 = vld [vmem:[%s1352 + $0x50] sm:$0xff]
  %v1365 = vld [vmem:[%s1352 + $0x68] sm:$0xff]
  %v1366 = vld [vmem:[%s1352 + $0x80] sm:$0xff]
  %v1367 = vld [vmem:[%s1352 + $0x98] sm:$0xff]
  %v1368 = vld [vmem:[%s1352 + $0xb0] sm:$0xff]
  %v1369 = vld [vmem:[%s1352 + $0x10] sm:$0xff]
  %v1370 = vld [vmem:[%s1352 + $0x28] sm:$0xff]
  %v1371 = vld [vmem:[%s1352 + $0x40] sm:$0xff]
  %v1372 = vld [vmem:[%s1352 + $0x58] sm:$0xff]
  %v1373 = vld [vmem:[%s1352 + $0x70] sm:$0xff]
  %v1374 = vld [vmem:[%s1352 + $0x88] sm:$0xff]
  %v1375 = vld [vmem:[%s1352 + $0xa0] sm:$0xff]
  %v1376 = vld [vmem:[%s1352 + $0xb8] sm:$0xff]
  %v1377 = vpack.c.bf16 %v1327, %v1326
  %v1378 = vpack.c.bf16 %v1329, %v1328
  %v1379 = vpack.c.bf16 %v1331, %v1330
  %v1380 = vpack.c.bf16 %v1333, %v1332
  %v1381 = vld [vmem:[%s4] sm:$0xff]
  %v1382 = vld [vmem:[%s4 + $0x8] sm:$0xff]
  %v1383 = vld [vmem:[%s4 + $0x10] sm:$0xff]
  %v1384 = vld [vmem:[%s4 + $0x18] sm:$0xff]
  %v1385 = vld [vmem:[%s4 + $0x20] sm:$0xff]
  %v1386 = vld [vmem:[%s4 + $0x28] sm:$0xff]
  %v1387 = vld [vmem:[%s4 + $0x30] sm:$0xff]
  %v1388 = vld [vmem:[%s4 + $0x38] sm:$0xff]
  %v1389 = vld [vmem:[%s4 + $0x40] sm:$0xff]
  %v1390 = vld [vmem:[%s4 + $0x48] sm:$0xff]
  %v1391 = vld [vmem:[%s4 + $0x50] sm:$0xff]
  %v1392 = vld [vmem:[%s4 + $0x58] sm:$0xff]
  %v1393 = vld [vmem:[%s4 + $0x60] sm:$0xff]
  %v1394 = vld [vmem:[%s4 + $0x68] sm:$0xff]
  %v1395 = vld [vmem:[%s4 + $0x70] sm:$0xff]
  %v1396 = vld [vmem:[%s4 + $0x78] sm:$0xff]
  %v1413 = vunpack.c.l.b16 %v1381
  %v1414 = vunpack.c.h.b16 %v1381
  %v1415 = vunpack.c.l.b16 %v1382
  %v1416 = vunpack.c.h.b16 %v1382
  %v1417 = vunpack.c.l.b16 %v1383
  %v1418 = vunpack.c.h.b16 %v1383
  %v1419 = vunpack.c.l.b16 %v1384
  %v1420 = vunpack.c.h.b16 %v1384
  %v1421 = vunpack.c.l.b16 %v1385
  %v1422 = vunpack.c.h.b16 %v1385
  %v1423 = vunpack.c.l.b16 %v1386
  %v1424 = vunpack.c.h.b16 %v1386
  %v1425 = vunpack.c.l.b16 %v1387
  %v1426 = vunpack.c.h.b16 %v1387
  %v1427 = vunpack.c.l.b16 %v1388
  %v1428 = vunpack.c.h.b16 %v1388
  %v1429 = vunpack.c.l.b16 %v1389
  %v1430 = vunpack.c.h.b16 %v1389
  %v1431 = vunpack.c.l.b16 %v1390
  %v1432 = vunpack.c.h.b16 %v1390
  %v1433 = vunpack.c.l.b16 %v1391
  %v1434 = vunpack.c.h.b16 %v1391
  %v1435 = vunpack.c.l.b16 %v1392
  %v1436 = vunpack.c.h.b16 %v1392
  %v1437 = vunpack.c.l.b16 %v1393
  %v1438 = vunpack.c.h.b16 %v1393
  %v1439 = vunpack.c.l.b16 %v1394
  %v1440 = vunpack.c.h.b16 %v1394
  %v1441 = vunpack.c.l.b16 %v1395
  %v1442 = vunpack.c.h.b16 %v1395
  %v1443 = vunpack.c.l.b16 %v1396
  %v1444 = vunpack.c.h.b16 %v1396
  %v1445 = vpack.c.b16 %v1415, %v1413
  %v1446 = vpack.c.b16 %v1416, %v1414
  %v1447 = vpack.c.b16 %v1419, %v1417
  %v1448 = vpack.c.b16 %v1420, %v1418
  %v1449 = vpack.c.b16 %v1423, %v1421
  %v1450 = vpack.c.b16 %v1424, %v1422
  %v1451 = vpack.c.b16 %v1427, %v1425
  %v1452 = vpack.c.b16 %v1428, %v1426
  %v1453 = vpack.c.b16 %v1431, %v1429
  %v1454 = vpack.c.b16 %v1432, %v1430
  %v1455 = vpack.c.b16 %v1435, %v1433
  %v1456 = vpack.c.b16 %v1436, %v1434
  %v1457 = vpack.c.b16 %v1439, %v1437
  %v1458 = vpack.c.b16 %v1440, %v1438
  %v1459 = vpack.c.b16 %v1443, %v1441
  %v1460 = vpack.c.b16 %v1444, %v1442
  %1477 = vmatpush.bf16.msra.mxu0 %v1459
  %1478 = vmatpush.bf16.msra.mxu0 %v1457
  %1479 = vmatpush.bf16.msra.mxu0 %v1455
  %1480 = vmatpush.bf16.msra.mxu0 %v1453
  %1481 = vmatpush.bf16.msra.mxu0 %v1451
  %1482 = vmatpush.bf16.msra.mxu0 %v1449
  %1483 = vmatpush.bf16.msra.mxu0 %v1447
  %1484 = vmatpush.bf16.msra.mxu0 %v1445
  %1485 = vmatmul.bf16.gmra.mxu0 %v1377
  %v1486 = vpop.f32.mrf.mxu0
  %v1487 = vadd.f32 0.0, %v1486
  %v1488 = vpop.f32.mrf.mxu0
  %v1489 = vadd.f32 0.0, %v1488
  %1490 = vmatmul.bf16.gmra.mxu0 %v1378
  %v1491 = vpop.f32.mrf.mxu0
  %v1492 = vadd.f32 0.0, %v1491
  %v1493 = vpop.f32.mrf.mxu0
  %v1494 = vadd.f32 0.0, %v1493
  %1495 = vmatmul.bf16.gmra.mxu0 %v1379
  %v1496 = vpop.f32.mrf.mxu0
  %v1497 = vadd.f32 0.0, %v1496
  %v1498 = vpop.f32.mrf.mxu0
  %v1499 = vadd.f32 0.0, %v1498
  %1500 = vmatmul.bf16.gmra.mxu0 %v1380
  %v1501 = vpop.f32.mrf.mxu0
  %v1502 = vadd.f32 0.0, %v1501
  %v1503 = vpop.f32.mrf.mxu0
  %v1504 = vadd.f32 0.0, %v1503
  %1505 = vdwg.mxu0
  %1506 = vmatpush.bf16.msra.mxu0 %v1460
  %1507 = vmatpush.bf16.msra.mxu0 %v1458
  %1508 = vmatpush.bf16.msra.mxu0 %v1456
  %1509 = vmatpush.bf16.msra.mxu0 %v1454
  %1510 = vmatpush.bf16.msra.mxu0 %v1452
  %1511 = vmatpush.bf16.msra.mxu0 %v1450
  %1512 = vmatpush.bf16.msra.mxu0 %v1448
  %1513 = vmatpush.bf16.msra.mxu0 %v1446
  %1514 = vmatmul.bf16.gmra.mxu0 %v1377
  %v1515 = vpop.f32.mrf.mxu0
  %v1516 = vadd.f32 0.0, %v1515
  %v1517 = vpop.f32.mrf.mxu0
  %v1518 = vadd.f32 0.0, %v1517
  %1519 = vmatmul.bf16.gmra.mxu0 %v1378
  %v1520 = vpop.f32.mrf.mxu0
  %v1521 = vadd.f32 0.0, %v1520
  %v1522 = vpop.f32.mrf.mxu0
  %v1523 = vadd.f32 0.0, %v1522
  %1524 = vmatmul.bf16.gmra.mxu0 %v1379
  %v1525 = vpop.f32.mrf.mxu0
  %v1526 = vadd.f32 0.0, %v1525
  %v1527 = vpop.f32.mrf.mxu0
  %v1528 = vadd.f32 0.0, %v1527
  %1529 = vmatmul.bf16.gmra.mxu0 %v1380
  %v1530 = vpop.f32.mrf.mxu0
  %v1531 = vadd.f32 0.0, %v1530
  %v1532 = vpop.f32.mrf.mxu0
  %v1533 = vadd.f32 0.0, %v1532
  %1534 = vdwg.mxu0
  %v1535 = vadd.f32 %v1353, %v1487
  %v1536 = vadd.f32 %v1354, %v1489
  %v1537 = vadd.f32 %v1355, %v1492
  %v1538 = vadd.f32 %v1356, %v1494
  %v1539 = vadd.f32 %v1357, %v1497
  %v1540 = vadd.f32 %v1358, %v1499
  %v1541 = vadd.f32 %v1359, %v1502
  %v1542 = vadd.f32 %v1360, %v1504
  %v1543 = vxor.u32 %v1535, 2147483648
  %v1544 = vxor.u32 %v1536, 2147483648
  %v1545 = vxor.u32 %v1537, 2147483648
  %v1546 = vxor.u32 %v1538, 2147483648
  %v1547 = vxor.u32 %v1539, 2147483648
  %v1548 = vxor.u32 %v1540, 2147483648
  %v1549 = vxor.u32 %v1541, 2147483648
  %v1550 = vxor.u32 %v1542, 2147483648
  %v1551 = vmul.f32 %v1543, 1.442695
  %v1552 = vpow.pop %v1551
  %v1553 = vmul.f32 %v1544, 1.442695
  %v1554 = vpow.pop %v1553
  %v1555 = vmul.f32 %v1545, 1.442695
  %v1556 = vpow.pop %v1555
  %v1557 = vmul.f32 %v1546, 1.442695
  %v1558 = vpow.pop %v1557
  %v1559 = vmul.f32 %v1547, 1.442695
  %v1560 = vpow.pop %v1559
  %v1561 = vmul.f32 %v1548, 1.442695
  %v1562 = vpow.pop %v1561
  %v1563 = vmul.f32 %v1549, 1.442695
  %v1564 = vpow.pop %v1563
  %v1565 = vmul.f32 %v1550, 1.442695
  %v1566 = vpow.pop %v1565
  %v1567 = vadd.f32 %v1552, 1.0
  %v1568 = vadd.f32 %v1554, 1.0
  %v1569 = vadd.f32 %v1556, 1.0
  %v1570 = vadd.f32 %v1558, 1.0
  %v1571 = vadd.f32 %v1560, 1.0
  %v1572 = vadd.f32 %v1562, 1.0
  %v1573 = vadd.f32 %v1564, 1.0
  %v1574 = vadd.f32 %v1566, 1.0
  %v1575 = vrcp.pop %v1567
  %v1576 = vmul.f32 %v1567, %v1575
  %v1577 = vsub.f32 1.0, %v1576
  %v1578 = vmul.f32 %v1575, %v1577
  %v1579 = vadd.f32 %v1575, %v1578
  %vm1580 = vweird.f32 %v1567
  %vm1581 = vweird.f32 %v1575
  %vm1582 = vmor %vm1580, %vm1581
  %v1583 = vsel %vm1582, %v1575, %v1579
  %v1584 = vand.u32 2147483647, %v1567
  %vm1585 = vcmp.eq.f32.partialorder %v1584, 8.507059e+37
  %v1586 = vand.u32 %v1567, 2147483648
  %v1587 = vor.u32 1.1754944e-38, %v1586
  %v1588 = vsel %vm1585, %v1587, %v1583
  %v1589 = vmul.f32 1.0, %v1588
  %v1590 = vrcp.pop %v1568
  %v1591 = vmul.f32 %v1568, %v1590
  %v1592 = vsub.f32 1.0, %v1591
  %v1593 = vmul.f32 %v1590, %v1592
  %v1594 = vadd.f32 %v1590, %v1593
  %vm1595 = vweird.f32 %v1568
  %vm1596 = vweird.f32 %v1590
  %vm1597 = vmor %vm1595, %vm1596
  %v1598 = vsel %vm1597, %v1590, %v1594
  %v1599 = vand.u32 2147483647, %v1568
  %vm1600 = vcmp.eq.f32.partialorder %v1599, 8.507059e+37
  %v1601 = vand.u32 %v1568, 2147483648
  %v1602 = vor.u32 1.1754944e-38, %v1601
  %v1603 = vsel %vm1600, %v1602, %v1598
  %v1604 = vmul.f32 1.0, %v1603
  %v1605 = vrcp.pop %v1569
  %v1606 = vmul.f32 %v1569, %v1605
  %v1607 = vsub.f32 1.0, %v1606
  %v1608 = vmul.f32 %v1605, %v1607
  %v1609 = vadd.f32 %v1605, %v1608
  %vm1610 = vweird.f32 %v1569
  %vm1611 = vweird.f32 %v1605
  %vm1612 = vmor %vm1610, %vm1611
  %v1613 = vsel %vm1612, %v1605, %v1609
  %v1614 = vand.u32 2147483647, %v1569
  %vm1615 = vcmp.eq.f32.partialorder %v1614, 8.507059e+37
  %v1616 = vand.u32 %v1569, 2147483648
  %v1617 = vor.u32 1.1754944e-38, %v1616
  %v1618 = vsel %vm1615, %v1617, %v1613
  %v1619 = vmul.f32 1.0, %v1618
  %v1620 = vrcp.pop %v1570
  %v1621 = vmul.f32 %v1570, %v1620
  %v1622 = vsub.f32 1.0, %v1621
  %v1623 = vmul.f32 %v1620, %v1622
  %v1624 = vadd.f32 %v1620, %v1623
  %vm1625 = vweird.f32 %v1570
  %vm1626 = vweird.f32 %v1620
  %vm1627 = vmor %vm1625, %vm1626
  %v1628 = vsel %vm1627, %v1620, %v1624
  %v1629 = vand.u32 2147483647, %v1570
  %vm1630 = vcmp.eq.f32.partialorder %v1629, 8.507059e+37
  %v1631 = vand.u32 %v1570, 2147483648
  %v1632 = vor.u32 1.1754944e-38, %v1631
  %v1633 = vsel %vm1630, %v1632, %v1628
  %v1634 = vmul.f32 1.0, %v1633
  %v1635 = vrcp.pop %v1571
  %v1636 = vmul.f32 %v1571, %v1635
  %v1637 = vsub.f32 1.0, %v1636
  %v1638 = vmul.f32 %v1635, %v1637
  %v1639 = vadd.f32 %v1635, %v1638
  %vm1640 = vweird.f32 %v1571
  %vm1641 = vweird.f32 %v1635
  %vm1642 = vmor %vm1640, %vm1641
  %v1643 = vsel %vm1642, %v1635, %v1639
  %v1644 = vand.u32 2147483647, %v1571
  %vm1645 = vcmp.eq.f32.partialorder %v1644, 8.507059e+37
  %v1646 = vand.u32 %v1571, 2147483648
  %v1647 = vor.u32 1.1754944e-38, %v1646
  %v1648 = vsel %vm1645, %v1647, %v1643
  %v1649 = vmul.f32 1.0, %v1648
  %v1650 = vrcp.pop %v1572
  %v1651 = vmul.f32 %v1572, %v1650
  %v1652 = vsub.f32 1.0, %v1651
  %v1653 = vmul.f32 %v1650, %v1652
  %v1654 = vadd.f32 %v1650, %v1653
  %vm1655 = vweird.f32 %v1572
  %vm1656 = vweird.f32 %v1650
  %vm1657 = vmor %vm1655, %vm1656
  %v1658 = vsel %vm1657, %v1650, %v1654
  %v1659 = vand.u32 2147483647, %v1572
  %vm1660 = vcmp.eq.f32.partialorder %v1659, 8.507059e+37
  %v1661 = vand.u32 %v1572, 2147483648
  %v1662 = vor.u32 1.1754944e-38, %v1661
  %v1663 = vsel %vm1660, %v1662, %v1658
  %v1664 = vmul.f32 1.0, %v1663
  %v1665 = vrcp.pop %v1573
  %v1666 = vmul.f32 %v1573, %v1665
  %v1667 = vsub.f32 1.0, %v1666
  %v1668 = vmul.f32 %v1665, %v1667
  %v1669 = vadd.f32 %v1665, %v1668
  %vm1670 = vweird.f32 %v1573
  %vm1671 = vweird.f32 %v1665
  %vm1672 = vmor %vm1670, %vm1671
  %v1673 = vsel %vm1672, %v1665, %v1669
  %v1674 = vand.u32 2147483647, %v1573
  %vm1675 = vcmp.eq.f32.partialorder %v1674, 8.507059e+37
  %v1676 = vand.u32 %v1573, 2147483648
  %v1677 = vor.u32 1.1754944e-38, %v1676
  %v1678 = vsel %vm1675, %v1677, %v1673
  %v1679 = vmul.f32 1.0, %v1678
  %v1680 = vrcp.pop %v1574
  %v1681 = vmul.f32 %v1574, %v1680
  %v1682 = vsub.f32 1.0, %v1681
  %v1683 = vmul.f32 %v1680, %v1682
  %v1684 = vadd.f32 %v1680, %v1683
  %vm1685 = vweird.f32 %v1574
  %vm1686 = vweird.f32 %v1680
  %vm1687 = vmor %vm1685, %vm1686
  %v1688 = vsel %vm1687, %v1680, %v1684
  %v1689 = vand.u32 2147483647, %v1574
  %vm1690 = vcmp.eq.f32.partialorder %v1689, 8.507059e+37
  %v1691 = vand.u32 %v1574, 2147483648
  %v1692 = vor.u32 1.1754944e-38, %v1691
  %v1693 = vsel %vm1690, %v1692, %v1688
  %v1694 = vmul.f32 1.0, %v1693
  %v1695 = vadd.f32 %v1361, %v1516
  %v1696 = vadd.f32 %v1362, %v1518
  %v1697 = vadd.f32 %v1363, %v1521
  %v1698 = vadd.f32 %v1364, %v1523
  %v1699 = vadd.f32 %v1365, %v1526
  %v1700 = vadd.f32 %v1366, %v1528
  %v1701 = vadd.f32 %v1367, %v1531
  %v1702 = vadd.f32 %v1368, %v1533
  %v1703 = vxor.u32 %v1695, 2147483648
  %v1704 = vxor.u32 %v1696, 2147483648
  %v1705 = vxor.u32 %v1697, 2147483648
  %v1706 = vxor.u32 %v1698, 2147483648
  %v1707 = vxor.u32 %v1699, 2147483648
  %v1708 = vxor.u32 %v1700, 2147483648
  %v1709 = vxor.u32 %v1701, 2147483648
  %v1710 = vxor.u32 %v1702, 2147483648
  %v1711 = vmul.f32 %v1703, 1.442695
  %v1712 = vpow.pop %v1711
  %v1713 = vmul.f32 %v1704, 1.442695
  %v1714 = vpow.pop %v1713
  %v1715 = vmul.f32 %v1705, 1.442695
  %v1716 = vpow.pop %v1715
  %v1717 = vmul.f32 %v1706, 1.442695
  %v1718 = vpow.pop %v1717
  %v1719 = vmul.f32 %v1707, 1.442695
  %v1720 = vpow.pop %v1719
  %v1721 = vmul.f32 %v1708, 1.442695
  %v1722 = vpow.pop %v1721
  %v1723 = vmul.f32 %v1709, 1.442695
  %v1724 = vpow.pop %v1723
  %v1725 = vmul.f32 %v1710, 1.442695
  %v1726 = vpow.pop %v1725
  %v1727 = vadd.f32 %v1712, 1.0
  %v1728 = vadd.f32 %v1714, 1.0
  %v1729 = vadd.f32 %v1716, 1.0
  %v1730 = vadd.f32 %v1718, 1.0
  %v1731 = vadd.f32 %v1720, 1.0
  %v1732 = vadd.f32 %v1722, 1.0
  %v1733 = vadd.f32 %v1724, 1.0
  %v1734 = vadd.f32 %v1726, 1.0
  %v1735 = vrcp.pop %v1727
  %v1736 = vmul.f32 %v1727, %v1735
  %v1737 = vsub.f32 1.0, %v1736
  %v1738 = vmul.f32 %v1735, %v1737
  %v1739 = vadd.f32 %v1735, %v1738
  %vm1740 = vweird.f32 %v1727
  %vm1741 = vweird.f32 %v1735
  %vm1742 = vmor %vm1740, %vm1741
  %v1743 = vsel %vm1742, %v1735, %v1739
  %v1744 = vand.u32 2147483647, %v1727
  %vm1745 = vcmp.eq.f32.partialorder %v1744, 8.507059e+37
  %v1746 = vand.u32 %v1727, 2147483648
  %v1747 = vor.u32 1.1754944e-38, %v1746
  %v1748 = vsel %vm1745, %v1747, %v1743
  %v1749 = vmul.f32 1.0, %v1748
  %v1750 = vrcp.pop %v1728
  %v1751 = vmul.f32 %v1728, %v1750
  %v1752 = vsub.f32 1.0, %v1751
  %v1753 = vmul.f32 %v1750, %v1752
  %v1754 = vadd.f32 %v1750, %v1753
  %vm1755 = vweird.f32 %v1728
  %vm1756 = vweird.f32 %v1750
  %vm1757 = vmor %vm1755, %vm1756
  %v1758 = vsel %vm1757, %v1750, %v1754
  %v1759 = vand.u32 2147483647, %v1728
  %vm1760 = vcmp.eq.f32.partialorder %v1759, 8.507059e+37
  %v1761 = vand.u32 %v1728, 2147483648
  %v1762 = vor.u32 1.1754944e-38, %v1761
  %v1763 = vsel %vm1760, %v1762, %v1758
  %v1764 = vmul.f32 1.0, %v1763
  %v1765 = vrcp.pop %v1729
  %v1766 = vmul.f32 %v1729, %v1765
  %v1767 = vsub.f32 1.0, %v1766
  %v1768 = vmul.f32 %v1765, %v1767
  %v1769 = vadd.f32 %v1765, %v1768
  %vm1770 = vweird.f32 %v1729
  %vm1771 = vweird.f32 %v1765
  %vm1772 = vmor %vm1770, %vm1771
  %v1773 = vsel %vm1772, %v1765, %v1769
  %v1774 = vand.u32 2147483647, %v1729
  %vm1775 = vcmp.eq.f32.partialorder %v1774, 8.507059e+37
  %v1776 = vand.u32 %v1729, 2147483648
  %v1777 = vor.u32 1.1754944e-38, %v1776
  %v1778 = vsel %vm1775, %v1777, %v1773
  %v1779 = vmul.f32 1.0, %v1778
  %v1780 = vrcp.pop %v1730
  %v1781 = vmul.f32 %v1730, %v1780
  %v1782 = vsub.f32 1.0, %v1781
  %v1783 = vmul.f32 %v1780, %v1782
  %v1784 = vadd.f32 %v1780, %v1783
  %vm1785 = vweird.f32 %v1730
  %vm1786 = vweird.f32 %v1780
  %vm1787 = vmor %vm1785, %vm1786
  %v1788 = vsel %vm1787, %v1780, %v1784
  %v1789 = vand.u32 2147483647, %v1730
  %vm1790 = vcmp.eq.f32.partialorder %v1789, 8.507059e+37
  %v1791 = vand.u32 %v1730, 2147483648
  %v1792 = vor.u32 1.1754944e-38, %v1791
  %v1793 = vsel %vm1790, %v1792, %v1788
  %v1794 = vmul.f32 1.0, %v1793
  %v1795 = vrcp.pop %v1731
  %v1796 = vmul.f32 %v1731, %v1795
  %v1797 = vsub.f32 1.0, %v1796
  %v1798 = vmul.f32 %v1795, %v1797
  %v1799 = vadd.f32 %v1795, %v1798
  %vm1800 = vweird.f32 %v1731
  %vm1801 = vweird.f32 %v1795
  %vm1802 = vmor %vm1800, %vm1801
  %v1803 = vsel %vm1802, %v1795, %v1799
  %v1804 = vand.u32 2147483647, %v1731
  %vm1805 = vcmp.eq.f32.partialorder %v1804, 8.507059e+37
  %v1806 = vand.u32 %v1731, 2147483648
  %v1807 = vor.u32 1.1754944e-38, %v1806
  %v1808 = vsel %vm1805, %v1807, %v1803
  %v1809 = vmul.f32 1.0, %v1808
  %v1810 = vrcp.pop %v1732
  %v1811 = vmul.f32 %v1732, %v1810
  %v1812 = vsub.f32 1.0, %v1811
  %v1813 = vmul.f32 %v1810, %v1812
  %v1814 = vadd.f32 %v1810, %v1813
  %vm1815 = vweird.f32 %v1732
  %vm1816 = vweird.f32 %v1810
  %vm1817 = vmor %vm1815, %vm1816
  %v1818 = vsel %vm1817, %v1810, %v1814
  %v1819 = vand.u32 2147483647, %v1732
  %vm1820 = vcmp.eq.f32.partialorder %v1819, 8.507059e+37
  %v1821 = vand.u32 %v1732, 2147483648
  %v1822 = vor.u32 1.1754944e-38, %v1821
  %v1823 = vsel %vm1820, %v1822, %v1818
  %v1824 = vmul.f32 1.0, %v1823
  %v1825 = vrcp.pop %v1733
  %v1826 = vmul.f32 %v1733, %v1825
  %v1827 = vsub.f32 1.0, %v1826
  %v1828 = vmul.f32 %v1825, %v1827
  %v1829 = vadd.f32 %v1825, %v1828
  %vm1830 = vweird.f32 %v1733
  %vm1831 = vweird.f32 %v1825
  %vm1832 = vmor %vm1830, %vm1831
  %v1833 = vsel %vm1832, %v1825, %v1829
  %v1834 = vand.u32 2147483647, %v1733
  %vm1835 = vcmp.eq.f32.partialorder %v1834, 8.507059e+37
  %v1836 = vand.u32 %v1733, 2147483648
  %v1837 = vor.u32 1.1754944e-38, %v1836
  %v1838 = vsel %vm1835, %v1837, %v1833
  %v1839 = vmul.f32 1.0, %v1838
  %v1840 = vrcp.pop %v1734
  %v1841 = vmul.f32 %v1734, %v1840
  %v1842 = vsub.f32 1.0, %v1841
  %v1843 = vmul.f32 %v1840, %v1842
  %v1844 = vadd.f32 %v1840, %v1843
  %vm1845 = vweird.f32 %v1734
  %vm1846 = vweird.f32 %v1840
  %vm1847 = vmor %vm1845, %vm1846
  %v1848 = vsel %vm1847, %v1840, %v1844
  %v1849 = vand.u32 2147483647, %v1734
  %vm1850 = vcmp.eq.f32.partialorder %v1849, 8.507059e+37
  %v1851 = vand.u32 %v1734, 2147483648
  %v1852 = vor.u32 1.1754944e-38, %v1851
  %v1853 = vsel %vm1850, %v1852, %v1848
  %v1854 = vmul.f32 1.0, %v1853
  %v1855 = vmul.f32 %v1749, %v1326
  %v1856 = vmul.f32 %v1764, %v1327
  %v1857 = vmul.f32 %v1779, %v1328
  %v1858 = vmul.f32 %v1794, %v1329
  %v1859 = vmul.f32 %v1809, %v1330
  %v1860 = vmul.f32 %v1824, %v1331
  %v1861 = vmul.f32 %v1839, %v1332
  %v1862 = vmul.f32 %v1854, %v1333
  %v1863 = vpack.c.bf16 %v1856, %v1855
  %v1864 = vpack.c.bf16 %v1858, %v1857
  %v1865 = vpack.c.bf16 %v1860, %v1859
  %v1866 = vpack.c.bf16 %v1862, %v1861
  %v1867 = vld [vmem:[%s5] sm:$0xf]
  %v1868 = vld [vmem:[%s5 + $0x4] sm:$0xf]
  %v1869 = vld [vmem:[%s5 + $0x8] sm:$0xf]
  %v1870 = vld [vmem:[%s5 + $0xc] sm:$0xf]
  %v1871 = vld [vmem:[%s5 + $0x10] sm:$0xf]
  %v1872 = vld [vmem:[%s5 + $0x14] sm:$0xf]
  %v1873 = vld [vmem:[%s5 + $0x18] sm:$0xf]
  %v1874 = vld [vmem:[%s5 + $0x1c] sm:$0xf]
  %v1875 = vld [vmem:[%s5 + $0x20] sm:$0xf]
  %v1876 = vld [vmem:[%s5 + $0x24] sm:$0xf]
  %v1877 = vld [vmem:[%s5 + $0x28] sm:$0xf]
  %v1878 = vld [vmem:[%s5 + $0x2c] sm:$0xf]
  %v1879 = vld [vmem:[%s5 + $0x30] sm:$0xf]
  %v1880 = vld [vmem:[%s5 + $0x34] sm:$0xf]
  %v1881 = vld [vmem:[%s5 + $0x38] sm:$0xf]
  %v1882 = vld [vmem:[%s5 + $0x3c] sm:$0xf]
  %v1899 = vunpack.c.l.b16 %v1867
  %v1900 = vunpack.c.l.b16 %v1868
  %v1901 = vunpack.c.l.b16 %v1869
  %v1902 = vunpack.c.l.b16 %v1870
  %v1903 = vunpack.c.l.b16 %v1871
  %v1904 = vunpack.c.l.b16 %v1872
  %v1905 = vunpack.c.l.b16 %v1873
  %v1906 = vunpack.c.l.b16 %v1874
  %v1907 = vunpack.c.l.b16 %v1875
  %v1908 = vunpack.c.l.b16 %v1876
  %v1909 = vunpack.c.l.b16 %v1877
  %v1910 = vunpack.c.l.b16 %v1878
  %v1911 = vunpack.c.l.b16 %v1879
  %v1912 = vunpack.c.l.b16 %v1880
  %v1913 = vunpack.c.l.b16 %v1881
  %v1914 = vunpack.c.l.b16 %v1882
  %v1915 = vpack.c.b16 %v1900, %v1899
  %v1916 = vpack.c.b16 %v1902, %v1901
  %v1917 = vpack.c.b16 %v1904, %v1903
  %v1918 = vpack.c.b16 %v1906, %v1905
  %v1919 = vpack.c.b16 %v1908, %v1907
  %v1920 = vpack.c.b16 %v1910, %v1909
  %v1921 = vpack.c.b16 %v1912, %v1911
  %v1922 = vpack.c.b16 %v1914, %v1913
  %1931 = vmatpush.bf16.msra.mxu0 %v1922
  %1932 = vmatpush.bf16.msra.mxu0 %v1921
  %1933 = vmatpush.bf16.msra.mxu0 %v1920
  %1934 = vmatpush.bf16.msra.mxu0 %v1919
  %1935 = vmatpush.bf16.msra.mxu0 %v1918
  %1936 = vmatpush.bf16.msra.mxu0 %v1917
  %1937 = vmatpush.bf16.msra.mxu0 %v1916
  %1938 = vmatpush.bf16.msra.mxu0 %v1915
  %1939 = vmatmul.bf16.gmra.mxu0 %v1863
  %v1940 = vpop.f32.mrf.mxu0
  %v1941 = vadd.f32 0.0, %v1940
  %v1942 = vpop.f32.mrf.mxu0
  %v1943 = vadd.f32 0.0, %v1942
  %1944 = vmatmul.bf16.gmra.mxu0 %v1864
  %v1945 = vpop.f32.mrf.mxu0
  %v1946 = vadd.f32 0.0, %v1945
  %v1947 = vpop.f32.mrf.mxu0
  %v1948 = vadd.f32 0.0, %v1947
  %1949 = vmatmul.bf16.gmra.mxu0 %v1865
  %v1950 = vpop.f32.mrf.mxu0
  %v1951 = vadd.f32 0.0, %v1950
  %v1952 = vpop.f32.mrf.mxu0
  %v1953 = vadd.f32 0.0, %v1952
  %1954 = vmatmul.bf16.gmra.mxu0 %v1866
  %v1955 = vpop.f32.mrf.mxu0
  %v1956 = vadd.f32 0.0, %v1955
  %v1957 = vpop.f32.mrf.mxu0
  %v1958 = vadd.f32 0.0, %v1957
  %1959 = vdwg.mxu0
  %v1960 = vadd.f32 %v1369, %v1941
  %v1961 = vadd.f32 %v1370, %v1943
  %v1962 = vadd.f32 %v1371, %v1946
  %v1963 = vadd.f32 %v1372, %v1948
  %v1964 = vadd.f32 %v1373, %v1951
  %v1965 = vadd.f32 %v1374, %v1953
  %v1966 = vadd.f32 %v1375, %v1956
  %v1967 = vadd.f32 %v1376, %v1958
  %v1968 = vtanh.pop %v1960
  %v1969 = vtanh.pop %v1961
  %v1970 = vtanh.pop %v1962
  %v1971 = vtanh.pop %v1963
  %v1972 = vtanh.pop %v1964
  %v1973 = vtanh.pop %v1965
  %v1974 = vtanh.pop %v1966
  %v1975 = vtanh.pop %v1967
  %v1976 = vsub.f32 1.0, %v1589
  %v1977 = vsub.f32 1.0, %v1604
  %v1978 = vsub.f32 1.0, %v1619
  %v1979 = vsub.f32 1.0, %v1634
  %v1980 = vsub.f32 1.0, %v1649
  %v1981 = vsub.f32 1.0, %v1664
  %v1982 = vsub.f32 1.0, %v1679
  %v1983 = vsub.f32 1.0, %v1694
  %v1984 = vmul.f32 %v1976, %v1855
  %v1985 = vmul.f32 %v1977, %v1856
  %v1986 = vmul.f32 %v1978, %v1857
  %v1987 = vmul.f32 %v1979, %v1858
  %v1988 = vmul.f32 %v1980, %v1859
  %v1989 = vmul.f32 %v1981, %v1860
  %v1990 = vmul.f32 %v1982, %v1861
  %v1991 = vmul.f32 %v1983, %v1862
  %v1992 = vadd.f32 %v1342, %v1984
  %v1993 = vadd.f32 %v1343, %v1985
  %v1994 = vadd.f32 %v1344, %v1986
  %v1995 = vadd.f32 %v1345, %v1987
  %v1996 = vadd.f32 %v1346, %v1988
  %v1997 = vadd.f32 %v1347, %v1989
  %v1998 = vadd.f32 %v1348, %v1990
  %v1999 = vadd.f32 %v1349, %v1991
  %v2000 = vmul.f32 %v1589, %v1968
  %v2001 = vmul.f32 %v1604, %v1969
  %v2002 = vmul.f32 %v1619, %v1970
  %v2003 = vmul.f32 %v1634, %v1971
  %v2004 = vmul.f32 %v1649, %v1972
  %v2005 = vmul.f32 %v1664, %v1973
  %v2006 = vmul.f32 %v1679, %v1974
  %v2007 = vmul.f32 %v1694, %v1975
  %v2008 = vadd.f32 %v1992, %v2000
  %v2009 = vadd.f32 %v1993, %v2001
  %v2010 = vadd.f32 %v1994, %v2002
  %v2011 = vadd.f32 %v1995, %v2003
  %v2012 = vadd.f32 %v1996, %v2004
  %v2013 = vadd.f32 %v1997, %v2005
  %v2014 = vadd.f32 %v1998, %v2006
  %v2015 = vadd.f32 %v1999, %v2007
  %s2016 = smul.u32 16, 3
  %s2017 = smul.addr %s2016, 8
  %s2018 = scalar_lea.vmem [#allocation2], %s2017
  %v2019 = vld [vmem:[%s2018] sm:$0xff]
  %v2020 = vld [vmem:[%s2018 + $0x18] sm:$0xff]
  %v2021 = vld [vmem:[%s2018 + $0x30] sm:$0xff]
  %v2022 = vld [vmem:[%s2018 + $0x48] sm:$0xff]
  %v2023 = vld [vmem:[%s2018 + $0x60] sm:$0xff]
  %v2024 = vld [vmem:[%s2018 + $0x78] sm:$0xff]
  %v2025 = vld [vmem:[%s2018 + $0x90] sm:$0xff]
  %v2026 = vld [vmem:[%s2018 + $0xa8] sm:$0xff]
  %v2027 = vld [vmem:[%s2018 + $0x8] sm:$0xff]
  %v2028 = vld [vmem:[%s2018 + $0x20] sm:$0xff]
  %v2029 = vld [vmem:[%s2018 + $0x38] sm:$0xff]
  %v2030 = vld [vmem:[%s2018 + $0x50] sm:$0xff]
  %v2031 = vld [vmem:[%s2018 + $0x68] sm:$0xff]
  %v2032 = vld [vmem:[%s2018 + $0x80] sm:$0xff]
  %v2033 = vld [vmem:[%s2018 + $0x98] sm:$0xff]
  %v2034 = vld [vmem:[%s2018 + $0xb0] sm:$0xff]
  %v2035 = vld [vmem:[%s2018 + $0x10] sm:$0xff]
  %v2036 = vld [vmem:[%s2018 + $0x28] sm:$0xff]
  %v2037 = vld [vmem:[%s2018 + $0x40] sm:$0xff]
  %v2038 = vld [vmem:[%s2018 + $0x58] sm:$0xff]
  %v2039 = vld [vmem:[%s2018 + $0x70] sm:$0xff]
  %v2040 = vld [vmem:[%s2018 + $0x88] sm:$0xff]
  %v2041 = vld [vmem:[%s2018 + $0xa0] sm:$0xff]
  %v2042 = vld [vmem:[%s2018 + $0xb8] sm:$0xff]
  %v2043 = vpack.c.bf16 %v1985, %v1984
  %v2044 = vpack.c.bf16 %v1987, %v1986
  %v2045 = vpack.c.bf16 %v1989, %v1988
  %v2046 = vpack.c.bf16 %v1991, %v1990
  %2047 = vmatpush.bf16.msra.mxu0 %v1459
  %2048 = vmatpush.bf16.msra.mxu0 %v1457
  %2049 = vmatpush.bf16.msra.mxu0 %v1455
  %2050 = vmatpush.bf16.msra.mxu0 %v1453
  %2051 = vmatpush.bf16.msra.mxu0 %v1451
  %2052 = vmatpush.bf16.msra.mxu0 %v1449
  %2053 = vmatpush.bf16.msra.mxu0 %v1447
  %2054 = vmatpush.bf16.msra.mxu0 %v1445
  %2055 = vmatmul.bf16.gmra.mxu0 %v2043
  %v2056 = vpop.f32.mrf.mxu0
  %v2057 = vadd.f32 0.0, %v2056
  %v2058 = vpop.f32.mrf.mxu0
  %v2059 = vadd.f32 0.0, %v2058
  %2060 = vmatmul.bf16.gmra.mxu0 %v2044
  %v2061 = vpop.f32.mrf.mxu0
  %v2062 = vadd.f32 0.0, %v2061
  %v2063 = vpop.f32.mrf.mxu0
  %v2064 = vadd.f32 0.0, %v2063
  %2065 = vmatmul.bf16.gmra.mxu0 %v2045
  %v2066 = vpop.f32.mrf.mxu0
  %v2067 = vadd.f32 0.0, %v2066
  %v2068 = vpop.f32.mrf.mxu0
  %v2069 = vadd.f32 0.0, %v2068
  %2070 = vmatmul.bf16.gmra.mxu0 %v2046
  %v2071 = vpop.f32.mrf.mxu0
  %v2072 = vadd.f32 0.0, %v2071
  %v2073 = vpop.f32.mrf.mxu0
  %v2074 = vadd.f32 0.0, %v2073
  %2075 = vdwg.mxu0
  %2076 = vmatpush.bf16.msra.mxu0 %v1460
  %2077 = vmatpush.bf16.msra.mxu0 %v1458
  %2078 = vmatpush.bf16.msra.mxu0 %v1456
  %2079 = vmatpush.bf16.msra.mxu0 %v1454
  %2080 = vmatpush.bf16.msra.mxu0 %v1452
  %2081 = vmatpush.bf16.msra.mxu0 %v1450
  %2082 = vmatpush.bf16.msra.mxu0 %v1448
  %2083 = vmatpush.bf16.msra.mxu0 %v1446
  %2084 = vmatmul.bf16.gmra.mxu0 %v2043
  %v2085 = vpop.f32.mrf.mxu0
  %v2086 = vadd.f32 0.0, %v2085
  %v2087 = vpop.f32.mrf.mxu0
  %v2088 = vadd.f32 0.0, %v2087
  %2089 = vmatmul.bf16.gmra.mxu0 %v2044
  %v2090 = vpop.f32.mrf.mxu0
  %v2091 = vadd.f32 0.0, %v2090
  %v2092 = vpop.f32.mrf.mxu0
  %v2093 = vadd.f32 0.0, %v2092
  %2094 = vmatmul.bf16.gmra.mxu0 %v2045
  %v2095 = vpop.f32.mrf.mxu0
  %v2096 = vadd.f32 0.0, %v2095
  %v2097 = vpop.f32.mrf.mxu0
  %v2098 = vadd.f32 0.0, %v2097
  %2099 = vmatmul.bf16.gmra.mxu0 %v2046
  %v2100 = vpop.f32.mrf.mxu0
  %v2101 = vadd.f32 0.0, %v2100
  %v2102 = vpop.f32.mrf.mxu0
  %v2103 = vadd.f32 0.0, %v2102
  %2104 = vdwg.mxu0
  %v2105 = vadd.f32 %v2019, %v2057
  %v2106 = vadd.f32 %v2020, %v2059
  %v2107 = vadd.f32 %v2021, %v2062
  %v2108 = vadd.f32 %v2022, %v2064
  %v2109 = vadd.f32 %v2023, %v2067
  %v2110 = vadd.f32 %v2024, %v2069
  %v2111 = vadd.f32 %v2025, %v2072
  %v2112 = vadd.f32 %v2026, %v2074
  %v2113 = vxor.u32 %v2105, 2147483648
  %v2114 = vxor.u32 %v2106, 2147483648
  %v2115 = vxor.u32 %v2107, 2147483648
  %v2116 = vxor.u32 %v2108, 2147483648
  %v2117 = vxor.u32 %v2109, 2147483648
  %v2118 = vxor.u32 %v2110, 2147483648
  %v2119 = vxor.u32 %v2111, 2147483648
  %v2120 = vxor.u32 %v2112, 2147483648
  %v2121 = vmul.f32 %v2113, 1.442695
  %v2122 = vpow.pop %v2121
  %v2123 = vmul.f32 %v2114, 1.442695
  %v2124 = vpow.pop %v2123
  %v2125 = vmul.f32 %v2115, 1.442695
  %v2126 = vpow.pop %v2125
  %v2127 = vmul.f32 %v2116, 1.442695
  %v2128 = vpow.pop %v2127
  %v2129 = vmul.f32 %v2117, 1.442695
  %v2130 = vpow.pop %v2129
  %v2131 = vmul.f32 %v2118, 1.442695
  %v2132 = vpow.pop %v2131
  %v2133 = vmul.f32 %v2119, 1.442695
  %v2134 = vpow.pop %v2133
  %v2135 = vmul.f32 %v2120, 1.442695
  %v2136 = vpow.pop %v2135
  %v2137 = vadd.f32 %v2122, 1.0
  %v2138 = vadd.f32 %v2124, 1.0
  %v2139 = vadd.f32 %v2126, 1.0
  %v2140 = vadd.f32 %v2128, 1.0
  %v2141 = vadd.f32 %v2130, 1.0
  %v2142 = vadd.f32 %v2132, 1.0
  %v2143 = vadd.f32 %v2134, 1.0
  %v2144 = vadd.f32 %v2136, 1.0
  %v2145 = vrcp.pop %v2137
  %v2146 = vmul.f32 %v2137, %v2145
  %v2147 = vsub.f32 1.0, %v2146
  %v2148 = vmul.f32 %v2145, %v2147
  %v2149 = vadd.f32 %v2145, %v2148
  %vm2150 = vweird.f32 %v2137
  %vm2151 = vweird.f32 %v2145
  %vm2152 = vmor %vm2150, %vm2151
  %v2153 = vsel %vm2152, %v2145, %v2149
  %v2154 = vand.u32 2147483647, %v2137
  %vm2155 = vcmp.eq.f32.partialorder %v2154, 8.507059e+37
  %v2156 = vand.u32 %v2137, 2147483648
  %v2157 = vor.u32 1.1754944e-38, %v2156
  %v2158 = vsel %vm2155, %v2157, %v2153
  %v2159 = vmul.f32 1.0, %v2158
  %v2160 = vrcp.pop %v2138
  %v2161 = vmul.f32 %v2138, %v2160
  %v2162 = vsub.f32 1.0, %v2161
  %v2163 = vmul.f32 %v2160, %v2162
  %v2164 = vadd.f32 %v2160, %v2163
  %vm2165 = vweird.f32 %v2138
  %vm2166 = vweird.f32 %v2160
  %vm2167 = vmor %vm2165, %vm2166
  %v2168 = vsel %vm2167, %v2160, %v2164
  %v2169 = vand.u32 2147483647, %v2138
  %vm2170 = vcmp.eq.f32.partialorder %v2169, 8.507059e+37
  %v2171 = vand.u32 %v2138, 2147483648
  %v2172 = vor.u32 1.1754944e-38, %v2171
  %v2173 = vsel %vm2170, %v2172, %v2168
  %v2174 = vmul.f32 1.0, %v2173
  %v2175 = vrcp.pop %v2139
  %v2176 = vmul.f32 %v2139, %v2175
  %v2177 = vsub.f32 1.0, %v2176
  %v2178 = vmul.f32 %v2175, %v2177
  %v2179 = vadd.f32 %v2175, %v2178
  %vm2180 = vweird.f32 %v2139
  %vm2181 = vweird.f32 %v2175
  %vm2182 = vmor %vm2180, %vm2181
  %v2183 = vsel %vm2182, %v2175, %v2179
  %v2184 = vand.u32 2147483647, %v2139
  %vm2185 = vcmp.eq.f32.partialorder %v2184, 8.507059e+37
  %v2186 = vand.u32 %v2139, 2147483648
  %v2187 = vor.u32 1.1754944e-38, %v2186
  %v2188 = vsel %vm2185, %v2187, %v2183
  %v2189 = vmul.f32 1.0, %v2188
  %v2190 = vrcp.pop %v2140
  %v2191 = vmul.f32 %v2140, %v2190
  %v2192 = vsub.f32 1.0, %v2191
  %v2193 = vmul.f32 %v2190, %v2192
  %v2194 = vadd.f32 %v2190, %v2193
  %vm2195 = vweird.f32 %v2140
  %vm2196 = vweird.f32 %v2190
  %vm2197 = vmor %vm2195, %vm2196
  %v2198 = vsel %vm2197, %v2190, %v2194
  %v2199 = vand.u32 2147483647, %v2140
  %vm2200 = vcmp.eq.f32.partialorder %v2199, 8.507059e+37
  %v2201 = vand.u32 %v2140, 2147483648
  %v2202 = vor.u32 1.1754944e-38, %v2201
  %v2203 = vsel %vm2200, %v2202, %v2198
  %v2204 = vmul.f32 1.0, %v2203
  %v2205 = vrcp.pop %v2141
  %v2206 = vmul.f32 %v2141, %v2205
  %v2207 = vsub.f32 1.0, %v2206
  %v2208 = vmul.f32 %v2205, %v2207
  %v2209 = vadd.f32 %v2205, %v2208
  %vm2210 = vweird.f32 %v2141
  %vm2211 = vweird.f32 %v2205
  %vm2212 = vmor %vm2210, %vm2211
  %v2213 = vsel %vm2212, %v2205, %v2209
  %v2214 = vand.u32 2147483647, %v2141
  %vm2215 = vcmp.eq.f32.partialorder %v2214, 8.507059e+37
  %v2216 = vand.u32 %v2141, 2147483648
  %v2217 = vor.u32 1.1754944e-38, %v2216
  %v2218 = vsel %vm2215, %v2217, %v2213
  %v2219 = vmul.f32 1.0, %v2218
  %v2220 = vrcp.pop %v2142
  %v2221 = vmul.f32 %v2142, %v2220
  %v2222 = vsub.f32 1.0, %v2221
  %v2223 = vmul.f32 %v2220, %v2222
  %v2224 = vadd.f32 %v2220, %v2223
  %vm2225 = vweird.f32 %v2142
  %vm2226 = vweird.f32 %v2220
  %vm2227 = vmor %vm2225, %vm2226
  %v2228 = vsel %vm2227, %v2220, %v2224
  %v2229 = vand.u32 2147483647, %v2142
  %vm2230 = vcmp.eq.f32.partialorder %v2229, 8.507059e+37
  %v2231 = vand.u32 %v2142, 2147483648
  %v2232 = vor.u32 1.1754944e-38, %v2231
  %v2233 = vsel %vm2230, %v2232, %v2228
  %v2234 = vmul.f32 1.0, %v2233
  %v2235 = vrcp.pop %v2143
  %v2236 = vmul.f32 %v2143, %v2235
  %v2237 = vsub.f32 1.0, %v2236
  %v2238 = vmul.f32 %v2235, %v2237
  %v2239 = vadd.f32 %v2235, %v2238
  %vm2240 = vweird.f32 %v2143
  %vm2241 = vweird.f32 %v2235
  %vm2242 = vmor %vm2240, %vm2241
  %v2243 = vsel %vm2242, %v2235, %v2239
  %v2244 = vand.u32 2147483647, %v2143
  %vm2245 = vcmp.eq.f32.partialorder %v2244, 8.507059e+37
  %v2246 = vand.u32 %v2143, 2147483648
  %v2247 = vor.u32 1.1754944e-38, %v2246
  %v2248 = vsel %vm2245, %v2247, %v2243
  %v2249 = vmul.f32 1.0, %v2248
  %v2250 = vrcp.pop %v2144
  %v2251 = vmul.f32 %v2144, %v2250
  %v2252 = vsub.f32 1.0, %v2251
  %v2253 = vmul.f32 %v2250, %v2252
  %v2254 = vadd.f32 %v2250, %v2253
  %vm2255 = vweird.f32 %v2144
  %vm2256 = vweird.f32 %v2250
  %vm2257 = vmor %vm2255, %vm2256
  %v2258 = vsel %vm2257, %v2250, %v2254
  %v2259 = vand.u32 2147483647, %v2144
  %vm2260 = vcmp.eq.f32.partialorder %v2259, 8.507059e+37
  %v2261 = vand.u32 %v2144, 2147483648
  %v2262 = vor.u32 1.1754944e-38, %v2261
  %v2263 = vsel %vm2260, %v2262, %v2258
  %v2264 = vmul.f32 1.0, %v2263
  %v2265 = vadd.f32 %v2027, %v2086
  %v2266 = vadd.f32 %v2028, %v2088
  %v2267 = vadd.f32 %v2029, %v2091
  %v2268 = vadd.f32 %v2030, %v2093
  %v2269 = vadd.f32 %v2031, %v2096
  %v2270 = vadd.f32 %v2032, %v2098
  %v2271 = vadd.f32 %v2033, %v2101
  %v2272 = vadd.f32 %v2034, %v2103
  %v2273 = vxor.u32 %v2265, 2147483648
  %v2274 = vxor.u32 %v2266, 2147483648
  %v2275 = vxor.u32 %v2267, 2147483648
  %v2276 = vxor.u32 %v2268, 2147483648
  %v2277 = vxor.u32 %v2269, 2147483648
  %v2278 = vxor.u32 %v2270, 2147483648
  %v2279 = vxor.u32 %v2271, 2147483648
  %v2280 = vxor.u32 %v2272, 2147483648
  %v2281 = vmul.f32 %v2273, 1.442695
  %v2282 = vpow.pop %v2281
  %v2283 = vmul.f32 %v2274, 1.442695
  %v2284 = vpow.pop %v2283
  %v2285 = vmul.f32 %v2275, 1.442695
  %v2286 = vpow.pop %v2285
  %v2287 = vmul.f32 %v2276, 1.442695
  %v2288 = vpow.pop %v2287
  %v2289 = vmul.f32 %v2277, 1.442695
  %v2290 = vpow.pop %v2289
  %v2291 = vmul.f32 %v2278, 1.442695
  %v2292 = vpow.pop %v2291
  %v2293 = vmul.f32 %v2279, 1.442695
  %v2294 = vpow.pop %v2293
  %v2295 = vmul.f32 %v2280, 1.442695
  %v2296 = vpow.pop %v2295
  %v2297 = vadd.f32 %v2282, 1.0
  %v2298 = vadd.f32 %v2284, 1.0
  %v2299 = vadd.f32 %v2286, 1.0
  %v2300 = vadd.f32 %v2288, 1.0
  %v2301 = vadd.f32 %v2290, 1.0
  %v2302 = vadd.f32 %v2292, 1.0
  %v2303 = vadd.f32 %v2294, 1.0
  %v2304 = vadd.f32 %v2296, 1.0
  %v2305 = vrcp.pop %v2297
  %v2306 = vmul.f32 %v2297, %v2305
  %v2307 = vsub.f32 1.0, %v2306
  %v2308 = vmul.f32 %v2305, %v2307
  %v2309 = vadd.f32 %v2305, %v2308
  %vm2310 = vweird.f32 %v2297
  %vm2311 = vweird.f32 %v2305
  %vm2312 = vmor %vm2310, %vm2311
  %v2313 = vsel %vm2312, %v2305, %v2309
  %v2314 = vand.u32 2147483647, %v2297
  %vm2315 = vcmp.eq.f32.partialorder %v2314, 8.507059e+37
  %v2316 = vand.u32 %v2297, 2147483648
  %v2317 = vor.u32 1.1754944e-38, %v2316
  %v2318 = vsel %vm2315, %v2317, %v2313
  %v2319 = vmul.f32 1.0, %v2318
  %v2320 = vrcp.pop %v2298
  %v2321 = vmul.f32 %v2298, %v2320
  %v2322 = vsub.f32 1.0, %v2321
  %v2323 = vmul.f32 %v2320, %v2322
  %v2324 = vadd.f32 %v2320, %v2323
  %vm2325 = vweird.f32 %v2298
  %vm2326 = vweird.f32 %v2320
  %vm2327 = vmor %vm2325, %vm2326
  %v2328 = vsel %vm2327, %v2320, %v2324
  %v2329 = vand.u32 2147483647, %v2298
  %vm2330 = vcmp.eq.f32.partialorder %v2329, 8.507059e+37
  %v2331 = vand.u32 %v2298, 2147483648
  %v2332 = vor.u32 1.1754944e-38, %v2331
  %v2333 = vsel %vm2330, %v2332, %v2328
  %v2334 = vmul.f32 1.0, %v2333
  %v2335 = vrcp.pop %v2299
  %v2336 = vmul.f32 %v2299, %v2335
  %v2337 = vsub.f32 1.0, %v2336
  %v2338 = vmul.f32 %v2335, %v2337
  %v2339 = vadd.f32 %v2335, %v2338
  %vm2340 = vweird.f32 %v2299
  %vm2341 = vweird.f32 %v2335
  %vm2342 = vmor %vm2340, %vm2341
  %v2343 = vsel %vm2342, %v2335, %v2339
  %v2344 = vand.u32 2147483647, %v2299
  %vm2345 = vcmp.eq.f32.partialorder %v2344, 8.507059e+37
  %v2346 = vand.u32 %v2299, 2147483648
  %v2347 = vor.u32 1.1754944e-38, %v2346
  %v2348 = vsel %vm2345, %v2347, %v2343
  %v2349 = vmul.f32 1.0, %v2348
  %v2350 = vrcp.pop %v2300
  %v2351 = vmul.f32 %v2300, %v2350
  %v2352 = vsub.f32 1.0, %v2351
  %v2353 = vmul.f32 %v2350, %v2352
  %v2354 = vadd.f32 %v2350, %v2353
  %vm2355 = vweird.f32 %v2300
  %vm2356 = vweird.f32 %v2350
  %vm2357 = vmor %vm2355, %vm2356
  %v2358 = vsel %vm2357, %v2350, %v2354
  %v2359 = vand.u32 2147483647, %v2300
  %vm2360 = vcmp.eq.f32.partialorder %v2359, 8.507059e+37
  %v2361 = vand.u32 %v2300, 2147483648
  %v2362 = vor.u32 1.1754944e-38, %v2361
  %v2363 = vsel %vm2360, %v2362, %v2358
  %v2364 = vmul.f32 1.0, %v2363
  %v2365 = vrcp.pop %v2301
  %v2366 = vmul.f32 %v2301, %v2365
  %v2367 = vsub.f32 1.0, %v2366
  %v2368 = vmul.f32 %v2365, %v2367
  %v2369 = vadd.f32 %v2365, %v2368
  %vm2370 = vweird.f32 %v2301
  %vm2371 = vweird.f32 %v2365
  %vm2372 = vmor %vm2370, %vm2371
  %v2373 = vsel %vm2372, %v2365, %v2369
  %v2374 = vand.u32 2147483647, %v2301
  %vm2375 = vcmp.eq.f32.partialorder %v2374, 8.507059e+37
  %v2376 = vand.u32 %v2301, 2147483648
  %v2377 = vor.u32 1.1754944e-38, %v2376
  %v2378 = vsel %vm2375, %v2377, %v2373
  %v2379 = vmul.f32 1.0, %v2378
  %v2380 = vrcp.pop %v2302
  %v2381 = vmul.f32 %v2302, %v2380
  %v2382 = vsub.f32 1.0, %v2381
  %v2383 = vmul.f32 %v2380, %v2382
  %v2384 = vadd.f32 %v2380, %v2383
  %vm2385 = vweird.f32 %v2302
  %vm2386 = vweird.f32 %v2380
  %vm2387 = vmor %vm2385, %vm2386
  %v2388 = vsel %vm2387, %v2380, %v2384
  %v2389 = vand.u32 2147483647, %v2302
  %vm2390 = vcmp.eq.f32.partialorder %v2389, 8.507059e+37
  %v2391 = vand.u32 %v2302, 2147483648
  %v2392 = vor.u32 1.1754944e-38, %v2391
  %v2393 = vsel %vm2390, %v2392, %v2388
  %v2394 = vmul.f32 1.0, %v2393
  %v2395 = vrcp.pop %v2303
  %v2396 = vmul.f32 %v2303, %v2395
  %v2397 = vsub.f32 1.0, %v2396
  %v2398 = vmul.f32 %v2395, %v2397
  %v2399 = vadd.f32 %v2395, %v2398
  %vm2400 = vweird.f32 %v2303
  %vm2401 = vweird.f32 %v2395
  %vm2402 = vmor %vm2400, %vm2401
  %v2403 = vsel %vm2402, %v2395, %v2399
  %v2404 = vand.u32 2147483647, %v2303
  %vm2405 = vcmp.eq.f32.partialorder %v2404, 8.507059e+37
  %v2406 = vand.u32 %v2303, 2147483648
  %v2407 = vor.u32 1.1754944e-38, %v2406
  %v2408 = vsel %vm2405, %v2407, %v2403
  %v2409 = vmul.f32 1.0, %v2408
  %v2410 = vrcp.pop %v2304
  %v2411 = vmul.f32 %v2304, %v2410
  %v2412 = vsub.f32 1.0, %v2411
  %v2413 = vmul.f32 %v2410, %v2412
  %v2414 = vadd.f32 %v2410, %v2413
  %vm2415 = vweird.f32 %v2304
  %vm2416 = vweird.f32 %v2410
  %vm2417 = vmor %vm2415, %vm2416
  %v2418 = vsel %vm2417, %v2410, %v2414
  %v2419 = vand.u32 2147483647, %v2304
  %vm2420 = vcmp.eq.f32.partialorder %v2419, 8.507059e+37
  %v2421 = vand.u32 %v2304, 2147483648
  %v2422 = vor.u32 1.1754944e-38, %v2421
  %v2423 = vsel %vm2420, %v2422, %v2418
  %v2424 = vmul.f32 1.0, %v2423
  %v2425 = vmul.f32 %v2319, %v1984
  %v2426 = vmul.f32 %v2334, %v1985
  %v2427 = vmul.f32 %v2349, %v1986
  %v2428 = vmul.f32 %v2364, %v1987
  %v2429 = vmul.f32 %v2379, %v1988
  %v2430 = vmul.f32 %v2394, %v1989
  %v2431 = vmul.f32 %v2409, %v1990
  %v2432 = vmul.f32 %v2424, %v1991
  %v2433 = vpack.c.bf16 %v2426, %v2425
  %v2434 = vpack.c.bf16 %v2428, %v2427
  %v2435 = vpack.c.bf16 %v2430, %v2429
  %v2436 = vpack.c.bf16 %v2432, %v2431
  %2437 = vmatpush.bf16.msra.mxu0 %v1922
  %2438 = vmatpush.bf16.msra.mxu0 %v1921
  %2439 = vmatpush.bf16.msra.mxu0 %v1920
  %2440 = vmatpush.bf16.msra.mxu0 %v1919
  %2441 = vmatpush.bf16.msra.mxu0 %v1918
  %2442 = vmatpush.bf16.msra.mxu0 %v1917
  %2443 = vmatpush.bf16.msra.mxu0 %v1916
  %2444 = vmatpush.bf16.msra.mxu0 %v1915
  %2445 = vmatmul.bf16.gmra.mxu0 %v2433
  %v2446 = vpop.f32.mrf.mxu0
  %v2447 = vadd.f32 0.0, %v2446
  %v2448 = vpop.f32.mrf.mxu0
  %v2449 = vadd.f32 0.0, %v2448
  %2450 = vmatmul.bf16.gmra.mxu0 %v2434
  %v2451 = vpop.f32.mrf.mxu0
  %v2452 = vadd.f32 0.0, %v2451
  %v2453 = vpop.f32.mrf.mxu0
  %v2454 = vadd.f32 0.0, %v2453
  %2455 = vmatmul.bf16.gmra.mxu0 %v2435
  %v2456 = vpop.f32.mrf.mxu0
  %v2457 = vadd.f32 0.0, %v2456
  %v2458 = vpop.f32.mrf.mxu0
  %v2459 = vadd.f32 0.0, %v2458
  %2460 = vmatmul.bf16.gmra.mxu0 %v2436
  %v2461 = vpop.f32.mrf.mxu0
  %v2462 = vadd.f32 0.0, %v2461
  %v2463 = vpop.f32.mrf.mxu0
  %v2464 = vadd.f32 0.0, %v2463
  %2465 = vdwg.mxu0
  %v2466 = vadd.f32 %v2035, %v2447
  %v2467 = vadd.f32 %v2036, %v2449
  %v2468 = vadd.f32 %v2037, %v2452
  %v2469 = vadd.f32 %v2038, %v2454
  %v2470 = vadd.f32 %v2039, %v2457
  %v2471 = vadd.f32 %v2040, %v2459
  %v2472 = vadd.f32 %v2041, %v2462
  %v2473 = vadd.f32 %v2042, %v2464
  %v2474 = vtanh.pop %v2466
  %v2475 = vtanh.pop %v2467
  %v2476 = vtanh.pop %v2468
  %v2477 = vtanh.pop %v2469
  %v2478 = vtanh.pop %v2470
  %v2479 = vtanh.pop %v2471
  %v2480 = vtanh.pop %v2472
  %v2481 = vtanh.pop %v2473
  %v2482 = vsub.f32 1.0, %v2159
  %v2483 = vsub.f32 1.0, %v2174
  %v2484 = vsub.f32 1.0, %v2189
  %v2485 = vsub.f32 1.0, %v2204
  %v2486 = vsub.f32 1.0, %v2219
  %v2487 = vsub.f32 1.0, %v2234
  %v2488 = vsub.f32 1.0, %v2249
  %v2489 = vsub.f32 1.0, %v2264
  %v2490 = vmul.f32 %v2482, %v2425
  %v2491 = vmul.f32 %v2483, %v2426
  %v2492 = vmul.f32 %v2484, %v2427
  %v2493 = vmul.f32 %v2485, %v2428
  %v2494 = vmul.f32 %v2486, %v2429
  %v2495 = vmul.f32 %v2487, %v2430
  %v2496 = vmul.f32 %v2488, %v2431
  %v2497 = vmul.f32 %v2489, %v2432
  %v2498 = vadd.f32 %v2008, %v2490
  %v2499 = vadd.f32 %v2009, %v2491
  %v2500 = vadd.f32 %v2010, %v2492
  %v2501 = vadd.f32 %v2011, %v2493
  %v2502 = vadd.f32 %v2012, %v2494
  %v2503 = vadd.f32 %v2013, %v2495
  %v2504 = vadd.f32 %v2014, %v2496
  %v2505 = vadd.f32 %v2015, %v2497
  %v2506 = vmul.f32 %v2159, %v2474
  %v2507 = vmul.f32 %v2174, %v2475
  %v2508 = vmul.f32 %v2189, %v2476
  %v2509 = vmul.f32 %v2204, %v2477
  %v2510 = vmul.f32 %v2219, %v2478
  %v2511 = vmul.f32 %v2234, %v2479
  %v2512 = vmul.f32 %v2249, %v2480
  %v2513 = vmul.f32 %v2264, %v2481
  %v2514 = vadd.f32 %v2498, %v2506
  %v2515 = vadd.f32 %v2499, %v2507
  %v2516 = vadd.f32 %v2500, %v2508
  %v2517 = vadd.f32 %v2501, %v2509
  %v2518 = vadd.f32 %v2502, %v2510
  %v2519 = vadd.f32 %v2503, %v2511
  %v2520 = vadd.f32 %v2504, %v2512
  %v2521 = vadd.f32 %v2505, %v2513
  %s2522 = smul.u32 24, 3
  %s2523 = smul.addr %s2522, 8
  %s2524 = scalar_lea.vmem [#allocation2], %s2523
  %v2525 = vld [vmem:[%s2524] sm:$0xff]
  %v2526 = vld [vmem:[%s2524 + $0x18] sm:$0xff]
  %v2527 = vld [vmem:[%s2524 + $0x30] sm:$0xff]
  %v2528 = vld [vmem:[%s2524 + $0x48] sm:$0xff]
  %v2529 = vld [vmem:[%s2524 + $0x60] sm:$0xff]
  %v2530 = vld [vmem:[%s2524 + $0x78] sm:$0xff]
  %v2531 = vld [vmem:[%s2524 + $0x90] sm:$0xff]
  %v2532 = vld [vmem:[%s2524 + $0xa8] sm:$0xff]
  %v2533 = vld [vmem:[%s2524 + $0x8] sm:$0xff]
  %v2534 = vld [vmem:[%s2524 + $0x20] sm:$0xff]
  %v2535 = vld [vmem:[%s2524 + $0x38] sm:$0xff]
  %v2536 = vld [vmem:[%s2524 + $0x50] sm:$0xff]
  %v2537 = vld [vmem:[%s2524 + $0x68] sm:$0xff]
  %v2538 = vld [vmem:[%s2524 + $0x80] sm:$0xff]
  %v2539 = vld [vmem:[%s2524 + $0x98] sm:$0xff]
  %v2540 = vld [vmem:[%s2524 + $0xb0] sm:$0xff]
  %v2541 = vld [vmem:[%s2524 + $0x10] sm:$0xff]
  %v2542 = vld [vmem:[%s2524 + $0x28] sm:$0xff]
  %v2543 = vld [vmem:[%s2524 + $0x40] sm:$0xff]
  %v2544 = vld [vmem:[%s2524 + $0x58] sm:$0xff]
  %v2545 = vld [vmem:[%s2524 + $0x70] sm:$0xff]
  %v2546 = vld [vmem:[%s2524 + $0x88] sm:$0xff]
  %v2547 = vld [vmem:[%s2524 + $0xa0] sm:$0xff]
  %v2548 = vld [vmem:[%s2524 + $0xb8] sm:$0xff]
  %v2549 = vpack.c.bf16 %v2491, %v2490
  %v2550 = vpack.c.bf16 %v2493, %v2492
  %v2551 = vpack.c.bf16 %v2495, %v2494
  %v2552 = vpack.c.bf16 %v2497, %v2496
  %2553 = vmatpush.bf16.msra.mxu0 %v1459
  %2554 = vmatpush.bf16.msra.mxu0 %v1457
  %2555 = vmatpush.bf16.msra.mxu0 %v1455
  %2556 = vmatpush.bf16.msra.mxu0 %v1453
  %2557 = vmatpush.bf16.msra.mxu0 %v1451
  %2558 = vmatpush.bf16.msra.mxu0 %v1449
  %2559 = vmatpush.bf16.msra.mxu0 %v1447
  %2560 = vmatpush.bf16.msra.mxu0 %v1445
  %2561 = vmatmul.bf16.gmra.mxu0 %v2549
  %v2562 = vpop.f32.mrf.mxu0
  %v2563 = vadd.f32 0.0, %v2562
  %v2564 = vpop.f32.mrf.mxu0
  %v2565 = vadd.f32 0.0, %v2564
  %2566 = vmatmul.bf16.gmra.mxu0 %v2550
  %v2567 = vpop.f32.mrf.mxu0
  %v2568 = vadd.f32 0.0, %v2567
  %v2569 = vpop.f32.mrf.mxu0
  %v2570 = vadd.f32 0.0, %v2569
  %2571 = vmatmul.bf16.gmra.mxu0 %v2551
  %v2572 = vpop.f32.mrf.mxu0
  %v2573 = vadd.f32 0.0, %v2572
  %v2574 = vpop.f32.mrf.mxu0
  %v2575 = vadd.f32 0.0, %v2574
  %2576 = vmatmul.bf16.gmra.mxu0 %v2552
  %v2577 = vpop.f32.mrf.mxu0
  %v2578 = vadd.f32 0.0, %v2577
  %v2579 = vpop.f32.mrf.mxu0
  %v2580 = vadd.f32 0.0, %v2579
  %2581 = vdwg.mxu0
  %2582 = vmatpush.bf16.msra.mxu0 %v1460
  %2583 = vmatpush.bf16.msra.mxu0 %v1458
  %2584 = vmatpush.bf16.msra.mxu0 %v1456
  %2585 = vmatpush.bf16.msra.mxu0 %v1454
  %2586 = vmatpush.bf16.msra.mxu0 %v1452
  %2587 = vmatpush.bf16.msra.mxu0 %v1450
  %2588 = vmatpush.bf16.msra.mxu0 %v1448
  %2589 = vmatpush.bf16.msra.mxu0 %v1446
  %2590 = vmatmul.bf16.gmra.mxu0 %v2549
  %v2591 = vpop.f32.mrf.mxu0
  %v2592 = vadd.f32 0.0, %v2591
  %v2593 = vpop.f32.mrf.mxu0
  %v2594 = vadd.f32 0.0, %v2593
  %2595 = vmatmul.bf16.gmra.mxu0 %v2550
  %v2596 = vpop.f32.mrf.mxu0
  %v2597 = vadd.f32 0.0, %v2596
  %v2598 = vpop.f32.mrf.mxu0
  %v2599 = vadd.f32 0.0, %v2598
  %2600 = vmatmul.bf16.gmra.mxu0 %v2551
  %v2601 = vpop.f32.mrf.mxu0
  %v2602 = vadd.f32 0.0, %v2601
  %v2603 = vpop.f32.mrf.mxu0
  %v2604 = vadd.f32 0.0, %v2603
  %2605 = vmatmul.bf16.gmra.mxu0 %v2552
  %v2606 = vpop.f32.mrf.mxu0
  %v2607 = vadd.f32 0.0, %v2606
  %v2608 = vpop.f32.mrf.mxu0
  %v2609 = vadd.f32 0.0, %v2608
  %2610 = vdwg.mxu0
  %v2611 = vadd.f32 %v2525, %v2563
  %v2612 = vadd.f32 %v2526, %v2565
  %v2613 = vadd.f32 %v2527, %v2568
  %v2614 = vadd.f32 %v2528, %v2570
  %v2615 = vadd.f32 %v2529, %v2573
  %v2616 = vadd.f32 %v2530, %v2575
  %v2617 = vadd.f32 %v2531, %v2578
  %v2618 = vadd.f32 %v2532, %v2580
  %v2619 = vxor.u32 %v2611, 2147483648
  %v2620 = vxor.u32 %v2612, 2147483648
  %v2621 = vxor.u32 %v2613, 2147483648
  %v2622 = vxor.u32 %v2614, 2147483648
  %v2623 = vxor.u32 %v2615, 2147483648
  %v2624 = vxor.u32 %v2616, 2147483648
  %v2625 = vxor.u32 %v2617, 2147483648
  %v2626 = vxor.u32 %v2618, 2147483648
  %v2627 = vmul.f32 %v2619, 1.442695
  %v2628 = vpow.pop %v2627
  %v2629 = vmul.f32 %v2620, 1.442695
  %v2630 = vpow.pop %v2629
  %v2631 = vmul.f32 %v2621, 1.442695
  %v2632 = vpow.pop %v2631
  %v2633 = vmul.f32 %v2622, 1.442695
  %v2634 = vpow.pop %v2633
  %v2635 = vmul.f32 %v2623, 1.442695
  %v2636 = vpow.pop %v2635
  %v2637 = vmul.f32 %v2624, 1.442695
  %v2638 = vpow.pop %v2637
  %v2639 = vmul.f32 %v2625, 1.442695
  %v2640 = vpow.pop %v2639
  %v2641 = vmul.f32 %v2626, 1.442695
  %v2642 = vpow.pop %v2641
  %v2643 = vadd.f32 %v2628, 1.0
  %v2644 = vadd.f32 %v2630, 1.0
  %v2645 = vadd.f32 %v2632, 1.0
  %v2646 = vadd.f32 %v2634, 1.0
  %v2647 = vadd.f32 %v2636, 1.0
  %v2648 = vadd.f32 %v2638, 1.0
  %v2649 = vadd.f32 %v2640, 1.0
  %v2650 = vadd.f32 %v2642, 1.0
  %v2651 = vrcp.pop %v2643
  %v2652 = vmul.f32 %v2643, %v2651
  %v2653 = vsub.f32 1.0, %v2652
  %v2654 = vmul.f32 %v2651, %v2653
  %v2655 = vadd.f32 %v2651, %v2654
  %vm2656 = vweird.f32 %v2643
  %vm2657 = vweird.f32 %v2651
  %vm2658 = vmor %vm2656, %vm2657
  %v2659 = vsel %vm2658, %v2651, %v2655
  %v2660 = vand.u32 2147483647, %v2643
  %vm2661 = vcmp.eq.f32.partialorder %v2660, 8.507059e+37
  %v2662 = vand.u32 %v2643, 2147483648
  %v2663 = vor.u32 1.1754944e-38, %v2662
  %v2664 = vsel %vm2661, %v2663, %v2659
  %v2665 = vmul.f32 1.0, %v2664
  %v2666 = vrcp.pop %v2644
  %v2667 = vmul.f32 %v2644, %v2666
  %v2668 = vsub.f32 1.0, %v2667
  %v2669 = vmul.f32 %v2666, %v2668
  %v2670 = vadd.f32 %v2666, %v2669
  %vm2671 = vweird.f32 %v2644
  %vm2672 = vweird.f32 %v2666
  %vm2673 = vmor %vm2671, %vm2672
  %v2674 = vsel %vm2673, %v2666, %v2670
  %v2675 = vand.u32 2147483647, %v2644
  %vm2676 = vcmp.eq.f32.partialorder %v2675, 8.507059e+37
  %v2677 = vand.u32 %v2644, 2147483648
  %v2678 = vor.u32 1.1754944e-38, %v2677
  %v2679 = vsel %vm2676, %v2678, %v2674
  %v2680 = vmul.f32 1.0, %v2679
  %v2681 = vrcp.pop %v2645
  %v2682 = vmul.f32 %v2645, %v2681
  %v2683 = vsub.f32 1.0, %v2682
  %v2684 = vmul.f32 %v2681, %v2683
  %v2685 = vadd.f32 %v2681, %v2684
  %vm2686 = vweird.f32 %v2645
  %vm2687 = vweird.f32 %v2681
  %vm2688 = vmor %vm2686, %vm2687
  %v2689 = vsel %vm2688, %v2681, %v2685
  %v2690 = vand.u32 2147483647, %v2645
  %vm2691 = vcmp.eq.f32.partialorder %v2690, 8.507059e+37
  %v2692 = vand.u32 %v2645, 2147483648
  %v2693 = vor.u32 1.1754944e-38, %v2692
  %v2694 = vsel %vm2691, %v2693, %v2689
  %v2695 = vmul.f32 1.0, %v2694
  %v2696 = vrcp.pop %v2646
  %v2697 = vmul.f32 %v2646, %v2696
  %v2698 = vsub.f32 1.0, %v2697
  %v2699 = vmul.f32 %v2696, %v2698
  %v2700 = vadd.f32 %v2696, %v2699
  %vm2701 = vweird.f32 %v2646
  %vm2702 = vweird.f32 %v2696
  %vm2703 = vmor %vm2701, %vm2702
  %v2704 = vsel %vm2703, %v2696, %v2700
  %v2705 = vand.u32 2147483647, %v2646
  %vm2706 = vcmp.eq.f32.partialorder %v2705, 8.507059e+37
  %v2707 = vand.u32 %v2646, 2147483648
  %v2708 = vor.u32 1.1754944e-38, %v2707
  %v2709 = vsel %vm2706, %v2708, %v2704
  %v2710 = vmul.f32 1.0, %v2709
  %v2711 = vrcp.pop %v2647
  %v2712 = vmul.f32 %v2647, %v2711
  %v2713 = vsub.f32 1.0, %v2712
  %v2714 = vmul.f32 %v2711, %v2713
  %v2715 = vadd.f32 %v2711, %v2714
  %vm2716 = vweird.f32 %v2647
  %vm2717 = vweird.f32 %v2711
  %vm2718 = vmor %vm2716, %vm2717
  %v2719 = vsel %vm2718, %v2711, %v2715
  %v2720 = vand.u32 2147483647, %v2647
  %vm2721 = vcmp.eq.f32.partialorder %v2720, 8.507059e+37
  %v2722 = vand.u32 %v2647, 2147483648
  %v2723 = vor.u32 1.1754944e-38, %v2722
  %v2724 = vsel %vm2721, %v2723, %v2719
  %v2725 = vmul.f32 1.0, %v2724
  %v2726 = vrcp.pop %v2648
  %v2727 = vmul.f32 %v2648, %v2726
  %v2728 = vsub.f32 1.0, %v2727
  %v2729 = vmul.f32 %v2726, %v2728
  %v2730 = vadd.f32 %v2726, %v2729
  %vm2731 = vweird.f32 %v2648
  %vm2732 = vweird.f32 %v2726
  %vm2733 = vmor %vm2731, %vm2732
  %v2734 = vsel %vm2733, %v2726, %v2730
  %v2735 = vand.u32 2147483647, %v2648
  %vm2736 = vcmp.eq.f32.partialorder %v2735, 8.507059e+37
  %v2737 = vand.u32 %v2648, 2147483648
  %v2738 = vor.u32 1.1754944e-38, %v2737
  %v2739 = vsel %vm2736, %v2738, %v2734
  %v2740 = vmul.f32 1.0, %v2739
  %v2741 = vrcp.pop %v2649
  %v2742 = vmul.f32 %v2649, %v2741
  %v2743 = vsub.f32 1.0, %v2742
  %v2744 = vmul.f32 %v2741, %v2743
  %v2745 = vadd.f32 %v2741, %v2744
  %vm2746 = vweird.f32 %v2649
  %vm2747 = vweird.f32 %v2741
  %vm2748 = vmor %vm2746, %vm2747
  %v2749 = vsel %vm2748, %v2741, %v2745
  %v2750 = vand.u32 2147483647, %v2649
  %vm2751 = vcmp.eq.f32.partialorder %v2750, 8.507059e+37
  %v2752 = vand.u32 %v2649, 2147483648
  %v2753 = vor.u32 1.1754944e-38, %v2752
  %v2754 = vsel %vm2751, %v2753, %v2749
  %v2755 = vmul.f32 1.0, %v2754
  %v2756 = vrcp.pop %v2650
  %v2757 = vmul.f32 %v2650, %v2756
  %v2758 = vsub.f32 1.0, %v2757
  %v2759 = vmul.f32 %v2756, %v2758
  %v2760 = vadd.f32 %v2756, %v2759
  %vm2761 = vweird.f32 %v2650
  %vm2762 = vweird.f32 %v2756
  %vm2763 = vmor %vm2761, %vm2762
  %v2764 = vsel %vm2763, %v2756, %v2760
  %v2765 = vand.u32 2147483647, %v2650
  %vm2766 = vcmp.eq.f32.partialorder %v2765, 8.507059e+37
  %v2767 = vand.u32 %v2650, 2147483648
  %v2768 = vor.u32 1.1754944e-38, %v2767
  %v2769 = vsel %vm2766, %v2768, %v2764
  %v2770 = vmul.f32 1.0, %v2769
  %v2771 = vadd.f32 %v2533, %v2592
  %v2772 = vadd.f32 %v2534, %v2594
  %v2773 = vadd.f32 %v2535, %v2597
  %v2774 = vadd.f32 %v2536, %v2599
  %v2775 = vadd.f32 %v2537, %v2602
  %v2776 = vadd.f32 %v2538, %v2604
  %v2777 = vadd.f32 %v2539, %v2607
  %v2778 = vadd.f32 %v2540, %v2609
  %v2779 = vxor.u32 %v2771, 2147483648
  %v2780 = vxor.u32 %v2772, 2147483648
  %v2781 = vxor.u32 %v2773, 2147483648
  %v2782 = vxor.u32 %v2774, 2147483648
  %v2783 = vxor.u32 %v2775, 2147483648
  %v2784 = vxor.u32 %v2776, 2147483648
  %v2785 = vxor.u32 %v2777, 2147483648
  %v2786 = vxor.u32 %v2778, 2147483648
  %v2787 = vmul.f32 %v2779, 1.442695
  %v2788 = vpow.pop %v2787
  %v2789 = vmul.f32 %v2780, 1.442695
  %v2790 = vpow.pop %v2789
  %v2791 = vmul.f32 %v2781, 1.442695
  %v2792 = vpow.pop %v2791
  %v2793 = vmul.f32 %v2782, 1.442695
  %v2794 = vpow.pop %v2793
  %v2795 = vmul.f32 %v2783, 1.442695
  %v2796 = vpow.pop %v2795
  %v2797 = vmul.f32 %v2784, 1.442695
  %v2798 = vpow.pop %v2797
  %v2799 = vmul.f32 %v2785, 1.442695
  %v2800 = vpow.pop %v2799
  %v2801 = vmul.f32 %v2786, 1.442695
  %v2802 = vpow.pop %v2801
  %v2803 = vadd.f32 %v2788, 1.0
  %v2804 = vadd.f32 %v2790, 1.0
  %v2805 = vadd.f32 %v2792, 1.0
  %v2806 = vadd.f32 %v2794, 1.0
  %v2807 = vadd.f32 %v2796, 1.0
  %v2808 = vadd.f32 %v2798, 1.0
  %v2809 = vadd.f32 %v2800, 1.0
  %v2810 = vadd.f32 %v2802, 1.0
  %v2811 = vrcp.pop %v2803
  %v2812 = vmul.f32 %v2803, %v2811
  %v2813 = vsub.f32 1.0, %v2812
  %v2814 = vmul.f32 %v2811, %v2813
  %v2815 = vadd.f32 %v2811, %v2814
  %vm2816 = vweird.f32 %v2803
  %vm2817 = vweird.f32 %v2811
  %vm2818 = vmor %vm2816, %vm2817
  %v2819 = vsel %vm2818, %v2811, %v2815
  %v2820 = vand.u32 2147483647, %v2803
  %vm2821 = vcmp.eq.f32.partialorder %v2820, 8.507059e+37
  %v2822 = vand.u32 %v2803, 2147483648
  %v2823 = vor.u32 1.1754944e-38, %v2822
  %v2824 = vsel %vm2821, %v2823, %v2819
  %v2825 = vmul.f32 1.0, %v2824
  %v2826 = vrcp.pop %v2804
  %v2827 = vmul.f32 %v2804, %v2826
  %v2828 = vsub.f32 1.0, %v2827
  %v2829 = vmul.f32 %v2826, %v2828
  %v2830 = vadd.f32 %v2826, %v2829
  %vm2831 = vweird.f32 %v2804
  %vm2832 = vweird.f32 %v2826
  %vm2833 = vmor %vm2831, %vm2832
  %v2834 = vsel %vm2833, %v2826, %v2830
  %v2835 = vand.u32 2147483647, %v2804
  %vm2836 = vcmp.eq.f32.partialorder %v2835, 8.507059e+37
  %v2837 = vand.u32 %v2804, 2147483648
  %v2838 = vor.u32 1.1754944e-38, %v2837
  %v2839 = vsel %vm2836, %v2838, %v2834
  %v2840 = vmul.f32 1.0, %v2839
  %v2841 = vrcp.pop %v2805
  %v2842 = vmul.f32 %v2805, %v2841
  %v2843 = vsub.f32 1.0, %v2842
  %v2844 = vmul.f32 %v2841, %v2843
  %v2845 = vadd.f32 %v2841, %v2844
  %vm2846 = vweird.f32 %v2805
  %vm2847 = vweird.f32 %v2841
  %vm2848 = vmor %vm2846, %vm2847
  %v2849 = vsel %vm2848, %v2841, %v2845
  %v2850 = vand.u32 2147483647, %v2805
  %vm2851 = vcmp.eq.f32.partialorder %v2850, 8.507059e+37
  %v2852 = vand.u32 %v2805, 2147483648
  %v2853 = vor.u32 1.1754944e-38, %v2852
  %v2854 = vsel %vm2851, %v2853, %v2849
  %v2855 = vmul.f32 1.0, %v2854
  %v2856 = vrcp.pop %v2806
  %v2857 = vmul.f32 %v2806, %v2856
  %v2858 = vsub.f32 1.0, %v2857
  %v2859 = vmul.f32 %v2856, %v2858
  %v2860 = vadd.f32 %v2856, %v2859
  %vm2861 = vweird.f32 %v2806
  %vm2862 = vweird.f32 %v2856
  %vm2863 = vmor %vm2861, %vm2862
  %v2864 = vsel %vm2863, %v2856, %v2860
  %v2865 = vand.u32 2147483647, %v2806
  %vm2866 = vcmp.eq.f32.partialorder %v2865, 8.507059e+37
  %v2867 = vand.u32 %v2806, 2147483648
  %v2868 = vor.u32 1.1754944e-38, %v2867
  %v2869 = vsel %vm2866, %v2868, %v2864
  %v2870 = vmul.f32 1.0, %v2869
  %v2871 = vrcp.pop %v2807
  %v2872 = vmul.f32 %v2807, %v2871
  %v2873 = vsub.f32 1.0, %v2872
  %v2874 = vmul.f32 %v2871, %v2873
  %v2875 = vadd.f32 %v2871, %v2874
  %vm2876 = vweird.f32 %v2807
  %vm2877 = vweird.f32 %v2871
  %vm2878 = vmor %vm2876, %vm2877
  %v2879 = vsel %vm2878, %v2871, %v2875
  %v2880 = vand.u32 2147483647, %v2807
  %vm2881 = vcmp.eq.f32.partialorder %v2880, 8.507059e+37
  %v2882 = vand.u32 %v2807, 2147483648
  %v2883 = vor.u32 1.1754944e-38, %v2882
  %v2884 = vsel %vm2881, %v2883, %v2879
  %v2885 = vmul.f32 1.0, %v2884
  %v2886 = vrcp.pop %v2808
  %v2887 = vmul.f32 %v2808, %v2886
  %v2888 = vsub.f32 1.0, %v2887
  %v2889 = vmul.f32 %v2886, %v2888
  %v2890 = vadd.f32 %v2886, %v2889
  %vm2891 = vweird.f32 %v2808
  %vm2892 = vweird.f32 %v2886
  %vm2893 = vmor %vm2891, %vm2892
  %v2894 = vsel %vm2893, %v2886, %v2890
  %v2895 = vand.u32 2147483647, %v2808
  %vm2896 = vcmp.eq.f32.partialorder %v2895, 8.507059e+37
  %v2897 = vand.u32 %v2808, 2147483648
  %v2898 = vor.u32 1.1754944e-38, %v2897
  %v2899 = vsel %vm2896, %v2898, %v2894
  %v2900 = vmul.f32 1.0, %v2899
  %v2901 = vrcp.pop %v2809
  %v2902 = vmul.f32 %v2809, %v2901
  %v2903 = vsub.f32 1.0, %v2902
  %v2904 = vmul.f32 %v2901, %v2903
  %v2905 = vadd.f32 %v2901, %v2904
  %vm2906 = vweird.f32 %v2809
  %vm2907 = vweird.f32 %v2901
  %vm2908 = vmor %vm2906, %vm2907
  %v2909 = vsel %vm2908, %v2901, %v2905
  %v2910 = vand.u32 2147483647, %v2809
  %vm2911 = vcmp.eq.f32.partialorder %v2910, 8.507059e+37
  %v2912 = vand.u32 %v2809, 2147483648
  %v2913 = vor.u32 1.1754944e-38, %v2912
  %v2914 = vsel %vm2911, %v2913, %v2909
  %v2915 = vmul.f32 1.0, %v2914
  %v2916 = vrcp.pop %v2810
  %v2917 = vmul.f32 %v2810, %v2916
  %v2918 = vsub.f32 1.0, %v2917
  %v2919 = vmul.f32 %v2916, %v2918
  %v2920 = vadd.f32 %v2916, %v2919
  %vm2921 = vweird.f32 %v2810
  %vm2922 = vweird.f32 %v2916
  %vm2923 = vmor %vm2921, %vm2922
  %v2924 = vsel %vm2923, %v2916, %v2920
  %v2925 = vand.u32 2147483647, %v2810
  %vm2926 = vcmp.eq.f32.partialorder %v2925, 8.507059e+37
  %v2927 = vand.u32 %v2810, 2147483648
  %v2928 = vor.u32 1.1754944e-38, %v2927
  %v2929 = vsel %vm2926, %v2928, %v2924
  %v2930 = vmul.f32 1.0, %v2929
  %v2931 = vmul.f32 %v2825, %v2490
  %v2932 = vmul.f32 %v2840, %v2491
  %v2933 = vmul.f32 %v2855, %v2492
  %v2934 = vmul.f32 %v2870, %v2493
  %v2935 = vmul.f32 %v2885, %v2494
  %v2936 = vmul.f32 %v2900, %v2495
  %v2937 = vmul.f32 %v2915, %v2496
  %v2938 = vmul.f32 %v2930, %v2497
  %v2939 = vpack.c.bf16 %v2932, %v2931
  %v2940 = vpack.c.bf16 %v2934, %v2933
  %v2941 = vpack.c.bf16 %v2936, %v2935
  %v2942 = vpack.c.bf16 %v2938, %v2937
  %2943 = vmatpush.bf16.msra.mxu0 %v1922
  %2944 = vmatpush.bf16.msra.mxu0 %v1921
  %2945 = vmatpush.bf16.msra.mxu0 %v1920
  %2946 = vmatpush.bf16.msra.mxu0 %v1919
  %2947 = vmatpush.bf16.msra.mxu0 %v1918
  %2948 = vmatpush.bf16.msra.mxu0 %v1917
  %2949 = vmatpush.bf16.msra.mxu0 %v1916
  %2950 = vmatpush.bf16.msra.mxu0 %v1915
  %2951 = vmatmul.bf16.gmra.mxu0 %v2939
  %v2952 = vpop.f32.mrf.mxu0
  %v2953 = vadd.f32 0.0, %v2952
  %v2954 = vpop.f32.mrf.mxu0
  %v2955 = vadd.f32 0.0, %v2954
  %2956 = vmatmul.bf16.gmra.mxu0 %v2940
  %v2957 = vpop.f32.mrf.mxu0
  %v2958 = vadd.f32 0.0, %v2957
  %v2959 = vpop.f32.mrf.mxu0
  %v2960 = vadd.f32 0.0, %v2959
  %2961 = vmatmul.bf16.gmra.mxu0 %v2941
  %v2962 = vpop.f32.mrf.mxu0
  %v2963 = vadd.f32 0.0, %v2962
  %v2964 = vpop.f32.mrf.mxu0
  %v2965 = vadd.f32 0.0, %v2964
  %2966 = vmatmul.bf16.gmra.mxu0 %v2942
  %v2967 = vpop.f32.mrf.mxu0
  %v2968 = vadd.f32 0.0, %v2967
  %v2969 = vpop.f32.mrf.mxu0
  %v2970 = vadd.f32 0.0, %v2969
  %2971 = vdwg.mxu0
  %v2972 = vadd.f32 %v2541, %v2953
  %v2973 = vadd.f32 %v2542, %v2955
  %v2974 = vadd.f32 %v2543, %v2958
  %v2975 = vadd.f32 %v2544, %v2960
  %v2976 = vadd.f32 %v2545, %v2963
  %v2977 = vadd.f32 %v2546, %v2965
  %v2978 = vadd.f32 %v2547, %v2968
  %v2979 = vadd.f32 %v2548, %v2970
  %v2980 = vtanh.pop %v2972
  %v2981 = vtanh.pop %v2973
  %v2982 = vtanh.pop %v2974
  %v2983 = vtanh.pop %v2975
  %v2984 = vtanh.pop %v2976
  %v2985 = vtanh.pop %v2977
  %v2986 = vtanh.pop %v2978
  %v2987 = vtanh.pop %v2979
  %v2988 = vsub.f32 1.0, %v2665
  %v2989 = vsub.f32 1.0, %v2680
  %v2990 = vsub.f32 1.0, %v2695
  %v2991 = vsub.f32 1.0, %v2710
  %v2992 = vsub.f32 1.0, %v2725
  %v2993 = vsub.f32 1.0, %v2740
  %v2994 = vsub.f32 1.0, %v2755
  %v2995 = vsub.f32 1.0, %v2770
  %v2996 = vmul.f32 %v2988, %v2931
  %v2997 = vmul.f32 %v2989, %v2932
  %v2998 = vmul.f32 %v2990, %v2933
  %v2999 = vmul.f32 %v2991, %v2934
  %v3000 = vmul.f32 %v2992, %v2935
  %v3001 = vmul.f32 %v2993, %v2936
  %v3002 = vmul.f32 %v2994, %v2937
  %v3003 = vmul.f32 %v2995, %v2938
  %v3004 = vadd.f32 %v2514, %v2996
  %v3005 = vadd.f32 %v2515, %v2997
  %v3006 = vadd.f32 %v2516, %v2998
  %v3007 = vadd.f32 %v2517, %v2999
  %v3008 = vadd.f32 %v2518, %v3000
  %v3009 = vadd.f32 %v2519, %v3001
  %v3010 = vadd.f32 %v2520, %v3002
  %v3011 = vadd.f32 %v2521, %v3003
  %v3012 = vmul.f32 %v2665, %v2980
  %v3013 = vmul.f32 %v2680, %v2981
  %v3014 = vmul.f32 %v2695, %v2982
  %v3015 = vmul.f32 %v2710, %v2983
  %v3016 = vmul.f32 %v2725, %v2984
  %v3017 = vmul.f32 %v2740, %v2985
  %v3018 = vmul.f32 %v2755, %v2986
  %v3019 = vmul.f32 %v2770, %v2987
  %v3020 = vadd.f32 %v3004, %v3012
  %v3021 = vadd.f32 %v3005, %v3013
  %v3022 = vadd.f32 %v3006, %v3014
  %v3023 = vadd.f32 %v3007, %v3015
  %v3024 = vadd.f32 %v3008, %v3016
  %v3025 = vadd.f32 %v3009, %v3017
  %v3026 = vadd.f32 %v3010, %v3018
  %v3027 = vadd.f32 %v3011, %v3019
  %3028 = vst [vmem:[%s6] sm:$0xff] %v3020
  %3029 = vst [vmem:[%s6 + $0x8] sm:$0xff] %v3021
  %3030 = vst [vmem:[%s6 + $0x10] sm:$0xff] %v3022
  %3031 = vst [vmem:[%s6 + $0x18] sm:$0xff] %v3023
  %3032 = vst [vmem:[%s6 + $0x20] sm:$0xff] %v3024
  %3033 = vst [vmem:[%s6 + $0x28] sm:$0xff] %v3025
  %3034 = vst [vmem:[%s6 + $0x30] sm:$0xff] %v3026
  %3035 = vst [vmem:[%s6 + $0x38] sm:$0xff] %v3027
  // Predicated region
  $region26: #{ggru_forward.1} parent=0 // pred_check
    _
  $region27: #{ggru_forward.1} parent=0 // pred_check_branch
    %3037 = sbr.rel (0) target = $region29
  $region28: #{ggru_forward.1} parent=0 // pred_region
    _
  $region29: #{ggru_forward.1} parent=0 // pred_fallthru
    _
  // Predicated region
  $region30: #{ggru_forward.1} parent=0 // pred_check
    _
  $region31: #{ggru_forward.1} parent=0 // pred_check_branch
    %3039 = sbr.rel (0) target = $region33
  $region32: #{ggru_forward.1} parent=0 // pred_region
    _
  $region33: #{ggru_forward.1} parent=0 // pred_fallthru
    _

</llo_original>
